<compile_context>
chip_gen: v6e
topology: v6e:2x2x1
jax: 0.10.0
libtpu: 0.0.40
codegen_flags: <defaults>
</compile_context>

<pallas_src>
import jax
import jax.numpy as jnp
from jax import lax
from jax.experimental import pallas as pl
from jax.experimental.pallas import tpu as pltpu

# ---------------- small synthetic config ----------------
IMG = 16
PATCH = 4
C_IN = 3
EMBED = 32
DEPTH = 2
HEADS = 2
HEAD_DIM = EMBED // HEADS
MLP_HIDDEN = 4 * EMBED
NUM_PATCHES = (IMG // PATCH) ** 2          # 16
SEQ = NUM_PATCHES + 1                      # +1 cls token -> 17
SEQ_PAD = ((SEQ + 7) // 8) * 8             # 24, sublane-aligned token count per batch
PATCH_DIM = C_IN * PATCH * PATCH           # 48
EPS = 1e-6

KERNEL_ARG_ORDER = ['wp', 'base', 'wqkv', 'bqkv', 'projw', 'projb',
                    'fc1w', 'fc1b', 'fc2w', 'fc2b', 'normw', 'normb']


def _fullspec(shape):
    zeros = (0,) * len(shape)
    return pl.BlockSpec(shape, lambda b, _z=zeros: _z)


def _norm_only(x):
    """LayerNorm without affine (affine folded into the following weights)."""
    mu = jnp.mean(x, axis=-1, keepdims=True)
    var = jnp.mean((x - mu) ** 2, axis=-1, keepdims=True)
    return (x - mu) * lax.rsqrt(var + EPS)


# ---------------- fused forward kernel (one batch element per grid step) ----------------
def fused_dinov2_kernel(xp_ref, wp_ref, base_ref,
                        wqkv_ref, bqkv_ref,
                        projw_ref, projb_ref,
                        fc1w_ref, fc1b_ref, fc2w_ref, fc2b_ref,
                        normw_ref, normb_ref,
                        o_ref):
    # ---- patch embedding; cls token, pos embed and conv bias folded into `base` ----
    # xp rows: [zero(cls) | 16 patches | 7 zero pad] for this batch element.
    x = jnp.dot(xp_ref[...], wp_ref[...], preferred_element_type=jnp.float32)
    x = x + base_ref[...]                                   # (SEQ_PAD, D)

    # additive key mask, built ONCE: pad key columns (index >= SEQ) -> -inf
    col = lax.broadcasted_iota(jnp.int32, (SEQ_PAD, SEQ_PAD), 1)
    kbias = jnp.where(col < SEQ, 0.0, -1e30).astype(jnp.float32)

    for d in range(DEPTH):                                  # static unroll over depth
        # ---- multi-head self-attention (pre-LN; ln1 affine folded into wqkv) ----
        h = _norm_only(x)
        # fused QKV: single matmul; softmax scale folded into the q columns offline.
        qkv = jnp.dot(h, wqkv_ref[d], preferred_element_type=jnp.float32) + bqkv_ref[d]

        projw_d = projw_ref[d]                              # (D, D)
        y = x                                               # residual accumulator
        for hh in range(HEADS):                             # static unroll (H=2)
            c0 = hh * HEAD_DIM
            qh = qkv[:, c0:c0 + HEAD_DIM]
            kh = qkv[:, EMBED + c0:EMBED + c0 + HEAD_DIM]
            vh = qkv[:, 2 * EMBED + c0:2 * EMBED + c0 + HEAD_DIM]
            # q @ k^T via contraction of the last dims (no explicit transpose)
            s = lax.dot_general(qh, kh, (((1,), (1,)), ((), ())),
                                preferred_element_type=jnp.float32)   # (SP, SP)
            s = s + kbias
            s = s - jnp.max(s, axis=-1, keepdims=True)
            p = jnp.exp(s)
            p = p * pl.reciprocal(jnp.sum(p, axis=-1, keepdims=True), approx=True)
            oh = jnp.dot(p, vh, preferred_element_type=jnp.float32)   # (SP, HD)
            # per-head partial projection (row-slice of proj_w is sublane-aligned);
            # sum over heads == concat(heads) @ proj_w
            y = y + jnp.dot(oh, projw_d[c0:c0 + HEAD_DIM, :],
                            preferred_element_type=jnp.float32)
        x = y + projb_ref[d]

        # ---- MLP (pre-LN; ln2 affine folded into fc1) ----
        h2 = _norm_only(x)
        h2 = jnp.dot(h2, fc1w_ref[d], preferred_element_type=jnp.float32) + fc1b_ref[d]
        # TODO(synk): PyTorch nn.GELU uses exact erf; tanh approximation used here.
        h2 = jax.nn.gelu(h2, approximate=True)
        h2 = jnp.dot(h2, fc2w_ref[d], preferred_element_type=jnp.float32) + fc2b_ref[d]
        x = x + h2

    # ---- final LayerNorm (affine kept: nothing follows it to fold into) ----
    mu = jnp.mean(x, axis=-1, keepdims=True)
    var = jnp.mean((x - mu) ** 2, axis=-1, keepdims=True)
    o_ref[...] = (x - mu) * lax.rsqrt(var + EPS) * normw_ref[...] + normb_ref[...]


# ---------------- one-time parameter preprocessing ----------------
def prepare_params(params):
    """Repack torch-layout params into the fused-kernel layout (done once).

    Folds: conv bias + cls token + pos embed -> `base`;
           ln1 affine + softmax scale -> fused qkv weight/bias;
           ln2 affine -> fc1 weight/bias.
    """
    scale = HEAD_DIM ** -0.5
    wp = params['patch_w'].reshape(EMBED, PATCH_DIM).T            # (patch_dim, D)
    bp = params['patch_b'].reshape(1, EMBED)
    pos = params['pos_embed'][0]                                  # (SEQ, D)
    cls = params['cls_token'][0]                                  # (1, D)
    # base rows: [cls+pos0 | pos_i + conv_bias (patch rows) | zeros (pad)]
    base = jnp.concatenate(
        [cls + pos[:1], pos[1:] + bp, jnp.zeros((SEQ_PAD - SEQ, EMBED), jnp.float32)],
        axis=0)                                                   # (SEQ_PAD, D)

    def stack(name):
        return jnp.stack([blk[name] for blk in params['blocks']])

    qkv_w = stack('qkv_w')                                        # (DEPTH, D, 3D)
    qkv_b = stack('qkv_b')                                        # (DEPTH, 1, 3D)
    ln1_w, ln1_b = stack('ln1_w'), stack('ln1_b')                 # (DEPTH, 1, D)
    ln2_w, ln2_b = stack('ln2_w'), stack('ln2_b')                 # (DEPTH, 1, D)
    fc1_w, fc1_b = stack('fc1_w'), stack('fc1_b')

    # Fold ln1 affine:  (h*g + b) @ W + bq  ==  h @ (diag(g) W) + (b @ W + bq)
    wqkv = qkv_w * jnp.swapaxes(ln1_w, -1, -2)                    # rows scaled by gamma
    bqkv = jnp.matmul(ln1_b, qkv_w) + qkv_b                       # (DEPTH, 1, 3D)
    # Fold the softmax scale into the q columns.
    wqkv = jnp.concatenate([wqkv[..., :EMBED] * scale, wqkv[..., EMBED:]], axis=-1)
    bqkv = jnp.concatenate([bqkv[..., :EMBED] * scale, bqkv[..., EMBED:]], axis=-1)

    # Fold ln2 affine into fc1.
    fc1w = fc1_w * jnp.swapaxes(ln2_w, -1, -2)
    fc1b = jnp.matmul(ln2_b, fc1_w) + fc1_b

    return dict(
        wp=wp, base=base,
        wqkv=wqkv, bqkv=bqkv,
        projw=stack('proj_w'), projb=stack('proj_b'),
        fc1w=fc1w, fc1b=fc1b,
        fc2w=stack('fc2_w'), fc2b=stack('fc2_b'),
        normw=params['norm_w'], normb=params['norm_b'],
    )


# ---------------- full forward (single Pallas call, grid over batch) ----------------
@jax.jit
def dinov2_forward(x, prepared):
    B, C, H, W = x.shape
    gh, gw = H // PATCH, W // PATCH
    P = gh * gw
    # Patch extraction is wrapper-side layout plumbing (a separate XLA op; negligible
    # at this size).  Channel-major patches matching the conv weight layout, with a
    # zero row for the cls token and zero rows for sublane padding.
    # TODO(synk): for large images feed patches via a BlockSpec index_map over the
    # patch grid instead of materializing xp in HBM.
    xp = x.reshape(B, C, gh, PATCH, gw, PATCH).transpose(0, 2, 4, 1, 3, 5)
    xp = xp.reshape(B, P, C * PATCH * PATCH)
    xp = jnp.pad(xp, ((0, 0), (1, SEQ_PAD - 1 - P), (0, 0)))
    xp = xp.reshape(B * SEQ_PAD, C * PATCH * PATCH)

    args = [prepared[name] for name in KERNEL_ARG_ORDER]
    in_specs = ([pl.BlockSpec((SEQ_PAD, PATCH_DIM), lambda b: (b, 0))]
                + [_fullspec(a.shape) for a in args])

    out = pl.pallas_call(
        fused_dinov2_kernel,
        out_shape=jax.ShapeDtypeStruct((B * SEQ_PAD, EMBED), jnp.float32),
        grid=(B,),
        in_specs=in_specs,
        out_specs=pl.BlockSpec((SEQ_PAD, EMBED), lambda b: (b, 0)),
        # batch axis is independent -> "parallel": split across the 2 TensorCores on
        # v7x; on v5e/v6e (1 TC) it is just a short serial loop.
        compiler_params=pltpu.CompilerParams(dimension_semantics=("parallel",)),
    )(xp, *args)
    # drop the per-batch pad rows; interpolate_pos_encoding is the identity here.
    # TODO(synk): bicubic pos-embed interpolation for mismatched input sizes not implemented.
    return out.reshape(B, SEQ_PAD, EMBED)[:, :SEQ, :]


# ---------------- parameter init (deterministic, synthetic) ----------------
def init_params(key):
    keys = jax.random.split(key, 6)

    def nrm(k, shape, scale=0.02):
        return jax.random.normal(k, shape, jnp.float32) * scale

    params = {
        'patch_w': nrm(keys[0], (EMBED, C_IN, PATCH, PATCH)),
        'patch_b': nrm(keys[1], (EMBED,)),
        'cls_token': nrm(keys[2], (1, 1, EMBED)),
        'pos_embed': nrm(keys[3], (1, SEQ, EMBED)),
        # randomized LN affines so the offline affine-folding is actually tested
        'norm_w': 1.0 + nrm(keys[4], (1, EMBED), 0.1),
        'norm_b': nrm(keys[5], (1, EMBED), 0.1),
        'blocks': [],
    }
    for i in range(DEPTH):
        bk = jax.random.split(jax.random.fold_in(key, 100 + i), 12)
        params['blocks'].append({
            'ln1_w': 1.0 + nrm(bk[8], (1, EMBED), 0.1),
            'ln1_b': nrm(bk[9], (1, EMBED), 0.1),
            'qkv_w': nrm(bk[0], (EMBED, 3 * EMBED)),
            'qkv_b': nrm(bk[1], (1, 3 * EMBED)),
            'proj_w': nrm(bk[2], (EMBED, EMBED)),
            'proj_b': nrm(bk[3], (1, EMBED)),
            'ln2_w': 1.0 + nrm(bk[10], (1, EMBED), 0.1),
            'ln2_b': nrm(bk[11], (1, EMBED), 0.1),
            'fc1_w': nrm(bk[4], (EMBED, MLP_HIDDEN)),
            'fc1_b': nrm(bk[5], (1, MLP_HIDDEN)),
            'fc2_w': nrm(bk[6], (MLP_HIDDEN, EMBED)),
            'fc2_b': nrm(bk[7], (1, EMBED)),
        })
    return params


# ---------------- pure-JAX reference for verification (torch-faithful layout) ----------------
def dinov2_reference(x, params):
    B, C, H, W = x.shape
    gh, gw = H // PATCH, W // PATCH
    xp = x.reshape(B, C, gh, PATCH, gw, PATCH).transpose(0, 2, 4, 1, 3, 5)
    xp = xp.reshape(B, gh * gw, C * PATCH * PATCH)
    wm = params['patch_w'].reshape(EMBED, -1).T
    tok = xp @ wm + params['patch_b'][None, None, :]
    cls = jnp.broadcast_to(params['cls_token'], (B, 1, EMBED))
    tok = jnp.concatenate([cls, tok], axis=1) + params['pos_embed']

    def ln(t, w, b):
        mu = jnp.mean(t, -1, keepdims=True)
        var = jnp.mean((t - mu) ** 2, -1, keepdims=True)
        return (t - mu) * jax.lax.rsqrt(var + EPS) * w + b

    for p in params['blocks']:
        h = ln(tok, p['ln1_w'], p['ln1_b'])
        qkv = h @ p['qkv_w'] + p['qkv_b']
        q, k, v = qkv[..., :EMBED], qkv[..., EMBED:2 * EMBED], qkv[..., 2 * EMBED:]
        q = q.reshape(B, SEQ, HEADS, HEAD_DIM).transpose(0, 2, 1, 3) * (HEAD_DIM ** -0.5)
        k = k.reshape(B, SEQ, HEADS, HEAD_DIM).transpose(0, 2, 1, 3)
        v = v.reshape(B, SEQ, HEADS, HEAD_DIM).transpose(0, 2, 1, 3)
        s = jnp.einsum('bhqd,bhkd->bhqk', q, k)
        a = jax.nn.softmax(s, axis=-1)
        o = jnp.einsum('bhqk,bhkd->bhqd', a, v).transpose(0, 2, 1, 3).reshape(B, SEQ, EMBED)
        tok = tok + (o @ p['proj_w'] + p['proj_b'])
        h2 = ln(tok, p['ln2_w'], p['ln2_b'])
        h2 = jax.nn.gelu(h2 @ p['fc1_w'] + p['fc1_b'], approximate=True)
        tok = tok + (h2 @ p['fc2_w'] + p['fc2_b'])
    return ln(tok, params['norm_w'], params['norm_b'])


if __name__ == "__main__":
    key = jax.random.PRNGKey(0)
    kx, kp = jax.random.split(key)
    x = jax.random.normal(kx, (2, C_IN, IMG, IMG), jnp.float32)   # NCHW like PyTorch
    params = init_params(kp)
    prepared = prepare_params(params)                             # one-time repack

    out = jax.block_until_ready(dinov2_forward(x, prepared))
    assert out.shape == (2, SEQ, EMBED), out.shape

    ref = dinov2_reference(x, params)
    err = float(jnp.max(jnp.abs(out - ref)))
    assert jnp.allclose(out, ref, atol=1e-3, rtol=1e-3), err

    print("KERNEL_OK")
</pallas_src>

<mosaic_0001>
module attributes {stable_mosaic.version = 11 : i64} {
  func.func @fused_dinov2_kernel(%arg0: i32, %arg1: memref<24x48xf32, #tpu.memory_space<vmem>>, %arg2: memref<48x32xf32, #tpu.memory_space<vmem>>, %arg3: memref<24x32xf32, #tpu.memory_space<vmem>>, %arg4: memref<2x32x96xf32, #tpu.memory_space<vmem>>, %arg5: memref<2x1x96xf32, #tpu.memory_space<vmem>>, %arg6: memref<2x32x32xf32, #tpu.memory_space<vmem>>, %arg7: memref<2x1x32xf32, #tpu.memory_space<vmem>>, %arg8: memref<2x32x128xf32, #tpu.memory_space<vmem>>, %arg9: memref<2x1x128xf32, #tpu.memory_space<vmem>>, %arg10: memref<2x128x32xf32, #tpu.memory_space<vmem>>, %arg11: memref<2x1x32xf32, #tpu.memory_space<vmem>>, %arg12: memref<1x32xf32, #tpu.memory_space<vmem>>, %arg13: memref<1x32xf32, #tpu.memory_space<vmem>>, %arg14: memref<24x32xf32, #tpu.memory_space<vmem>>) attributes {dimension_semantics = [#tpu.dimension_semantics<parallel>], iteration_bounds = array<i64: 2>, scalar_prefetch = 0 : i64, scratch_operands = 0 : i64, tpu.core_type = #tpu.core_type<tc>, window_params = [{transform_indices = @transform_0, window_bounds = array<i64: 24, 48>}, {pipeline_mode = #tpu.pipeline_mode<synchronous>, transform_indices = @transform_1, window_bounds = array<i64: 48, 32>}, {pipeline_mode = #tpu.pipeline_mode<synchronous>, transform_indices = @transform_2, window_bounds = array<i64: 24, 32>}, {pipeline_mode = #tpu.pipeline_mode<synchronous>, transform_indices = @transform_3, window_bounds = array<i64: 2, 32, 96>}, {pipeline_mode = #tpu.pipeline_mode<synchronous>, transform_indices = @transform_4, window_bounds = array<i64: 2, 1, 96>}, {pipeline_mode = #tpu.pipeline_mode<synchronous>, transform_indices = @transform_5, window_bounds = array<i64: 2, 32, 32>}, {pipeline_mode = #tpu.pipeline_mode<synchronous>, transform_indices = @transform_6, window_bounds = array<i64: 2, 1, 32>}, {pipeline_mode = #tpu.pipeline_mode<synchronous>, transform_indices = @transform_7, window_bounds = array<i64: 2, 32, 128>}, {pipeline_mode = #tpu.pipeline_mode<synchronous>, transform_indices = @transform_8, window_bounds = array<i64: 2, 1, 128>}, {pipeline_mode = #tpu.pipeline_mode<synchronous>, transform_indices = @transform_9, window_bounds = array<i64: 2, 128, 32>}, {pipeline_mode = #tpu.pipeline_mode<synchronous>, transform_indices = @transform_10, window_bounds = array<i64: 2, 1, 32>}, {pipeline_mode = #tpu.pipeline_mode<synchronous>, transform_indices = @transform_11, window_bounds = array<i64: 1, 32>}, {pipeline_mode = #tpu.pipeline_mode<synchronous>, transform_indices = @transform_12, window_bounds = array<i64: 1, 32>}, {transform_indices = @transform_13, window_bounds = array<i64: 24, 32>}]} {
    %c0 = arith.constant 0 : index
    %c0_0 = arith.constant 0 : index
    %0 = vector.load %arg1[%c0, %c0_0] : memref<24x48xf32, #tpu.memory_space<vmem>>, vector<24x48xf32>
    %c0_1 = arith.constant 0 : index
    %c0_2 = arith.constant 0 : index
    %1 = vector.load %arg2[%c0_1, %c0_2] : memref<48x32xf32, #tpu.memory_space<vmem>>, vector<48x32xf32>
    %cst = arith.constant dense<0.000000e+00> : vector<24x32xf32>
    %2 = tpu.matmul %0, %1, %cst {dimension_numbers = #tpu.dot_dimension_numbers<[1], [0], [0], [1], [0, 0, 1, 1], [], []>} : vector<24x48xf32>, vector<48x32xf32>, vector<24x32xf32> -> vector<24x32xf32>
    %c0_3 = arith.constant 0 : index
    %c0_4 = arith.constant 0 : index
    %3 = vector.load %arg3[%c0_3, %c0_4] : memref<24x32xf32, #tpu.memory_space<vmem>>, vector<24x32xf32>
    %4 = arith.addf %2, %3 : vector<24x32xf32>
    %5 = tpu.iota {dimensions = array<i32: 1>} : vector<24x24xi32>
    %c17_i32 = arith.constant 17 : i32
    %6 = vector.broadcast %c17_i32 : i32 to vector<24x24xi32>
    %7 = arith.cmpi slt, %5, %6 : vector<24x24xi32>
    %cst_5 = arith.constant 0.000000e+00 : f32
    %cst_6 = arith.constant -1.000000e+30 : f32
    %8 = vector.broadcast %cst_5 : f32 to vector<24x24xf32>
    %9 = vector.broadcast %cst_6 : f32 to vector<24x24xf32>
    %10 = arith.select %7, %8, %9 : vector<24x24xi1>, vector<24x24xf32>
    %cst_7 = arith.constant dense<0.000000e+00> : vector<24xf32>
    %11 = vector.multi_reduction <add>, %4, %cst_7 [1] : vector<24x32xf32> to vector<24xf32>
    %12 = vector.shape_cast %11 : vector<24xf32> to vector<24x1xf32>
    %cst_8 = arith.constant 3.200000e+01 : f32
    %13 = vector.broadcast %cst_8 : f32 to vector<24x1xf32>
    %14 = arith.divf %12, %13 : vector<24x1xf32>
    %15 = vector.broadcast %14 : vector<24x1xf32> to vector<24x32xf32>
    %16 = arith.subf %4, %15 : vector<24x32xf32>
    %17 = arith.mulf %16, %16 : vector<24x32xf32>
    %cst_9 = arith.constant dense<0.000000e+00> : vector<24xf32>
    %18 = vector.multi_reduction <add>, %17, %cst_9 [1] : vector<24x32xf32> to vector<24xf32>
    %19 = vector.shape_cast %18 : vector<24xf32> to vector<24x1xf32>
    %cst_10 = arith.constant 3.200000e+01 : f32
    %20 = vector.broadcast %cst_10 : f32 to vector<24x1xf32>
    %21 = arith.divf %19, %20 : vector<24x1xf32>
    %22 = vector.broadcast %14 : vector<24x1xf32> to vector<24x32xf32>
    %23 = arith.subf %4, %22 : vector<24x32xf32>
    %cst_11 = arith.constant 9.99999997E-7 : f32
    %24 = vector.broadcast %cst_11 : f32 to vector<24x1xf32>
    %25 = arith.addf %21, %24 : vector<24x1xf32>
    %26 = math.rsqrt %25 : vector<24x1xf32>
    %27 = vector.broadcast %26 : vector<24x1xf32> to vector<24x32xf32>
    %28 = arith.mulf %23, %27 : vector<24x32xf32>
    %c0_12 = arith.constant 0 : index
    %c0_13 = arith.constant 0 : index
    %c0_14 = arith.constant 0 : index
    %29 = vector.load %arg4[%c0_12, %c0_13, %c0_14] : memref<2x32x96xf32, #tpu.memory_space<vmem>>, vector<1x32x96xf32>
    %30 = vector.shape_cast %29 : vector<1x32x96xf32> to vector<32x96xf32>
    %cst_15 = arith.constant dense<0.000000e+00> : vector<24x96xf32>
    %31 = tpu.matmul %28, %30, %cst_15 {dimension_numbers = #tpu.dot_dimension_numbers<[1], [0], [0], [1], [0, 0, 1, 1], [], []>} : vector<24x32xf32>, vector<32x96xf32>, vector<24x96xf32> -> vector<24x96xf32>
    %c0_16 = arith.constant 0 : index
    %c0_17 = arith.constant 0 : index
    %c0_18 = arith.constant 0 : index
    %32 = vector.load %arg5[%c0_16, %c0_17, %c0_18] : memref<2x1x96xf32, #tpu.memory_space<vmem>>, vector<1x1x96xf32>
    %33 = vector.shape_cast %32 : vector<1x1x96xf32> to vector<1x96xf32>
    %34 = vector.broadcast %33 : vector<1x96xf32> to vector<24x96xf32>
    %35 = arith.addf %31, %34 : vector<24x96xf32>
    %c0_19 = arith.constant 0 : index
    %c0_20 = arith.constant 0 : index
    %c0_21 = arith.constant 0 : index
    %36 = vector.load %arg6[%c0_19, %c0_20, %c0_21] : memref<2x32x32xf32, #tpu.memory_space<vmem>>, vector<1x32x32xf32>
    %37 = vector.shape_cast %36 : vector<1x32x32xf32> to vector<32x32xf32>
    %38 = vector.extract_strided_slice %35 {offsets = [0, 0], sizes = [24, 16], strides = [1, 1]} : vector<24x96xf32> to vector<24x16xf32>
    %39 = vector.extract_strided_slice %35 {offsets = [0, 32], sizes = [24, 16], strides = [1, 1]} : vector<24x96xf32> to vector<24x16xf32>
    %40 = vector.extract_strided_slice %35 {offsets = [0, 64], sizes = [24, 16], strides = [1, 1]} : vector<24x96xf32> to vector<24x16xf32>
    %cst_22 = arith.constant dense<0.000000e+00> : vector<24x24xf32>
    %41 = tpu.matmul %38, %39, %cst_22 {dimension_numbers = #tpu.dot_dimension_numbers<[1], [1], [0], [0], [0, 0, 1, 0], [], []>} : vector<24x16xf32>, vector<24x16xf32>, vector<24x24xf32> -> vector<24x24xf32>
    %42 = arith.addf %41, %10 : vector<24x24xf32>
    %cst_23 = arith.constant dense<0xFF800000> : vector<24xf32>
    %43 = vector.multi_reduction <maximumf>, %42, %cst_23 [1] : vector<24x24xf32> to vector<24xf32>
    %44 = vector.shape_cast %43 : vector<24xf32> to vector<24x1xf32>
    %45 = vector.broadcast %44 : vector<24x1xf32> to vector<24x24xf32>
    %46 = arith.subf %42, %45 : vector<24x24xf32>
    %47 = math.exp %46 : vector<24x24xf32>
    %cst_24 = arith.constant dense<0.000000e+00> : vector<24xf32>
    %48 = vector.multi_reduction <add>, %47, %cst_24 [1] : vector<24x24xf32> to vector<24xf32>
    %49 = vector.shape_cast %48 : vector<24xf32> to vector<24x1xf32>
    %50 = tpu.reciprocal %49 {approx = true} : vector<24x1xf32> -> vector<24x1xf32>
    %51 = vector.broadcast %50 : vector<24x1xf32> to vector<24x24xf32>
    %52 = arith.mulf %47, %51 : vector<24x24xf32>
    %cst_25 = arith.constant dense<0.000000e+00> : vector<24x16xf32>
    %53 = tpu.matmul %52, %40, %cst_25 {dimension_numbers = #tpu.dot_dimension_numbers<[1], [0], [0], [1], [0, 0, 1, 1], [], []>} : vector<24x24xf32>, vector<24x16xf32>, vector<24x16xf32> -> vector<24x16xf32>
    %54 = vector.extract_strided_slice %37 {offsets = [0, 0], sizes = [16, 32], strides = [1, 1]} : vector<32x32xf32> to vector<16x32xf32>
    %cst_26 = arith.constant dense<0.000000e+00> : vector<24x32xf32>
    %55 = tpu.matmul %53, %54, %cst_26 {dimension_numbers = #tpu.dot_dimension_numbers<[1], [0], [0], [1], [0, 0, 1, 1], [], []>} : vector<24x16xf32>, vector<16x32xf32>, vector<24x32xf32> -> vector<24x32xf32>
    %56 = arith.addf %4, %55 : vector<24x32xf32>
    %57 = vector.extract_strided_slice %35 {offsets = [0, 16], sizes = [24, 16], strides = [1, 1]} : vector<24x96xf32> to vector<24x16xf32>
    %58 = vector.extract_strided_slice %35 {offsets = [0, 48], sizes = [24, 16], strides = [1, 1]} : vector<24x96xf32> to vector<24x16xf32>
    %59 = vector.extract_strided_slice %35 {offsets = [0, 80], sizes = [24, 16], strides = [1, 1]} : vector<24x96xf32> to vector<24x16xf32>
    %cst_27 = arith.constant dense<0.000000e+00> : vector<24x24xf32>
    %60 = tpu.matmul %57, %58, %cst_27 {dimension_numbers = #tpu.dot_dimension_numbers<[1], [1], [0], [0], [0, 0, 1, 0], [], []>} : vector<24x16xf32>, vector<24x16xf32>, vector<24x24xf32> -> vector<24x24xf32>
    %61 = arith.addf %60, %10 : vector<24x24xf32>
    %cst_28 = arith.constant dense<0xFF800000> : vector<24xf32>
    %62 = vector.multi_reduction <maximumf>, %61, %cst_28 [1] : vector<24x24xf32> to vector<24xf32>
    %63 = vector.shape_cast %62 : vector<24xf32> to vector<24x1xf32>
    %64 = vector.broadcast %63 : vector<24x1xf32> to vector<24x24xf32>
    %65 = arith.subf %61, %64 : vector<24x24xf32>
    %66 = math.exp %65 : vector<24x24xf32>
    %cst_29 = arith.constant dense<0.000000e+00> : vector<24xf32>
    %67 = vector.multi_reduction <add>, %66, %cst_29 [1] : vector<24x24xf32> to vector<24xf32>
    %68 = vector.shape_cast %67 : vector<24xf32> to vector<24x1xf32>
    %69 = tpu.reciprocal %68 {approx = true} : vector<24x1xf32> -> vector<24x1xf32>
    %70 = vector.broadcast %69 : vector<24x1xf32> to vector<24x24xf32>
    %71 = arith.mulf %66, %70 : vector<24x24xf32>
    %cst_30 = arith.constant dense<0.000000e+00> : vector<24x16xf32>
    %72 = tpu.matmul %71, %59, %cst_30 {dimension_numbers = #tpu.dot_dimension_numbers<[1], [0], [0], [1], [0, 0, 1, 1], [], []>} : vector<24x24xf32>, vector<24x16xf32>, vector<24x16xf32> -> vector<24x16xf32>
    %73 = vector.extract_strided_slice %37 {offsets = [16, 0], sizes = [16, 32], strides = [1, 1]} : vector<32x32xf32> to vector<16x32xf32>
    %cst_31 = arith.constant dense<0.000000e+00> : vector<24x32xf32>
    %74 = tpu.matmul %72, %73, %cst_31 {dimension_numbers = #tpu.dot_dimension_numbers<[1], [0], [0], [1], [0, 0, 1, 1], [], []>} : vector<24x16xf32>, vector<16x32xf32>, vector<24x32xf32> -> vector<24x32xf32>
    %75 = arith.addf %56, %74 : vector<24x32xf32>
    %c0_32 = arith.constant 0 : index
    %c0_33 = arith.constant 0 : index
    %c0_34 = arith.constant 0 : index
    %76 = vector.load %arg7[%c0_32, %c0_33, %c0_34] : memref<2x1x32xf32, #tpu.memory_space<vmem>>, vector<1x1x32xf32>
    %77 = vector.shape_cast %76 : vector<1x1x32xf32> to vector<1x32xf32>
    %78 = vector.broadcast %77 : vector<1x32xf32> to vector<24x32xf32>
    %79 = arith.addf %75, %78 : vector<24x32xf32>
    %cst_35 = arith.constant dense<0.000000e+00> : vector<24xf32>
    %80 = vector.multi_reduction <add>, %79, %cst_35 [1] : vector<24x32xf32> to vector<24xf32>
    %81 = vector.shape_cast %80 : vector<24xf32> to vector<24x1xf32>
    %cst_36 = arith.constant 3.200000e+01 : f32
    %82 = vector.broadcast %cst_36 : f32 to vector<24x1xf32>
    %83 = arith.divf %81, %82 : vector<24x1xf32>
    %84 = vector.broadcast %83 : vector<24x1xf32> to vector<24x32xf32>
    %85 = arith.subf %79, %84 : vector<24x32xf32>
    %86 = arith.mulf %85, %85 : vector<24x32xf32>
    %cst_37 = arith.constant dense<0.000000e+00> : vector<24xf32>
    %87 = vector.multi_reduction <add>, %86, %cst_37 [1] : vector<24x32xf32> to vector<24xf32>
    %88 = vector.shape_cast %87 : vector<24xf32> to vector<24x1xf32>
    %cst_38 = arith.constant 3.200000e+01 : f32
    %89 = vector.broadcast %cst_38 : f32 to vector<24x1xf32>
    %90 = arith.divf %88, %89 : vector<24x1xf32>
    %91 = vector.broadcast %83 : vector<24x1xf32> to vector<24x32xf32>
    %92 = arith.subf %79, %91 : vector<24x32xf32>
    %cst_39 = arith.constant 9.99999997E-7 : f32
    %93 = vector.broadcast %cst_39 : f32 to vector<24x1xf32>
    %94 = arith.addf %90, %93 : vector<24x1xf32>
    %95 = math.rsqrt %94 : vector<24x1xf32>
    %96 = vector.broadcast %95 : vector<24x1xf32> to vector<24x32xf32>
    %97 = arith.mulf %92, %96 : vector<24x32xf32>
    %c0_40 = arith.constant 0 : index
    %c0_41 = arith.constant 0 : index
    %c0_42 = arith.constant 0 : index
    %98 = vector.load %arg8[%c0_40, %c0_41, %c0_42] : memref<2x32x128xf32, #tpu.memory_space<vmem>>, vector<1x32x128xf32>
    %99 = vector.shape_cast %98 : vector<1x32x128xf32> to vector<32x128xf32>
    %cst_43 = arith.constant dense<0.000000e+00> : vector<24x128xf32>
    %100 = tpu.matmul %97, %99, %cst_43 {dimension_numbers = #tpu.dot_dimension_numbers<[1], [0], [0], [1], [0, 0, 1, 1], [], []>} : vector<24x32xf32>, vector<32x128xf32>, vector<24x128xf32> -> vector<24x128xf32>
    %c0_44 = arith.constant 0 : index
    %c0_45 = arith.constant 0 : index
    %c0_46 = arith.constant 0 : index
    %101 = vector.load %arg9[%c0_44, %c0_45, %c0_46] : memref<2x1x128xf32, #tpu.memory_space<vmem>>, vector<1x1x128xf32>
    %102 = vector.shape_cast %101 : vector<1x1x128xf32> to vector<1x128xf32>
    %103 = vector.broadcast %102 : vector<1x128xf32> to vector<24x128xf32>
    %104 = arith.addf %100, %103 : vector<24x128xf32>
    %105 = arith.mulf %104, %104 : vector<24x128xf32>
    %106 = arith.mulf %104, %105 : vector<24x128xf32>
    %cst_47 = arith.constant 4.471500e-02 : f32
    %107 = vector.broadcast %cst_47 : f32 to vector<24x128xf32>
    %108 = arith.mulf %107, %106 : vector<24x128xf32>
    %109 = arith.addf %104, %108 : vector<24x128xf32>
    %cst_48 = arith.constant 0.797884583 : f32
    %110 = vector.broadcast %cst_48 : f32 to vector<24x128xf32>
    %111 = arith.mulf %110, %109 : vector<24x128xf32>
    %112 = math.tanh %111 : vector<24x128xf32>
    %cst_49 = arith.constant 1.000000e+00 : f32
    %113 = vector.broadcast %cst_49 : f32 to vector<24x128xf32>
    %114 = arith.addf %113, %112 : vector<24x128xf32>
    %cst_50 = arith.constant 5.000000e-01 : f32
    %115 = vector.broadcast %cst_50 : f32 to vector<24x128xf32>
    %116 = arith.mulf %115, %114 : vector<24x128xf32>
    %117 = arith.mulf %104, %116 : vector<24x128xf32>
    %c0_51 = arith.constant 0 : index
    %c0_52 = arith.constant 0 : index
    %c0_53 = arith.constant 0 : index
    %118 = vector.load %arg10[%c0_51, %c0_52, %c0_53] : memref<2x128x32xf32, #tpu.memory_space<vmem>>, vector<1x128x32xf32>
    %119 = vector.shape_cast %118 : vector<1x128x32xf32> to vector<128x32xf32>
    %cst_54 = arith.constant dense<0.000000e+00> : vector<24x32xf32>
    %120 = tpu.matmul %117, %119, %cst_54 {dimension_numbers = #tpu.dot_dimension_numbers<[1], [0], [0], [1], [0, 0, 1, 1], [], []>} : vector<24x128xf32>, vector<128x32xf32>, vector<24x32xf32> -> vector<24x32xf32>
    %c0_55 = arith.constant 0 : index
    %c0_56 = arith.constant 0 : index
    %c0_57 = arith.constant 0 : index
    %121 = vector.load %arg11[%c0_55, %c0_56, %c0_57] : memref<2x1x32xf32, #tpu.memory_space<vmem>>, vector<1x1x32xf32>
    %122 = vector.shape_cast %121 : vector<1x1x32xf32> to vector<1x32xf32>
    %123 = vector.broadcast %122 : vector<1x32xf32> to vector<24x32xf32>
    %124 = arith.addf %120, %123 : vector<24x32xf32>
    %125 = arith.addf %79, %124 : vector<24x32xf32>
    %cst_58 = arith.constant dense<0.000000e+00> : vector<24xf32>
    %126 = vector.multi_reduction <add>, %125, %cst_58 [1] : vector<24x32xf32> to vector<24xf32>
    %127 = vector.shape_cast %126 : vector<24xf32> to vector<24x1xf32>
    %cst_59 = arith.constant 3.200000e+01 : f32
    %128 = vector.broadcast %cst_59 : f32 to vector<24x1xf32>
    %129 = arith.divf %127, %128 : vector<24x1xf32>
    %130 = vector.broadcast %129 : vector<24x1xf32> to vector<24x32xf32>
    %131 = arith.subf %125, %130 : vector<24x32xf32>
    %132 = arith.mulf %131, %131 : vector<24x32xf32>
    %cst_60 = arith.constant dense<0.000000e+00> : vector<24xf32>
    %133 = vector.multi_reduction <add>, %132, %cst_60 [1] : vector<24x32xf32> to vector<24xf32>
    %134 = vector.shape_cast %133 : vector<24xf32> to vector<24x1xf32>
    %cst_61 = arith.constant 3.200000e+01 : f32
    %135 = vector.broadcast %cst_61 : f32 to vector<24x1xf32>
    %136 = arith.divf %134, %135 : vector<24x1xf32>
    %137 = vector.broadcast %129 : vector<24x1xf32> to vector<24x32xf32>
    %138 = arith.subf %125, %137 : vector<24x32xf32>
    %cst_62 = arith.constant 9.99999997E-7 : f32
    %139 = vector.broadcast %cst_62 : f32 to vector<24x1xf32>
    %140 = arith.addf %136, %139 : vector<24x1xf32>
    %141 = math.rsqrt %140 : vector<24x1xf32>
    %142 = vector.broadcast %141 : vector<24x1xf32> to vector<24x32xf32>
    %143 = arith.mulf %138, %142 : vector<24x32xf32>
    %c1 = arith.constant 1 : index
    %c0_63 = arith.constant 0 : index
    %c0_64 = arith.constant 0 : index
    %144 = vector.load %arg4[%c1, %c0_63, %c0_64] : memref<2x32x96xf32, #tpu.memory_space<vmem>>, vector<1x32x96xf32>
    %145 = vector.shape_cast %144 : vector<1x32x96xf32> to vector<32x96xf32>
    %cst_65 = arith.constant dense<0.000000e+00> : vector<24x96xf32>
    %146 = tpu.matmul %143, %145, %cst_65 {dimension_numbers = #tpu.dot_dimension_numbers<[1], [0], [0], [1], [0, 0, 1, 1], [], []>} : vector<24x32xf32>, vector<32x96xf32>, vector<24x96xf32> -> vector<24x96xf32>
    %c1_66 = arith.constant 1 : index
    %c0_67 = arith.constant 0 : index
    %c0_68 = arith.constant 0 : index
    %147 = vector.load %arg5[%c1_66, %c0_67, %c0_68] : memref<2x1x96xf32, #tpu.memory_space<vmem>>, vector<1x1x96xf32>
    %148 = vector.shape_cast %147 : vector<1x1x96xf32> to vector<1x96xf32>
    %149 = vector.broadcast %148 : vector<1x96xf32> to vector<24x96xf32>
    %150 = arith.addf %146, %149 : vector<24x96xf32>
    %c1_69 = arith.constant 1 : index
    %c0_70 = arith.constant 0 : index
    %c0_71 = arith.constant 0 : index
    %151 = vector.load %arg6[%c1_69, %c0_70, %c0_71] : memref<2x32x32xf32, #tpu.memory_space<vmem>>, vector<1x32x32xf32>
    %152 = vector.shape_cast %151 : vector<1x32x32xf32> to vector<32x32xf32>
    %153 = vector.extract_strided_slice %150 {offsets = [0, 0], sizes = [24, 16], strides = [1, 1]} : vector<24x96xf32> to vector<24x16xf32>
    %154 = vector.extract_strided_slice %150 {offsets = [0, 32], sizes = [24, 16], strides = [1, 1]} : vector<24x96xf32> to vector<24x16xf32>
    %155 = vector.extract_strided_slice %150 {offsets = [0, 64], sizes = [24, 16], strides = [1, 1]} : vector<24x96xf32> to vector<24x16xf32>
    %cst_72 = arith.constant dense<0.000000e+00> : vector<24x24xf32>
    %156 = tpu.matmul %153, %154, %cst_72 {dimension_numbers = #tpu.dot_dimension_numbers<[1], [1], [0], [0], [0, 0, 1, 0], [], []>} : vector<24x16xf32>, vector<24x16xf32>, vector<24x24xf32> -> vector<24x24xf32>
    %157 = arith.addf %156, %10 : vector<24x24xf32>
    %cst_73 = arith.constant dense<0xFF800000> : vector<24xf32>
    %158 = vector.multi_reduction <maximumf>, %157, %cst_73 [1] : vector<24x24xf32> to vector<24xf32>
    %159 = vector.shape_cast %158 : vector<24xf32> to vector<24x1xf32>
    %160 = vector.broadcast %159 : vector<24x1xf32> to vector<24x24xf32>
    %161 = arith.subf %157, %160 : vector<24x24xf32>
    %162 = math.exp %161 : vector<24x24xf32>
    %cst_74 = arith.constant dense<0.000000e+00> : vector<24xf32>
    %163 = vector.multi_reduction <add>, %162, %cst_74 [1] : vector<24x24xf32> to vector<24xf32>
    %164 = vector.shape_cast %163 : vector<24xf32> to vector<24x1xf32>
    %165 = tpu.reciprocal %164 {approx = true} : vector<24x1xf32> -> vector<24x1xf32>
    %166 = vector.broadcast %165 : vector<24x1xf32> to vector<24x24xf32>
    %167 = arith.mulf %162, %166 : vector<24x24xf32>
    %cst_75 = arith.constant dense<0.000000e+00> : vector<24x16xf32>
    %168 = tpu.matmul %167, %155, %cst_75 {dimension_numbers = #tpu.dot_dimension_numbers<[1], [0], [0], [1], [0, 0, 1, 1], [], []>} : vector<24x24xf32>, vector<24x16xf32>, vector<24x16xf32> -> vector<24x16xf32>
    %169 = vector.extract_strided_slice %152 {offsets = [0, 0], sizes = [16, 32], strides = [1, 1]} : vector<32x32xf32> to vector<16x32xf32>
    %cst_76 = arith.constant dense<0.000000e+00> : vector<24x32xf32>
    %170 = tpu.matmul %168, %169, %cst_76 {dimension_numbers = #tpu.dot_dimension_numbers<[1], [0], [0], [1], [0, 0, 1, 1], [], []>} : vector<24x16xf32>, vector<16x32xf32>, vector<24x32xf32> -> vector<24x32xf32>
    %171 = arith.addf %125, %170 : vector<24x32xf32>
    %172 = vector.extract_strided_slice %150 {offsets = [0, 16], sizes = [24, 16], strides = [1, 1]} : vector<24x96xf32> to vector<24x16xf32>
    %173 = vector.extract_strided_slice %150 {offsets = [0, 48], sizes = [24, 16], strides = [1, 1]} : vector<24x96xf32> to vector<24x16xf32>
    %174 = vector.extract_strided_slice %150 {offsets = [0, 80], sizes = [24, 16], strides = [1, 1]} : vector<24x96xf32> to vector<24x16xf32>
    %cst_77 = arith.constant dense<0.000000e+00> : vector<24x24xf32>
    %175 = tpu.matmul %172, %173, %cst_77 {dimension_numbers = #tpu.dot_dimension_numbers<[1], [1], [0], [0], [0, 0, 1, 0], [], []>} : vector<24x16xf32>, vector<24x16xf32>, vector<24x24xf32> -> vector<24x24xf32>
    %176 = arith.addf %175, %10 : vector<24x24xf32>
    %cst_78 = arith.constant dense<0xFF800000> : vector<24xf32>
    %177 = vector.multi_reduction <maximumf>, %176, %cst_78 [1] : vector<24x24xf32> to vector<24xf32>
    %178 = vector.shape_cast %177 : vector<24xf32> to vector<24x1xf32>
    %179 = vector.broadcast %178 : vector<24x1xf32> to vector<24x24xf32>
    %180 = arith.subf %176, %179 : vector<24x24xf32>
    %181 = math.exp %180 : vector<24x24xf32>
    %cst_79 = arith.constant dense<0.000000e+00> : vector<24xf32>
    %182 = vector.multi_reduction <add>, %181, %cst_79 [1] : vector<24x24xf32> to vector<24xf32>
    %183 = vector.shape_cast %182 : vector<24xf32> to vector<24x1xf32>
    %184 = tpu.reciprocal %183 {approx = true} : vector<24x1xf32> -> vector<24x1xf32>
    %185 = vector.broadcast %184 : vector<24x1xf32> to vector<24x24xf32>
    %186 = arith.mulf %181, %185 : vector<24x24xf32>
    %cst_80 = arith.constant dense<0.000000e+00> : vector<24x16xf32>
    %187 = tpu.matmul %186, %174, %cst_80 {dimension_numbers = #tpu.dot_dimension_numbers<[1], [0], [0], [1], [0, 0, 1, 1], [], []>} : vector<24x24xf32>, vector<24x16xf32>, vector<24x16xf32> -> vector<24x16xf32>
    %188 = vector.extract_strided_slice %152 {offsets = [16, 0], sizes = [16, 32], strides = [1, 1]} : vector<32x32xf32> to vector<16x32xf32>
    %cst_81 = arith.constant dense<0.000000e+00> : vector<24x32xf32>
    %189 = tpu.matmul %187, %188, %cst_81 {dimension_numbers = #tpu.dot_dimension_numbers<[1], [0], [0], [1], [0, 0, 1, 1], [], []>} : vector<24x16xf32>, vector<16x32xf32>, vector<24x32xf32> -> vector<24x32xf32>
    %190 = arith.addf %171, %189 : vector<24x32xf32>
    %c1_82 = arith.constant 1 : index
    %c0_83 = arith.constant 0 : index
    %c0_84 = arith.constant 0 : index
    %191 = vector.load %arg7[%c1_82, %c0_83, %c0_84] : memref<2x1x32xf32, #tpu.memory_space<vmem>>, vector<1x1x32xf32>
    %192 = vector.shape_cast %191 : vector<1x1x32xf32> to vector<1x32xf32>
    %193 = vector.broadcast %192 : vector<1x32xf32> to vector<24x32xf32>
    %194 = arith.addf %190, %193 : vector<24x32xf32>
    %cst_85 = arith.constant dense<0.000000e+00> : vector<24xf32>
    %195 = vector.multi_reduction <add>, %194, %cst_85 [1] : vector<24x32xf32> to vector<24xf32>
    %196 = vector.shape_cast %195 : vector<24xf32> to vector<24x1xf32>
    %cst_86 = arith.constant 3.200000e+01 : f32
    %197 = vector.broadcast %cst_86 : f32 to vector<24x1xf32>
    %198 = arith.divf %196, %197 : vector<24x1xf32>
    %199 = vector.broadcast %198 : vector<24x1xf32> to vector<24x32xf32>
    %200 = arith.subf %194, %199 : vector<24x32xf32>
    %201 = arith.mulf %200, %200 : vector<24x32xf32>
    %cst_87 = arith.constant dense<0.000000e+00> : vector<24xf32>
    %202 = vector.multi_reduction <add>, %201, %cst_87 [1] : vector<24x32xf32> to vector<24xf32>
    %203 = vector.shape_cast %202 : vector<24xf32> to vector<24x1xf32>
    %cst_88 = arith.constant 3.200000e+01 : f32
    %204 = vector.broadcast %cst_88 : f32 to vector<24x1xf32>
    %205 = arith.divf %203, %204 : vector<24x1xf32>
    %206 = vector.broadcast %198 : vector<24x1xf32> to vector<24x32xf32>
    %207 = arith.subf %194, %206 : vector<24x32xf32>
    %cst_89 = arith.constant 9.99999997E-7 : f32
    %208 = vector.broadcast %cst_89 : f32 to vector<24x1xf32>
    %209 = arith.addf %205, %208 : vector<24x1xf32>
    %210 = math.rsqrt %209 : vector<24x1xf32>
    %211 = vector.broadcast %210 : vector<24x1xf32> to vector<24x32xf32>
    %212 = arith.mulf %207, %211 : vector<24x32xf32>
    %c1_90 = arith.constant 1 : index
    %c0_91 = arith.constant 0 : index
    %c0_92 = arith.constant 0 : index
    %213 = vector.load %arg8[%c1_90, %c0_91, %c0_92] : memref<2x32x128xf32, #tpu.memory_space<vmem>>, vector<1x32x128xf32>
    %214 = vector.shape_cast %213 : vector<1x32x128xf32> to vector<32x128xf32>
    %cst_93 = arith.constant dense<0.000000e+00> : vector<24x128xf32>
    %215 = tpu.matmul %212, %214, %cst_93 {dimension_numbers = #tpu.dot_dimension_numbers<[1], [0], [0], [1], [0, 0, 1, 1], [], []>} : vector<24x32xf32>, vector<32x128xf32>, vector<24x128xf32> -> vector<24x128xf32>
    %c1_94 = arith.constant 1 : index
    %c0_95 = arith.constant 0 : index
    %c0_96 = arith.constant 0 : index
    %216 = vector.load %arg9[%c1_94, %c0_95, %c0_96] : memref<2x1x128xf32, #tpu.memory_space<vmem>>, vector<1x1x128xf32>
    %217 = vector.shape_cast %216 : vector<1x1x128xf32> to vector<1x128xf32>
    %218 = vector.broadcast %217 : vector<1x128xf32> to vector<24x128xf32>
    %219 = arith.addf %215, %218 : vector<24x128xf32>
    %220 = arith.mulf %219, %219 : vector<24x128xf32>
    %221 = arith.mulf %219, %220 : vector<24x128xf32>
    %cst_97 = arith.constant 4.471500e-02 : f32
    %222 = vector.broadcast %cst_97 : f32 to vector<24x128xf32>
    %223 = arith.mulf %222, %221 : vector<24x128xf32>
    %224 = arith.addf %219, %223 : vector<24x128xf32>
    %cst_98 = arith.constant 0.797884583 : f32
    %225 = vector.broadcast %cst_98 : f32 to vector<24x128xf32>
    %226 = arith.mulf %225, %224 : vector<24x128xf32>
    %227 = math.tanh %226 : vector<24x128xf32>
    %cst_99 = arith.constant 1.000000e+00 : f32
    %228 = vector.broadcast %cst_99 : f32 to vector<24x128xf32>
    %229 = arith.addf %228, %227 : vector<24x128xf32>
    %cst_100 = arith.constant 5.000000e-01 : f32
    %230 = vector.broadcast %cst_100 : f32 to vector<24x128xf32>
    %231 = arith.mulf %230, %229 : vector<24x128xf32>
    %232 = arith.mulf %219, %231 : vector<24x128xf32>
    %c1_101 = arith.constant 1 : index
    %c0_102 = arith.constant 0 : index
    %c0_103 = arith.constant 0 : index
    %233 = vector.load %arg10[%c1_101, %c0_102, %c0_103] : memref<2x128x32xf32, #tpu.memory_space<vmem>>, vector<1x128x32xf32>
    %234 = vector.shape_cast %233 : vector<1x128x32xf32> to vector<128x32xf32>
    %cst_104 = arith.constant dense<0.000000e+00> : vector<24x32xf32>
    %235 = tpu.matmul %232, %234, %cst_104 {dimension_numbers = #tpu.dot_dimension_numbers<[1], [0], [0], [1], [0, 0, 1, 1], [], []>} : vector<24x128xf32>, vector<128x32xf32>, vector<24x32xf32> -> vector<24x32xf32>
    %c1_105 = arith.constant 1 : index
    %c0_106 = arith.constant 0 : index
    %c0_107 = arith.constant 0 : index
    %236 = vector.load %arg11[%c1_105, %c0_106, %c0_107] : memref<2x1x32xf32, #tpu.memory_space<vmem>>, vector<1x1x32xf32>
    %237 = vector.shape_cast %236 : vector<1x1x32xf32> to vector<1x32xf32>
    %238 = vector.broadcast %237 : vector<1x32xf32> to vector<24x32xf32>
    %239 = arith.addf %235, %238 : vector<24x32xf32>
    %240 = arith.addf %194, %239 : vector<24x32xf32>
    %cst_108 = arith.constant dense<0.000000e+00> : vector<24xf32>
    %241 = vector.multi_reduction <add>, %240, %cst_108 [1] : vector<24x32xf32> to vector<24xf32>
    %242 = vector.shape_cast %241 : vector<24xf32> to vector<24x1xf32>
    %cst_109 = arith.constant 3.200000e+01 : f32
    %243 = vector.broadcast %cst_109 : f32 to vector<24x1xf32>
    %244 = arith.divf %242, %243 : vector<24x1xf32>
    %245 = vector.broadcast %244 : vector<24x1xf32> to vector<24x32xf32>
    %246 = arith.subf %240, %245 : vector<24x32xf32>
    %247 = arith.mulf %246, %246 : vector<24x32xf32>
    %cst_110 = arith.constant dense<0.000000e+00> : vector<24xf32>
    %248 = vector.multi_reduction <add>, %247, %cst_110 [1] : vector<24x32xf32> to vector<24xf32>
    %249 = vector.shape_cast %248 : vector<24xf32> to vector<24x1xf32>
    %cst_111 = arith.constant 3.200000e+01 : f32
    %250 = vector.broadcast %cst_111 : f32 to vector<24x1xf32>
    %251 = arith.divf %249, %250 : vector<24x1xf32>
    %252 = vector.broadcast %244 : vector<24x1xf32> to vector<24x32xf32>
    %253 = arith.subf %240, %252 : vector<24x32xf32>
    %cst_112 = arith.constant 9.99999997E-7 : f32
    %254 = vector.broadcast %cst_112 : f32 to vector<24x1xf32>
    %255 = arith.addf %251, %254 : vector<24x1xf32>
    %256 = math.rsqrt %255 : vector<24x1xf32>
    %257 = vector.broadcast %256 : vector<24x1xf32> to vector<24x32xf32>
    %258 = arith.mulf %253, %257 : vector<24x32xf32>
    %c0_113 = arith.constant 0 : index
    %c0_114 = arith.constant 0 : index
    %259 = vector.load %arg12[%c0_113, %c0_114] : memref<1x32xf32, #tpu.memory_space<vmem>>, vector<1x32xf32>
    %260 = vector.broadcast %259 : vector<1x32xf32> to vector<24x32xf32>
    %261 = arith.mulf %258, %260 : vector<24x32xf32>
    %c0_115 = arith.constant 0 : index
    %c0_116 = arith.constant 0 : index
    %262 = vector.load %arg13[%c0_115, %c0_116] : memref<1x32xf32, #tpu.memory_space<vmem>>, vector<1x32xf32>
    %263 = vector.broadcast %262 : vector<1x32xf32> to vector<24x32xf32>
    %264 = arith.addf %261, %263 : vector<24x32xf32>
    %c0_117 = arith.constant 0 : index
    %c0_118 = arith.constant 0 : index
    %265 = vector.load %arg14[%c0_117, %c0_118] : memref<24x32xf32, #tpu.memory_space<vmem>>, vector<24x32xf32>
    tpu.vector_store %arg14[%c0_117, %c0_118], %264 {strides = array<i32>} : memref<24x32xf32, #tpu.memory_space<vmem>>, vector<24x32xf32>,
    return
  }
  func.func @transform_0(%arg0: i32) -> (i32, i32) {
    %c0_i32 = arith.constant 0 : i32
    %c0_i32_0 = arith.constant 0 : i32
    return %arg0, %c0_i32 : i32, i32
  }
  func.func @transform_1(%arg0: i32) -> (i32, i32) {
    %c0_i32 = arith.constant 0 : i32
    %c0_i32_0 = arith.constant 0 : i32
    %c0_i32_1 = arith.constant 0 : i32
    return %c0_i32, %c0_i32_0 : i32, i32
  }
  func.func @transform_2(%arg0: i32) -> (i32, i32) {
    %c0_i32 = arith.constant 0 : i32
    %c0_i32_0 = arith.constant 0 : i32
    %c0_i32_1 = arith.constant 0 : i32
    return %c0_i32, %c0_i32_0 : i32, i32
  }
  func.func @transform_3(%arg0: i32) -> (i32, i32, i32) {
    %c0_i32 = arith.constant 0 : i32
    %c0_i32_0 = arith.constant 0 : i32
    %c0_i32_1 = arith.constant 0 : i32
    %c0_i32_2 = arith.constant 0 : i32
    return %c0_i32, %c0_i32_0, %c0_i32_1 : i32, i32, i32
  }
  func.func @transform_4(%arg0: i32) -> (i32, i32, i32) {
    %c0_i32 = arith.constant 0 : i32
    %c0_i32_0 = arith.constant 0 : i32
    %c0_i32_1 = arith.constant 0 : i32
    %c0_i32_2 = arith.constant 0 : i32
    return %c0_i32, %c0_i32_0, %c0_i32_1 : i32, i32, i32
  }
  func.func @transform_5(%arg0: i32) -> (i32, i32, i32) {
    %c0_i32 = arith.constant 0 : i32
    %c0_i32_0 = arith.constant 0 : i32
    %c0_i32_1 = arith.constant 0 : i32
    %c0_i32_2 = arith.constant 0 : i32
    return %c0_i32, %c0_i32_0, %c0_i32_1 : i32, i32, i32
  }
  func.func @transform_6(%arg0: i32) -> (i32, i32, i32) {
    %c0_i32 = arith.constant 0 : i32
    %c0_i32_0 = arith.constant 0 : i32
    %c0_i32_1 = arith.constant 0 : i32
    %c0_i32_2 = arith.constant 0 : i32
    return %c0_i32, %c0_i32_0, %c0_i32_1 : i32, i32, i32
  }
  func.func @transform_7(%arg0: i32) -> (i32, i32, i32) {
    %c0_i32 = arith.constant 0 : i32
    %c0_i32_0 = arith.constant 0 : i32
    %c0_i32_1 = arith.constant 0 : i32
    %c0_i32_2 = arith.constant 0 : i32
    return %c0_i32, %c0_i32_0, %c0_i32_1 : i32, i32, i32
  }
  func.func @transform_8(%arg0: i32) -> (i32, i32, i32) {
    %c0_i32 = arith.constant 0 : i32
    %c0_i32_0 = arith.constant 0 : i32
    %c0_i32_1 = arith.constant 0 : i32
    %c0_i32_2 = arith.constant 0 : i32
    return %c0_i32, %c0_i32_0, %c0_i32_1 : i32, i32, i32
  }
  func.func @transform_9(%arg0: i32) -> (i32, i32, i32) {
    %c0_i32 = arith.constant 0 : i32
    %c0_i32_0 = arith.constant 0 : i32
    %c0_i32_1 = arith.constant 0 : i32
    %c0_i32_2 = arith.constant 0 : i32
    return %c0_i32, %c0_i32_0, %c0_i32_1 : i32, i32, i32
  }
  func.func @transform_10(%arg0: i32) -> (i32, i32, i32) {
    %c0_i32 = arith.constant 0 : i32
    %c0_i32_0 = arith.constant 0 : i32
    %c0_i32_1 = arith.constant 0 : i32
    %c0_i32_2 = arith.constant 0 : i32
    return %c0_i32, %c0_i32_0, %c0_i32_1 : i32, i32, i32
  }
  func.func @transform_11(%arg0: i32) -> (i32, i32) {
    %c0_i32 = arith.constant 0 : i32
    %c0_i32_0 = arith.constant 0 : i32
    %c0_i32_1 = arith.constant 0 : i32
    return %c0_i32, %c0_i32_0 : i32, i32
  }
  func.func @transform_12(%arg0: i32) -> (i32, i32) {
    %c0_i32 = arith.constant 0 : i32
    %c0_i32_0 = arith.constant 0 : i32
    %c0_i32_1 = arith.constant 0 : i32
    return %c0_i32, %c0_i32_0 : i32, i32
  }
  func.func @transform_13(%arg0: i32) -> (i32, i32) {
    %c0_i32 = arith.constant 0 : i32
    %c0_i32_0 = arith.constant 0 : i32
    return %arg0, %c0_i32 : i32, i32
  }
}

</mosaic_0001>

<llo_original>
// kernel: dinov2_forward.1
$region0: #{dinov2_forward.1}
  #allocation0 [shape = 'u32[]', space=smem, size = 0x4, offset = 0x4, fixed_abs, tag = 'smem constant byte address 0x4 - core index']
  #allocation1 [shape = 'u32[144,128]{1,0:T(1,128)}', space=vmem, size = 0x12000, scoped, tag = 'internal scratch']
  %s0 = inlined_call_operand.vmem [shape: f32[48,48], index: 0, kind: input, shape index: {}]
  %s1 = inlined_call_operand.vmem [shape: f32[48,32], index: 1, kind: input, shape index: {}]
  %s2 = inlined_call_operand.vmem [shape: f32[24,32], index: 2, kind: input, shape index: {}]
  %s3 = inlined_call_operand.vmem [shape: f32[2,32,96], index: 3, kind: input, shape index: {}]
  %s4 = inlined_call_operand.vmem [shape: f32[2,1,96], index: 4, kind: input, shape index: {}]
  %s5 = inlined_call_operand.vmem [shape: f32[2,32,32], index: 5, kind: input, shape index: {}]
  %s6 = inlined_call_operand.vmem [shape: f32[2,1,32], index: 6, kind: input, shape index: {}]
  %s7 = inlined_call_operand.vmem [shape: f32[2,32,128], index: 7, kind: input, shape index: {}]
  %s8 = inlined_call_operand.vmem [shape: f32[2,1,128], index: 8, kind: input, shape index: {}]
  %s9 = inlined_call_operand.vmem [shape: f32[2,128,32], index: 9, kind: input, shape index: {}]
  %s10 = inlined_call_operand.vmem [shape: f32[2,1,32], index: 10, kind: input, shape index: {}]
  %s11 = inlined_call_operand.vmem [shape: f32[1,32], index: 11, kind: input, shape index: {}]
  %s12 = inlined_call_operand.vmem [shape: f32[1,32], index: 12, kind: input, shape index: {}]
  %s13 = inlined_call_operand.vmem [shape: f32[48,32], index: 13, kind: output, shape index: {}]
  %s14 = sld [smem:[#allocation0]]
  $region85: #{dinov2_forward.1} parent=0
    _
  %s16 = ssub.s32 1, %s14
  %s17 = scalar_select 0, %s16, %s14
  loop: start=0, step=1, limit=4
  $region2: #{dinov2_forward.1} parent=0 // loop_pre_header
    _
  $region3: #{dinov2_forward.1} parent=0 // loop_header
    %s19 = sphi 0, %s23
    %p20 = scmp.ge.s32.totalorder %s19, 4
    %s29 = sphi 0, %s31
    %s32 = sphi 0, %s29
    %s33 = sphi 0, %s32
    %s49 = sphi 0, %s33
    %s53 = sphi 0, %s53
    %s55 = sphi 0, %s53
    %s56 = sphi 0, %s55
    %s70 = sphi 0, %s56
    %s74 = sphi 0, %s74
    %s76 = sphi 0, %s74
    %s77 = sphi 0, %s76
    %s91 = sphi 0, %s77
    %s95 = sphi 0, %s95
    %s97 = sphi 0, %s95
    %s98 = sphi 0, %s97
    %s112 = sphi 0, %s98
    %s116 = sphi 0, %s116
    %s118 = sphi 0, %s116
    %s119 = sphi 0, %s118
    %s133 = sphi 0, %s119
    %s137 = sphi 0, %s137
    %s139 = sphi 0, %s137
    %s140 = sphi 0, %s139
    %s154 = sphi 0, %s140
    %s158 = sphi 0, %s158
    %s160 = sphi 0, %s158
    %s161 = sphi 0, %s160
    %s175 = sphi 0, %s161
    %s179 = sphi 0, %s179
    %s181 = sphi 0, %s179
    %s182 = sphi 0, %s181
    %s196 = sphi 0, %s182
    %s200 = sphi 0, %s200
    %s202 = sphi 0, %s200
    %s203 = sphi 0, %s202
    %s217 = sphi 0, %s203
    %s221 = sphi 0, %s221
    %s223 = sphi 0, %s221
    %s224 = sphi 0, %s223
    %s238 = sphi 0, %s224
    %s242 = sphi 0, %s242
    %s244 = sphi 0, %s242
    %s245 = sphi 0, %s244
    %s259 = sphi 0, %s245
    %s263 = sphi 0, %s263
    %s265 = sphi 0, %s263
    %s266 = sphi 0, %s265
    %s280 = sphi 0, %s266
    %s284 = sphi 0, %s284
    %s286 = sphi 0, %s284
    %s287 = sphi 0, %s286
    %s301 = sphi 0, %s287
    %s307 = sphi 0, %s309
    %s310 = sphi 0, %s307
    %s311 = sphi 0, %s310
    %s327 = sphi 0, %s311
  $region4: #{dinov2_forward.1} parent=0 // loop_header_branch
    %22 = sbr.rel (%p20) target = $region8
  $region5: #{dinov2_forward.1} parent=0 // loop_body
    %s24 = ssub.s32 %s19, 1
    %s25 = ssub.s32 %s19, 2
    %s26 = sadd.s32 %s19, 1
    %s27 = ssub.s32 %s19, %s26
    %p28 = scmp.eq.s32.totalorder %s27, 0
    %s30 = sadd.s32 %s29, 1
    %s31 = scalar_select %p28, %s29, %s30
    %p34 = pneg %p28
    %p35 = scmp.eq.s32.totalorder %s19, 1
    %p36 = por %p34, %p35
    %p37 = scmp.ne.s32.totalorder %s29, %s32
    %p38 = scmp.eq.s32.totalorder %s19, 0
    %p39 = por %p37, %p38
    %p40 = scmp.ne.s32.totalorder %s29, %s32
    %p41 = scmp.eq.s32.totalorder %s24, 1
    %p42 = por %p40, %p41
    %p43 = scmp.ne.s32.totalorder %s32, %s33
    %p44 = scmp.eq.s32.totalorder %s24, 0
    %p45 = por %p43, %p44
    %p46 = scmp.ne.s32.totalorder %s32, %s33
    %p47 = scmp.eq.s32.totalorder %s25, 1
    %p48 = por %p46, %p47
    %p50 = scmp.ne.s32.totalorder %s33, %s49
    %p51 = scmp.eq.s32.totalorder %s25, 0
    %p52 = por %p50, %p51
    %s54 = sadd.s32 %s53, 1
    %p57 = scmp.eq.s32.totalorder %s19, 1
    %p58 = scmp.ne.s32.totalorder %s53, %s55
    %p59 = scmp.eq.s32.totalorder %s19, 0
    %p60 = por %p58, %p59
    %p61 = scmp.ne.s32.totalorder %s53, %s55
    %p62 = scmp.eq.s32.totalorder %s24, 1
    %p63 = por %p61, %p62
    %p64 = scmp.ne.s32.totalorder %s55, %s56
    %p65 = scmp.eq.s32.totalorder %s24, 0
    %p66 = por %p64, %p65
    %p67 = scmp.ne.s32.totalorder %s55, %s56
    %p68 = scmp.eq.s32.totalorder %s25, 1
    %p69 = por %p67, %p68
    %p71 = scmp.ne.s32.totalorder %s56, %s70
    %p72 = scmp.eq.s32.totalorder %s25, 0
    %p73 = por %p71, %p72
    %s75 = sadd.s32 %s74, 1
    %p78 = scmp.eq.s32.totalorder %s19, 1
    %p79 = scmp.ne.s32.totalorder %s74, %s76
    %p80 = scmp.eq.s32.totalorder %s19, 0
    %p81 = por %p79, %p80
    %p82 = scmp.ne.s32.totalorder %s74, %s76
    %p83 = scmp.eq.s32.totalorder %s24, 1
    %p84 = por %p82, %p83
    %p85 = scmp.ne.s32.totalorder %s76, %s77
    %p86 = scmp.eq.s32.totalorder %s24, 0
    %p87 = por %p85, %p86
    %p88 = scmp.ne.s32.totalorder %s76, %s77
    %p89 = scmp.eq.s32.totalorder %s25, 1
    %p90 = por %p88, %p89
    %p92 = scmp.ne.s32.totalorder %s77, %s91
    %p93 = scmp.eq.s32.totalorder %s25, 0
    %p94 = por %p92, %p93
    %s96 = sadd.s32 %s95, 1
    %p99 = scmp.eq.s32.totalorder %s19, 1
    %p100 = scmp.ne.s32.totalorder %s95, %s97
    %p101 = scmp.eq.s32.totalorder %s19, 0
    %p102 = por %p100, %p101
    %p103 = scmp.ne.s32.totalorder %s95, %s97
    %p104 = scmp.eq.s32.totalorder %s24, 1
    %p105 = por %p103, %p104
    %p106 = scmp.ne.s32.totalorder %s97, %s98
    %p107 = scmp.eq.s32.totalorder %s24, 0
    %p108 = por %p106, %p107
    %p109 = scmp.ne.s32.totalorder %s97, %s98
    %p110 = scmp.eq.s32.totalorder %s25, 1
    %p111 = por %p109, %p110
    %p113 = scmp.ne.s32.totalorder %s98, %s112
    %p114 = scmp.eq.s32.totalorder %s25, 0
    %p115 = por %p113, %p114
    %s117 = sadd.s32 %s116, 1
    %p120 = scmp.eq.s32.totalorder %s19, 1
    %p121 = scmp.ne.s32.totalorder %s116, %s118
    %p122 = scmp.eq.s32.totalorder %s19, 0
    %p123 = por %p121, %p122
    %p124 = scmp.ne.s32.totalorder %s116, %s118
    %p125 = scmp.eq.s32.totalorder %s24, 1
    %p126 = por %p124, %p125
    %p127 = scmp.ne.s32.totalorder %s118, %s119
    %p128 = scmp.eq.s32.totalorder %s24, 0
    %p129 = por %p127, %p128
    %p130 = scmp.ne.s32.totalorder %s118, %s119
    %p131 = scmp.eq.s32.totalorder %s25, 1
    %p132 = por %p130, %p131
    %p134 = scmp.ne.s32.totalorder %s119, %s133
    %p135 = scmp.eq.s32.totalorder %s25, 0
    %p136 = por %p134, %p135
    %s138 = sadd.s32 %s137, 1
    %p141 = scmp.eq.s32.totalorder %s19, 1
    %p142 = scmp.ne.s32.totalorder %s137, %s139
    %p143 = scmp.eq.s32.totalorder %s19, 0
    %p144 = por %p142, %p143
    %p145 = scmp.ne.s32.totalorder %s137, %s139
    %p146 = scmp.eq.s32.totalorder %s24, 1
    %p147 = por %p145, %p146
    %p148 = scmp.ne.s32.totalorder %s139, %s140
    %p149 = scmp.eq.s32.totalorder %s24, 0
    %p150 = por %p148, %p149
    %p151 = scmp.ne.s32.totalorder %s139, %s140
    %p152 = scmp.eq.s32.totalorder %s25, 1
    %p153 = por %p151, %p152
    %p155 = scmp.ne.s32.totalorder %s140, %s154
    %p156 = scmp.eq.s32.totalorder %s25, 0
    %p157 = por %p155, %p156
    %s159 = sadd.s32 %s158, 1
    %p162 = scmp.eq.s32.totalorder %s19, 1
    %p163 = scmp.ne.s32.totalorder %s158, %s160
    %p164 = scmp.eq.s32.totalorder %s19, 0
    %p165 = por %p163, %p164
    %p166 = scmp.ne.s32.totalorder %s158, %s160
    %p167 = scmp.eq.s32.totalorder %s24, 1
    %p168 = por %p166, %p167
    %p169 = scmp.ne.s32.totalorder %s160, %s161
    %p170 = scmp.eq.s32.totalorder %s24, 0
    %p171 = por %p169, %p170
    %p172 = scmp.ne.s32.totalorder %s160, %s161
    %p173 = scmp.eq.s32.totalorder %s25, 1
    %p174 = por %p172, %p173
    %p176 = scmp.ne.s32.totalorder %s161, %s175
    %p177 = scmp.eq.s32.totalorder %s25, 0
    %p178 = por %p176, %p177
    %s180 = sadd.s32 %s179, 1
    %p183 = scmp.eq.s32.totalorder %s19, 1
    %p184 = scmp.ne.s32.totalorder %s179, %s181
    %p185 = scmp.eq.s32.totalorder %s19, 0
    %p186 = por %p184, %p185
    %p187 = scmp.ne.s32.totalorder %s179, %s181
    %p188 = scmp.eq.s32.totalorder %s24, 1
    %p189 = por %p187, %p188
    %p190 = scmp.ne.s32.totalorder %s181, %s182
    %p191 = scmp.eq.s32.totalorder %s24, 0
    %p192 = por %p190, %p191
    %p193 = scmp.ne.s32.totalorder %s181, %s182
    %p194 = scmp.eq.s32.totalorder %s25, 1
    %p195 = por %p193, %p194
    %p197 = scmp.ne.s32.totalorder %s182, %s196
    %p198 = scmp.eq.s32.totalorder %s25, 0
    %p199 = por %p197, %p198
    %s201 = sadd.s32 %s200, 1
    %p204 = scmp.eq.s32.totalorder %s19, 1
    %p205 = scmp.ne.s32.totalorder %s200, %s202
    %p206 = scmp.eq.s32.totalorder %s19, 0
    %p207 = por %p205, %p206
    %p208 = scmp.ne.s32.totalorder %s200, %s202
    %p209 = scmp.eq.s32.totalorder %s24, 1
    %p210 = por %p208, %p209
    %p211 = scmp.ne.s32.totalorder %s202, %s203
    %p212 = scmp.eq.s32.totalorder %s24, 0
    %p213 = por %p211, %p212
    %p214 = scmp.ne.s32.totalorder %s202, %s203
    %p215 = scmp.eq.s32.totalorder %s25, 1
    %p216 = por %p214, %p215
    %p218 = scmp.ne.s32.totalorder %s203, %s217
    %p219 = scmp.eq.s32.totalorder %s25, 0
    %p220 = por %p218, %p219
    %s222 = sadd.s32 %s221, 1
    %p225 = scmp.eq.s32.totalorder %s19, 1
    %p226 = scmp.ne.s32.totalorder %s221, %s223
    %p227 = scmp.eq.s32.totalorder %s19, 0
    %p228 = por %p226, %p227
    %p229 = scmp.ne.s32.totalorder %s221, %s223
    %p230 = scmp.eq.s32.totalorder %s24, 1
    %p231 = por %p229, %p230
    %p232 = scmp.ne.s32.totalorder %s223, %s224
    %p233 = scmp.eq.s32.totalorder %s24, 0
    %p234 = por %p232, %p233
    %p235 = scmp.ne.s32.totalorder %s223, %s224
    %p236 = scmp.eq.s32.totalorder %s25, 1
    %p237 = por %p235, %p236
    %p239 = scmp.ne.s32.totalorder %s224, %s238
    %p240 = scmp.eq.s32.totalorder %s25, 0
    %p241 = por %p239, %p240
    %s243 = sadd.s32 %s242, 1
    %p246 = scmp.eq.s32.totalorder %s19, 1
    %p247 = scmp.ne.s32.totalorder %s242, %s244
    %p248 = scmp.eq.s32.totalorder %s19, 0
    %p249 = por %p247, %p248
    %p250 = scmp.ne.s32.totalorder %s242, %s244
    %p251 = scmp.eq.s32.totalorder %s24, 1
    %p252 = por %p250, %p251
    %p253 = scmp.ne.s32.totalorder %s244, %s245
    %p254 = scmp.eq.s32.totalorder %s24, 0
    %p255 = por %p253, %p254
    %p256 = scmp.ne.s32.totalorder %s244, %s245
    %p257 = scmp.eq.s32.totalorder %s25, 1
    %p258 = por %p256, %p257
    %p260 = scmp.ne.s32.totalorder %s245, %s259
    %p261 = scmp.eq.s32.totalorder %s25, 0
    %p262 = por %p260, %p261
    %s264 = sadd.s32 %s263, 1
    %p267 = scmp.eq.s32.totalorder %s19, 1
    %p268 = scmp.ne.s32.totalorder %s263, %s265
    %p269 = scmp.eq.s32.totalorder %s19, 0
    %p270 = por %p268, %p269
    %p271 = scmp.ne.s32.totalorder %s263, %s265
    %p272 = scmp.eq.s32.totalorder %s24, 1
    %p273 = por %p271, %p272
    %p274 = scmp.ne.s32.totalorder %s265, %s266
    %p275 = scmp.eq.s32.totalorder %s24, 0
    %p276 = por %p274, %p275
    %p277 = scmp.ne.s32.totalorder %s265, %s266
    %p278 = scmp.eq.s32.totalorder %s25, 1
    %p279 = por %p277, %p278
    %p281 = scmp.ne.s32.totalorder %s266, %s280
    %p282 = scmp.eq.s32.totalorder %s25, 0
    %p283 = por %p281, %p282
    %s285 = sadd.s32 %s284, 1
    %p288 = scmp.eq.s32.totalorder %s19, 1
    %p289 = scmp.ne.s32.totalorder %s284, %s286
    %p290 = scmp.eq.s32.totalorder %s19, 0
    %p291 = por %p289, %p290
    %p292 = scmp.ne.s32.totalorder %s284, %s286
    %p293 = scmp.eq.s32.totalorder %s24, 1
    %p294 = por %p292, %p293
    %p295 = scmp.ne.s32.totalorder %s286, %s287
    %p296 = scmp.eq.s32.totalorder %s24, 0
    %p297 = por %p295, %p296
    %p298 = scmp.ne.s32.totalorder %s286, %s287
    %p299 = scmp.eq.s32.totalorder %s25, 1
    %p300 = por %p298, %p299
    %p302 = scmp.ne.s32.totalorder %s287, %s301
    %p303 = scmp.eq.s32.totalorder %s25, 0
    %p304 = por %p302, %p303
    %s305 = ssub.s32 %s19, %s26
    %p306 = scmp.eq.s32.totalorder %s305, 0
    %s308 = sadd.s32 %s307, 1
    %s309 = scalar_select %p306, %s307, %s308
    %p312 = pneg %p306
    %p313 = scmp.eq.s32.totalorder %s19, 1
    %p314 = por %p312, %p313
    %p315 = scmp.ne.s32.totalorder %s307, %s310
    %p316 = scmp.eq.s32.totalorder %s19, 0
    %p317 = por %p315, %p316
    %p318 = scmp.ne.s32.totalorder %s307, %s310
    %p319 = scmp.eq.s32.totalorder %s24, 1
    %p320 = por %p318, %p319
    %p321 = scmp.ne.s32.totalorder %s310, %s311
    %p322 = scmp.eq.s32.totalorder %s24, 0
    %p323 = por %p321, %p322
    %p324 = scmp.ne.s32.totalorder %s310, %s311
    %p325 = scmp.eq.s32.totalorder %s25, 1
    %p326 = por %p324, %p325
    %p328 = scmp.ne.s32.totalorder %s311, %s327
    %p329 = scmp.eq.s32.totalorder %s25, 0
    %p330 = por %p328, %p329
    %p331 = scmp.le.s32.totalorder 1, %s19
    %p332 = scmp.lt.s32.totalorder %s19, 3
    %p333 = pnand %p331, %p332
    %p334 = pneg %p333
    // Predicated region
    $region9: #{dinov2_forward.1} parent=5 // pred_check
      _
    $region10: #{dinov2_forward.1} parent=5 // pred_check_branch
      %336 = sbr.rel (%p333) target = $region12
    $region11: #{dinov2_forward.1} parent=5 // pred_region
      %s337 = ssub.s32 %s19, 1
      // Predicated region
      $region13: #{dinov2_forward.1} parent=11 // pred_check
        %p338 = pneg %p66
      $region14: #{dinov2_forward.1} parent=11 // pred_check_branch
        %340 = sbr.rel (%p338) target = $region16
      $region15: #{dinov2_forward.1} parent=11 // pred_region
        _
      $region16: #{dinov2_forward.1} parent=11 // pred_fallthru
        _
      // Predicated region
      $region17: #{dinov2_forward.1} parent=11 // pred_check
        %p341 = pneg %p87
      $region18: #{dinov2_forward.1} parent=11 // pred_check_branch
        %343 = sbr.rel (%p341) target = $region20
      $region19: #{dinov2_forward.1} parent=11 // pred_region
        _
      $region20: #{dinov2_forward.1} parent=11 // pred_fallthru
        _
      // Predicated region
      $region21: #{dinov2_forward.1} parent=11 // pred_check
        %p344 = pneg %p108
      $region22: #{dinov2_forward.1} parent=11 // pred_check_branch
        %346 = sbr.rel (%p344) target = $region24
      $region23: #{dinov2_forward.1} parent=11 // pred_region
        _
      $region24: #{dinov2_forward.1} parent=11 // pred_fallthru
        _
      // Predicated region
      $region25: #{dinov2_forward.1} parent=11 // pred_check
        %p347 = pneg %p129
      $region26: #{dinov2_forward.1} parent=11 // pred_check_branch
        %349 = sbr.rel (%p347) target = $region28
      $region27: #{dinov2_forward.1} parent=11 // pred_region
        _
      $region28: #{dinov2_forward.1} parent=11 // pred_fallthru
        _
      // Predicated region
      $region29: #{dinov2_forward.1} parent=11 // pred_check
        %p350 = pneg %p150
      $region30: #{dinov2_forward.1} parent=11 // pred_check_branch
        %352 = sbr.rel (%p350) target = $region32
      $region31: #{dinov2_forward.1} parent=11 // pred_region
        _
      $region32: #{dinov2_forward.1} parent=11 // pred_fallthru
        _
      // Predicated region
      $region33: #{dinov2_forward.1} parent=11 // pred_check
        %p353 = pneg %p171
      $region34: #{dinov2_forward.1} parent=11 // pred_check_branch
        %355 = sbr.rel (%p353) target = $region36
      $region35: #{dinov2_forward.1} parent=11 // pred_region
        _
      $region36: #{dinov2_forward.1} parent=11 // pred_fallthru
        _
      // Predicated region
      $region37: #{dinov2_forward.1} parent=11 // pred_check
        %p356 = pneg %p192
      $region38: #{dinov2_forward.1} parent=11 // pred_check_branch
        %358 = sbr.rel (%p356) target = $region40
      $region39: #{dinov2_forward.1} parent=11 // pred_region
        _
      $region40: #{dinov2_forward.1} parent=11 // pred_fallthru
        _
      // Predicated region
      $region41: #{dinov2_forward.1} parent=11 // pred_check
        %p359 = pneg %p213
      $region42: #{dinov2_forward.1} parent=11 // pred_check_branch
        %361 = sbr.rel (%p359) target = $region44
      $region43: #{dinov2_forward.1} parent=11 // pred_region
        _
      $region44: #{dinov2_forward.1} parent=11 // pred_fallthru
        _
      // Predicated region
      $region45: #{dinov2_forward.1} parent=11 // pred_check
        %p362 = pneg %p234
      $region46: #{dinov2_forward.1} parent=11 // pred_check_branch
        %364 = sbr.rel (%p362) target = $region48
      $region47: #{dinov2_forward.1} parent=11 // pred_region
        _
      $region48: #{dinov2_forward.1} parent=11 // pred_fallthru
        _
      // Predicated region
      $region49: #{dinov2_forward.1} parent=11 // pred_check
        %p365 = pneg %p255
      $region50: #{dinov2_forward.1} parent=11 // pred_check_branch
        %367 = sbr.rel (%p365) target = $region52
      $region51: #{dinov2_forward.1} parent=11 // pred_region
        _
      $region52: #{dinov2_forward.1} parent=11 // pred_fallthru
        _
      // Predicated region
      $region53: #{dinov2_forward.1} parent=11 // pred_check
        %p368 = pneg %p276
      $region54: #{dinov2_forward.1} parent=11 // pred_check_branch
        %370 = sbr.rel (%p368) target = $region56
      $region55: #{dinov2_forward.1} parent=11 // pred_region
        _
      $region56: #{dinov2_forward.1} parent=11 // pred_fallthru
        _
      // Predicated region
      $region57: #{dinov2_forward.1} parent=11 // pred_check
        %p371 = pneg %p297
      $region58: #{dinov2_forward.1} parent=11 // pred_check_branch
        %373 = sbr.rel (%p371) target = $region60
      $region59: #{dinov2_forward.1} parent=11 // pred_region
        _
      $region60: #{dinov2_forward.1} parent=11 // pred_fallthru
        _
    $region12: #{dinov2_forward.1} parent=5 // pred_fallthru
      _
    %p374 = scmp.lt.s32.totalorder %s19, 2
    // Predicated region
    $region61: #{dinov2_forward.1} parent=5 // pred_check
      %p375 = pneg %p374
    $region62: #{dinov2_forward.1} parent=5 // pred_check_branch
      %377 = sbr.rel (%p375) target = $region64
    $region63: #{dinov2_forward.1} parent=5 // pred_region
      // Predicated region
      $region65: #{dinov2_forward.1} parent=63 // pred_check
        %p378 = pneg %p39
      $region66: #{dinov2_forward.1} parent=63 // pred_check_branch
        %380 = sbr.rel (%p378) target = $region68
      $region67: #{dinov2_forward.1} parent=63 // pred_region
        %s381 = smul.u32 3, %s19
        %p382 = scmp.lt.s32.totalorder %s381, 5
        %s383 = scalar_select %p382, %s381, 5
        %s384 = smul.addr %s383, 8
        %s385 = scalar_lea.vmem %s0, %s384
        %s386 = smul.u32 3, %s19
      $region68: #{dinov2_forward.1} parent=63 // pred_fallthru
        _
    $region64: #{dinov2_forward.1} parent=5 // pred_fallthru
      _
    %p387 = scmp.le.s32.totalorder 1, %s19
    %p388 = scmp.lt.s32.totalorder %s19, 3
    %p389 = pnand %p387, %p388
    %p390 = pneg %p389
    // Predicated region
    $region69: #{dinov2_forward.1} parent=5 // pred_check
      _
    $region70: #{dinov2_forward.1} parent=5 // pred_check_branch
      %392 = sbr.rel (%p389) target = $region72
    $region71: #{dinov2_forward.1} parent=5 // pred_region
      %s393 = ssub.s32 %s19, 1
      %s394 = smul.u32 3, %s24
      %p395 = scmp.lt.s32.totalorder %s394, 5
      %s396 = scalar_select %p395, %s394, 5
      %s397 = smul.addr %s396, 8
      %s398 = scalar_lea.vmem %s0, %s397
      %p399 = pneg %p45
      %p400 = pneg %p42
      %p401 = pneg %p66
      %p402 = pneg %p63
      %p403 = pneg %p87
      %p404 = pneg %p84
      %p405 = pneg %p108
      %p406 = pneg %p105
      %p407 = pneg %p129
      %p408 = pneg %p126
      %p409 = pneg %p150
      %p410 = pneg %p147
      %p411 = pneg %p171
      %p412 = pneg %p168
      %p413 = pneg %p192
      %p414 = pneg %p189
      %p415 = pneg %p213
      %p416 = pneg %p210
      %p417 = pneg %p234
      %p418 = pneg %p231
      %p419 = pneg %p255
      %p420 = pneg %p252
      %p421 = pneg %p276
      %p422 = pneg %p273
      %p423 = pneg %p297
      %p424 = pneg %p294
      %p425 = pneg %p323
      %p426 = pneg %p320
      %s427 = smul.u32 3, %s24
      %p428 = scmp.lt.s32.totalorder %s427, 5
      %s429 = scalar_select %p428, %s427, 5
      %s430 = smul.addr %s429, 8
      %s431 = scalar_lea.vmem %s13, %s430
      %s432 = smul.u32 3, %s24
      %p433 = scmp.lt.s32.totalorder %s432, 5
      %s434 = scalar_select %p433, %s432, 5
      %s435 = smul.addr %s434, 8
      %s436 = scalar_lea.vmem %s0, %s435
      %s437 = smul.u32 3, %s24
      %s438 = smul.u32 3, %s24
      %p439 = scmp.lt.s32.totalorder %s438, 5
      %s440 = scalar_select %p439, %s438, 5
      %s441 = smul.addr %s440, 8
      %s442 = scalar_lea.vmem %s13, %s441
      %s443 = smul.u32 3, %s24
      %v444 = vld [vmem:[%s436] sm:$0xff]
      %v445 = vld [vmem:[%s436 + $0x8] sm:$0xff]
      %v446 = vld [vmem:[%s436 + $0x10] sm:$0xff]
      %v447 = vld [vmem:[%s1] sm:$0xff]
      %v448 = vld [vmem:[%s1 + $0x8] sm:$0xff]
      %v449 = vld [vmem:[%s1 + $0x10] sm:$0xff]
      %v450 = vld [vmem:[%s1 + $0x18] sm:$0xff]
      %v451 = vld [vmem:[%s1 + $0x20] sm:$0xff]
      %v452 = vld [vmem:[%s1 + $0x28] sm:$0xff]
      %v453 = vld [vmem:[%s2] sm:$0xff]
      %v454 = vld [vmem:[%s2 + $0x8] sm:$0xff]
      %v455 = vld [vmem:[%s2 + $0x10] sm:$0xff]
      %vm456 = vcmask 392192
      %v458 = vsel %vm456, %v444, 0
      %v461 = vsel %vm456, %v445, 0
      %v464 = vsel %vm456, %v446, 0
      %466 = vmatprep.subr.mxu0 0.0
      %467 = vmatpush1.msra.mxu0 0.0
      %468 = vmatprep.subr.mxu0 0.0
      %469 = vmatpush1.msra.mxu0 0.0
      %470 = vmatprep.subr.mxu0 0.0
      %471 = vmatpush1.msra.mxu0 0.0
      %472 = vmatprep.subr.mxu0 0.0
      %473 = vmatpush1.msra.mxu0 0.0
      %474 = vmatprep.subr.mxu0 0.0
      %475 = vmatpush1.msra.mxu0 0.0
      %476 = vmatprep.subr.mxu0 0.0
      %477 = vmatpush1.msra.mxu0 0.0
      %478 = vmatprep.subr.mxu0 0.0
      %479 = vmatpush1.msra.mxu0 0.0
      %480 = vmatprep.subr.mxu0 0.0
      %481 = vmatpush1.msra.mxu0 0.0
      %482 = vmatprep.subr.mxu0 0.0
      %483 = vmatpush1.msra.mxu0 0.0
      %484 = vmatprep.subr.mxu0 0.0
      %485 = vmatpush1.msra.mxu0 0.0
      %486 = vmatprep.subr.mxu0 0.0
      %487 = vmatpush1.msra.mxu0 %v452
      %488 = vmatprep.subr.mxu0 0.0
      %489 = vmatpush1.msra.mxu0 %v451
      %490 = vmatprep.subr.mxu0 0.0
      %491 = vmatpush1.msra.mxu0 %v450
      %492 = vmatprep.subr.mxu0 0.0
      %493 = vmatpush1.msra.mxu0 %v449
      %494 = vmatprep.subr.mxu0 0.0
      %495 = vmatpush1.msra.mxu0 %v448
      %496 = vmatprep.subr.mxu0 0.0
      %497 = vmatpush1.msra.mxu0 %v447
      %498 = vmatprep.subr.mxu0 0.0
      %499 = vmatpush2.msra.mxu0 0.0
      %500 = vmatprep.subr.mxu0 0.0
      %501 = vmatpush2.msra.mxu0 0.0
      %502 = vmatprep.subr.mxu0 0.0
      %503 = vmatpush2.msra.mxu0 0.0
      %504 = vmatprep.subr.mxu0 0.0
      %505 = vmatpush2.msra.mxu0 0.0
      %506 = vmatprep.subr.mxu0 0.0
      %507 = vmatpush2.msra.mxu0 0.0
      %508 = vmatprep.subr.mxu0 0.0
      %509 = vmatpush2.msra.mxu0 0.0
      %510 = vmatprep.subr.mxu0 0.0
      %511 = vmatpush2.msra.mxu0 0.0
      %512 = vmatprep.subr.mxu0 0.0
      %513 = vmatpush2.msra.mxu0 0.0
      %514 = vmatprep.subr.mxu0 0.0
      %515 = vmatpush2.msra.mxu0 0.0
      %516 = vmatprep.subr.mxu0 0.0
      %517 = vmatpush2.msra.mxu0 0.0
      %518 = vmatprep.subr.mxu0 0.0
      %519 = vmatpush2.msra.mxu0 0.0
      %520 = vmatprep.subr.mxu0 0.0
      %521 = vmatpush2.msra.mxu0 0.0
      %522 = vmatprep.subr.mxu0 0.0
      %523 = vmatpush2.msra.mxu0 0.0
      %524 = vmatprep.subr.mxu0 0.0
      %525 = vmatpush2.msra.mxu0 0.0
      %526 = vmatprep.subr.mxu0 0.0
      %527 = vmatpush2.msra.mxu0 0.0
      %528 = vmatprep.subr.mxu0 0.0
      %529 = vmatpush2.msra.mxu0 0.0
      %530 = vmatprep.mubr.f32.mxu0 0.0
      %531 = vmatmul.mubr.f32.gmra.mxu0 %v458
      %v532 = vpop.f32.mrf.mxu0
      %v533 = vadd.f32 %v453, %v532
      %v534 = vpop.f32.mrf.mxu0
      %535 = vmatprep.mubr.f32.mxu0 0.0
      %536 = vmatmul.mubr.f32.gmra.mxu0 %v461
      %v537 = vpop.f32.mrf.mxu0
      %v538 = vadd.f32 %v454, %v537
      %v539 = vpop.f32.mrf.mxu0
      %540 = vmatprep.mubr.f32.mxu0 0.0
      %541 = vmatmul.mubr.f32.gmra.mxu0 %v464
      %v542 = vpop.f32.mrf.mxu0
      %v543 = vadd.f32 %v455, %v542
      %v544 = vpop.f32.mrf.mxu0
      %545 = vdwg.mxu0
      %v546 = vlaneseq
      %v547 = vand.u32 %v546, 127
      %vm548 = vcmp.lt.s32.totalorder %v547, 17
      %v549 = vsel %vm548, 0.0, -1e+30
      %vm550 = vcmask 261120
      %v551 = vsel %vm550, %v533, 0.0
      %552 = vadd.xlane.f32.xlu0 %v551
      %v553 = vpop.xlane.xlu0 %552
      %v554 = vsel %vm550, %v538, 0.0
      %555 = vadd.xlane.f32.xlu0 %v554
      %v556 = vpop.xlane.xlu0 %555
      %v557 = vsel %vm550, %v543, 0.0
      %558 = vadd.xlane.f32.xlu0 %v557
      %v559 = vpop.xlane.xlu0 %558
      %v560 = vrcp.pop 32.0
      %v561 = vmul.f32 %v553, %v560
      %v562 = vmul.f32 %v556, %v560
      %v563 = vmul.f32 %v559, %v560
      %v564 = vsub.f32 %v533, %v561
      %v565 = vsub.f32 %v538, %v562
      %v566 = vsub.f32 %v543, %v563
      %v567 = vmul.f32 %v564, %v564
      %v568 = vmul.f32 %v565, %v565
      %v569 = vmul.f32 %v566, %v566
      %v570 = vsel %vm550, %v567, 0.0
      %571 = vadd.xlane.f32.xlu0 %v570
      %v572 = vpop.xlane.xlu0 %571
      %v573 = vsel %vm550, %v568, 0.0
      %574 = vadd.xlane.f32.xlu0 %v573
      %v575 = vpop.xlane.xlu0 %574
      %v576 = vsel %vm550, %v569, 0.0
      %577 = vadd.xlane.f32.xlu0 %v576
      %v578 = vpop.xlane.xlu0 %577
      %v579 = vmul.f32 %v572, %v560
      %v580 = vmul.f32 %v575, %v560
      %v581 = vmul.f32 %v578, %v560
      %v582 = vadd.f32 %v579, 1e-06
      %v583 = vadd.f32 %v580, 1e-06
      %v584 = vadd.f32 %v581, 1e-06
      %v585 = vrsqrt.pop %v582
      %v586 = vrsqrt.pop %v583
      %v587 = vrsqrt.pop %v584
      %v588 = vmul.f32 %v564, %v585
      %v589 = vmul.f32 %v565, %v586
      %v590 = vmul.f32 %v566, %v587
      %v591 = vld [vmem:[%s3] sm:$0xff]
      %v592 = vld [vmem:[%s3 + $0x8] sm:$0xff]
      %v593 = vld [vmem:[%s3 + $0x10] sm:$0xff]
      %v594 = vld [vmem:[%s3 + $0x18] sm:$0xff]
      %v595 = vld [vmem:[%s4] sm:$0x1]
      %v597 = vlaneseq
      %v598 = vshrl.u32 %v597, 7
      %v599 = vsub.s32 0, %v598
      %v600 = vrot.slane %v595, %v599
      %v603 = vsel %vm550, %v588, 0
      %v606 = vsel %vm550, %v589, 0
      %v609 = vsel %vm550, %v590, 0
      %611 = vmatprep.subr.mxu0 0.0
      %612 = vmatpush1.msra.mxu0 0.0
      %613 = vmatprep.subr.mxu0 0.0
      %614 = vmatpush1.msra.mxu0 0.0
      %615 = vmatprep.subr.mxu0 0.0
      %616 = vmatpush1.msra.mxu0 0.0
      %617 = vmatprep.subr.mxu0 0.0
      %618 = vmatpush1.msra.mxu0 0.0
      %619 = vmatprep.subr.mxu0 0.0
      %620 = vmatpush1.msra.mxu0 0.0
      %621 = vmatprep.subr.mxu0 0.0
      %622 = vmatpush1.msra.mxu0 0.0
      %623 = vmatprep.subr.mxu0 0.0
      %624 = vmatpush1.msra.mxu0 0.0
      %625 = vmatprep.subr.mxu0 0.0
      %626 = vmatpush1.msra.mxu0 0.0
      %627 = vmatprep.subr.mxu0 0.0
      %628 = vmatpush1.msra.mxu0 0.0
      %629 = vmatprep.subr.mxu0 0.0
      %630 = vmatpush1.msra.mxu0 0.0
      %631 = vmatprep.subr.mxu0 0.0
      %632 = vmatpush1.msra.mxu0 0.0
      %633 = vmatprep.subr.mxu0 0.0
      %634 = vmatpush1.msra.mxu0 0.0
      %635 = vmatprep.subr.mxu0 0.0
      %636 = vmatpush1.msra.mxu0 %v594
      %637 = vmatprep.subr.mxu0 0.0
      %638 = vmatpush1.msra.mxu0 %v593
      %639 = vmatprep.subr.mxu0 0.0
      %640 = vmatpush1.msra.mxu0 %v592
      %641 = vmatprep.subr.mxu0 0.0
      %642 = vmatpush1.msra.mxu0 %v591
      %643 = vmatprep.subr.mxu0 0.0
      %644 = vmatpush2.msra.mxu0 0.0
      %645 = vmatprep.subr.mxu0 0.0
      %646 = vmatpush2.msra.mxu0 0.0
      %647 = vmatprep.subr.mxu0 0.0
      %648 = vmatpush2.msra.mxu0 0.0
      %649 = vmatprep.subr.mxu0 0.0
      %650 = vmatpush2.msra.mxu0 0.0
      %651 = vmatprep.subr.mxu0 0.0
      %652 = vmatpush2.msra.mxu0 0.0
      %653 = vmatprep.subr.mxu0 0.0
      %654 = vmatpush2.msra.mxu0 0.0
      %655 = vmatprep.subr.mxu0 0.0
      %656 = vmatpush2.msra.mxu0 0.0
      %657 = vmatprep.subr.mxu0 0.0
      %658 = vmatpush2.msra.mxu0 0.0
      %659 = vmatprep.subr.mxu0 0.0
      %660 = vmatpush2.msra.mxu0 0.0
      %661 = vmatprep.subr.mxu0 0.0
      %662 = vmatpush2.msra.mxu0 0.0
      %663 = vmatprep.subr.mxu0 0.0
      %664 = vmatpush2.msra.mxu0 0.0
      %665 = vmatprep.subr.mxu0 0.0
      %666 = vmatpush2.msra.mxu0 0.0
      %667 = vmatprep.subr.mxu0 0.0
      %668 = vmatpush2.msra.mxu0 0.0
      %669 = vmatprep.subr.mxu0 0.0
      %670 = vmatpush2.msra.mxu0 0.0
      %671 = vmatprep.subr.mxu0 0.0
      %672 = vmatpush2.msra.mxu0 0.0
      %673 = vmatprep.subr.mxu0 0.0
      %674 = vmatpush2.msra.mxu0 0.0
      %675 = vmatprep.mubr.f32.mxu0 0.0
      %676 = vmatmul.mubr.f32.gmra.mxu0 %v603
      %v677 = vpop.f32.mrf.mxu0
      %v678 = vadd.f32 %v600, %v677
      %v679 = vpop.f32.mrf.mxu0
      %680 = vmatprep.mubr.f32.mxu0 0.0
      %681 = vmatmul.mubr.f32.gmra.mxu0 %v606
      %v682 = vpop.f32.mrf.mxu0
      %v683 = vadd.f32 %v600, %v682
      %v684 = vpop.f32.mrf.mxu0
      %685 = vmatprep.mubr.f32.mxu0 0.0
      %686 = vmatmul.mubr.f32.gmra.mxu0 %v609
      %v687 = vpop.f32.mrf.mxu0
      %v688 = vadd.f32 %v600, %v687
      %v689 = vpop.f32.mrf.mxu0
      %690 = vdwg.mxu0
      %v691 = vld [vmem:[%s5] sm:$0xff]
      %v692 = vld [vmem:[%s5 + $0x8] sm:$0xff]
      %v693 = vld [vmem:[%s5 + $0x10] sm:$0xff]
      %v694 = vld [vmem:[%s5 + $0x18] sm:$0xff]
      %698 = vrot.lane.b32.xlu0 %v678, 96
      %v699 = vpop.permute.xlu0 %698
      %700 = vrot.lane.b32.xlu0 %v683, 96
      %v701 = vpop.permute.xlu0 %700
      %702 = vrot.lane.b32.xlu0 %v688, 96
      %v703 = vpop.permute.xlu0 %702
      %vm704 = vcmask 130048
      %v705 = vsel %vm704, %v678, 0
      %v707 = vsel %vm704, %v683, 0
      %v709 = vsel %vm704, %v688, 0
      %v711 = vsel %vm704, %v699, 0
      %v713 = vsel %vm704, %v701, 0
      %v715 = vsel %vm704, %v703, 0
      %717 = vmatprep.subr.mxu0 0.0
      %718 = vmatpush1.xpose.msra.mxu0 0.0
      %719 = vmatprep.subr.mxu0 0.0
      %720 = vmatpush1.xpose.msra.mxu0 0.0
      %721 = vmatprep.subr.mxu0 0.0
      %722 = vmatpush1.xpose.msra.mxu0 0.0
      %723 = vmatprep.subr.mxu0 0.0
      %724 = vmatpush1.xpose.msra.mxu0 0.0
      %725 = vmatprep.subr.mxu0 0.0
      %726 = vmatpush1.xpose.msra.mxu0 0.0
      %727 = vmatprep.subr.mxu0 0.0
      %728 = vmatpush1.xpose.msra.mxu0 0.0
      %729 = vmatprep.subr.mxu0 0.0
      %730 = vmatpush1.xpose.msra.mxu0 0.0
      %731 = vmatprep.subr.mxu0 0.0
      %732 = vmatpush1.xpose.msra.mxu0 0.0
      %733 = vmatprep.subr.mxu0 0.0
      %734 = vmatpush1.xpose.msra.mxu0 0.0
      %735 = vmatprep.subr.mxu0 0.0
      %736 = vmatpush1.xpose.msra.mxu0 0.0
      %737 = vmatprep.subr.mxu0 0.0
      %738 = vmatpush1.xpose.msra.mxu0 0.0
      %739 = vmatprep.subr.mxu0 0.0
      %740 = vmatpush1.xpose.msra.mxu0 0.0
      %741 = vmatprep.subr.mxu0 0.0
      %742 = vmatpush1.xpose.msra.mxu0 0.0
      %743 = vmatprep.subr.mxu0 0.0
      %744 = vmatpush1.xpose.msra.mxu0 %v715
      %745 = vmatprep.subr.mxu0 0.0
      %746 = vmatpush1.xpose.msra.mxu0 %v713
      %747 = vmatprep.subr.mxu0 0.0
      %748 = vmatpush1.xpose.msra.mxu0 %v711
      %749 = vmatprep.subr.mxu0 0.0
      %750 = vmatpush2.xpose.msra.mxu0 0.0
      %751 = vmatprep.subr.mxu0 0.0
      %752 = vmatpush2.xpose.msra.mxu0 0.0
      %753 = vmatprep.subr.mxu0 0.0
      %754 = vmatpush2.xpose.msra.mxu0 0.0
      %755 = vmatprep.subr.mxu0 0.0
      %756 = vmatpush2.xpose.msra.mxu0 0.0
      %757 = vmatprep.subr.mxu0 0.0
      %758 = vmatpush2.xpose.msra.mxu0 0.0
      %759 = vmatprep.subr.mxu0 0.0
      %760 = vmatpush2.xpose.msra.mxu0 0.0
      %761 = vmatprep.subr.mxu0 0.0
      %762 = vmatpush2.xpose.msra.mxu0 0.0
      %763 = vmatprep.subr.mxu0 0.0
      %764 = vmatpush2.xpose.msra.mxu0 0.0
      %765 = vmatprep.subr.mxu0 0.0
      %766 = vmatpush2.xpose.msra.mxu0 0.0
      %767 = vmatprep.subr.mxu0 0.0
      %768 = vmatpush2.xpose.msra.mxu0 0.0
      %769 = vmatprep.subr.mxu0 0.0
      %770 = vmatpush2.xpose.msra.mxu0 0.0
      %771 = vmatprep.subr.mxu0 0.0
      %772 = vmatpush2.xpose.msra.mxu0 0.0
      %773 = vmatprep.subr.mxu0 0.0
      %774 = vmatpush2.xpose.msra.mxu0 0.0
      %775 = vmatprep.subr.mxu0 0.0
      %776 = vmatpush2.xpose.msra.mxu0 0.0
      %777 = vmatprep.subr.mxu0 0.0
      %778 = vmatpush2.xpose.msra.mxu0 0.0
      %779 = vmatprep.subr.mxu0 0.0
      %780 = vmatpush2.xpose.msra.mxu0 0.0
      %781 = vmatprep.mubr.f32.mxu0 0.0
      %782 = vmatmul.mubr.f32.gmra.mxu0 %v705
      %v783 = vpop.f32.mrf.mxu0
      %v784 = vadd.f32 %v549, %v783
      %v785 = vpop.f32.mrf.mxu0
      %786 = vmatprep.mubr.f32.mxu0 0.0
      %787 = vmatmul.mubr.f32.gmra.mxu0 %v707
      %v788 = vpop.f32.mrf.mxu0
      %v789 = vadd.f32 %v549, %v788
      %v790 = vpop.f32.mrf.mxu0
      %791 = vmatprep.mubr.f32.mxu0 0.0
      %792 = vmatmul.mubr.f32.gmra.mxu0 %v709
      %v793 = vpop.f32.mrf.mxu0
      %v794 = vadd.f32 %v549, %v793
      %v795 = vpop.f32.mrf.mxu0
      %796 = vdwg.mxu0
      %vm797 = vcmask 195584
      %v798 = vsel %vm797, %v784, -inf
      %799 = vmax.xlane.f32.xlu0 %v798
      %v800 = vpop.xlane.xlu0 %799
      %v801 = vsel %vm797, %v789, -inf
      %802 = vmax.xlane.f32.xlu0 %v801
      %v803 = vpop.xlane.xlu0 %802
      %v804 = vsel %vm797, %v794, -inf
      %805 = vmax.xlane.f32.xlu0 %v804
      %v806 = vpop.xlane.xlu0 %805
      %v807 = vsub.f32 %v784, %v800
      %v808 = vsub.f32 %v789, %v803
      %v809 = vsub.f32 %v794, %v806
      %v810 = vmul.f32 %v807, 1.442695
      %v811 = vpow.pop %v810
      %v812 = vmul.f32 %v808, 1.442695
      %v813 = vpow.pop %v812
      %v814 = vmul.f32 %v809, 1.442695
      %v815 = vpow.pop %v814
      %v816 = vsel %vm797, %v811, 0.0
      %817 = vadd.xlane.f32.xlu0 %v816
      %v818 = vpop.xlane.xlu0 %817
      %v819 = vsel %vm797, %v813, 0.0
      %820 = vadd.xlane.f32.xlu0 %v819
      %v821 = vpop.xlane.xlu0 %820
      %v822 = vsel %vm797, %v815, 0.0
      %823 = vadd.xlane.f32.xlu0 %v822
      %v824 = vpop.xlane.xlu0 %823
      %v825 = vrcp.pop %v818
      %v826 = vrcp.pop %v821
      %v827 = vrcp.pop %v824
      %v828 = vmul.f32 %v811, %v825
      %v829 = vmul.f32 %v813, %v826
      %v830 = vmul.f32 %v815, %v827
      %831 = vrot.lane.b32.xlu0 %v678, 64
      %v832 = vpop.permute.xlu0 %831
      %833 = vrot.lane.b32.xlu0 %v683, 64
      %v834 = vpop.permute.xlu0 %833
      %835 = vrot.lane.b32.xlu0 %v688, 64
      %v836 = vpop.permute.xlu0 %835
      %v841 = vsel %vm797, %v828, 0
      %v844 = vsel %vm797, %v829, 0
      %v847 = vsel %vm797, %v830, 0
      %849 = vmatprep.subr.mxu0 0.0
      %850 = vmatpush1.msra.mxu0 0.0
      %851 = vmatprep.subr.mxu0 0.0
      %852 = vmatpush1.msra.mxu0 0.0
      %853 = vmatprep.subr.mxu0 0.0
      %854 = vmatpush1.msra.mxu0 0.0
      %855 = vmatprep.subr.mxu0 0.0
      %856 = vmatpush1.msra.mxu0 0.0
      %857 = vmatprep.subr.mxu0 0.0
      %858 = vmatpush1.msra.mxu0 0.0
      %859 = vmatprep.subr.mxu0 0.0
      %860 = vmatpush1.msra.mxu0 0.0
      %861 = vmatprep.subr.mxu0 0.0
      %862 = vmatpush1.msra.mxu0 0.0
      %863 = vmatprep.subr.mxu0 0.0
      %864 = vmatpush1.msra.mxu0 0.0
      %865 = vmatprep.subr.mxu0 0.0
      %866 = vmatpush1.msra.mxu0 0.0
      %867 = vmatprep.subr.mxu0 0.0
      %868 = vmatpush1.msra.mxu0 0.0
      %869 = vmatprep.subr.mxu0 0.0
      %870 = vmatpush1.msra.mxu0 0.0
      %871 = vmatprep.subr.mxu0 0.0
      %872 = vmatpush1.msra.mxu0 0.0
      %873 = vmatprep.subr.mxu0 0.0
      %874 = vmatpush1.msra.mxu0 0.0
      %875 = vmatprep.subr.mxu0 0.0
      %876 = vmatpush1.msra.mxu0 %v836
      %877 = vmatprep.subr.mxu0 0.0
      %878 = vmatpush1.msra.mxu0 %v834
      %879 = vmatprep.subr.mxu0 0.0
      %880 = vmatpush1.msra.mxu0 %v832
      %881 = vmatprep.subr.mxu0 0.0
      %882 = vmatpush2.msra.mxu0 0.0
      %883 = vmatprep.subr.mxu0 0.0
      %884 = vmatpush2.msra.mxu0 0.0
      %885 = vmatprep.subr.mxu0 0.0
      %886 = vmatpush2.msra.mxu0 0.0
      %887 = vmatprep.subr.mxu0 0.0
      %888 = vmatpush2.msra.mxu0 0.0
      %889 = vmatprep.subr.mxu0 0.0
      %890 = vmatpush2.msra.mxu0 0.0
      %891 = vmatprep.subr.mxu0 0.0
      %892 = vmatpush2.msra.mxu0 0.0
      %893 = vmatprep.subr.mxu0 0.0
      %894 = vmatpush2.msra.mxu0 0.0
      %895 = vmatprep.subr.mxu0 0.0
      %896 = vmatpush2.msra.mxu0 0.0
      %897 = vmatprep.subr.mxu0 0.0
      %898 = vmatpush2.msra.mxu0 0.0
      %899 = vmatprep.subr.mxu0 0.0
      %900 = vmatpush2.msra.mxu0 0.0
      %901 = vmatprep.subr.mxu0 0.0
      %902 = vmatpush2.msra.mxu0 0.0
      %903 = vmatprep.subr.mxu0 0.0
      %904 = vmatpush2.msra.mxu0 0.0
      %905 = vmatprep.subr.mxu0 0.0
      %906 = vmatpush2.msra.mxu0 0.0
      %907 = vmatprep.subr.mxu0 0.0
      %908 = vmatpush2.msra.mxu0 0.0
      %909 = vmatprep.subr.mxu0 0.0
      %910 = vmatpush2.msra.mxu0 0.0
      %911 = vmatprep.subr.mxu0 0.0
      %912 = vmatpush2.msra.mxu0 0.0
      %913 = vmatprep.mubr.f32.mxu0 0.0
      %914 = vmatmul.mubr.f32.gmra.mxu0 %v841
      %v915 = vpop.f32.mrf.mxu0
      %v916 = vadd.f32 0.0, %v915
      %v917 = vpop.f32.mrf.mxu0
      %918 = vmatprep.mubr.f32.mxu0 0.0
      %919 = vmatmul.mubr.f32.gmra.mxu0 %v844
      %v920 = vpop.f32.mrf.mxu0
      %v921 = vadd.f32 0.0, %v920
      %v922 = vpop.f32.mrf.mxu0
      %923 = vmatprep.mubr.f32.mxu0 0.0
      %924 = vmatmul.mubr.f32.gmra.mxu0 %v847
      %v925 = vpop.f32.mrf.mxu0
      %v926 = vadd.f32 0.0, %v925
      %v927 = vpop.f32.mrf.mxu0
      %928 = vdwg.mxu0
      %v930 = vsel %vm704, %v916, 0
      %v933 = vsel %vm704, %v921, 0
      %v936 = vsel %vm704, %v926, 0
      %938 = vmatprep.subr.mxu0 0.0
      %939 = vmatpush1.msra.mxu0 0.0
      %940 = vmatprep.subr.mxu0 0.0
      %941 = vmatpush1.msra.mxu0 0.0
      %942 = vmatprep.subr.mxu0 0.0
      %943 = vmatpush1.msra.mxu0 0.0
      %944 = vmatprep.subr.mxu0 0.0
      %945 = vmatpush1.msra.mxu0 0.0
      %946 = vmatprep.subr.mxu0 0.0
      %947 = vmatpush1.msra.mxu0 0.0
      %948 = vmatprep.subr.mxu0 0.0
      %949 = vmatpush1.msra.mxu0 0.0
      %950 = vmatprep.subr.mxu0 0.0
      %951 = vmatpush1.msra.mxu0 0.0
      %952 = vmatprep.subr.mxu0 0.0
      %953 = vmatpush1.msra.mxu0 0.0
      %954 = vmatprep.subr.mxu0 0.0
      %955 = vmatpush1.msra.mxu0 0.0
      %956 = vmatprep.subr.mxu0 0.0
      %957 = vmatpush1.msra.mxu0 0.0
      %958 = vmatprep.subr.mxu0 0.0
      %959 = vmatpush1.msra.mxu0 0.0
      %960 = vmatprep.subr.mxu0 0.0
      %961 = vmatpush1.msra.mxu0 0.0
      %962 = vmatprep.subr.mxu0 0.0
      %963 = vmatpush1.msra.mxu0 0.0
      %964 = vmatprep.subr.mxu0 0.0
      %965 = vmatpush1.msra.mxu0 0.0
      %966 = vmatprep.subr.mxu0 0.0
      %967 = vmatpush1.msra.mxu0 %v692
      %968 = vmatprep.subr.mxu0 0.0
      %969 = vmatpush1.msra.mxu0 %v691
      %970 = vmatprep.subr.mxu0 0.0
      %971 = vmatpush2.msra.mxu0 0.0
      %972 = vmatprep.subr.mxu0 0.0
      %973 = vmatpush2.msra.mxu0 0.0
      %974 = vmatprep.subr.mxu0 0.0
      %975 = vmatpush2.msra.mxu0 0.0
      %976 = vmatprep.subr.mxu0 0.0
      %977 = vmatpush2.msra.mxu0 0.0
      %978 = vmatprep.subr.mxu0 0.0
      %979 = vmatpush2.msra.mxu0 0.0
      %980 = vmatprep.subr.mxu0 0.0
      %981 = vmatpush2.msra.mxu0 0.0
      %982 = vmatprep.subr.mxu0 0.0
      %983 = vmatpush2.msra.mxu0 0.0
      %984 = vmatprep.subr.mxu0 0.0
      %985 = vmatpush2.msra.mxu0 0.0
      %986 = vmatprep.subr.mxu0 0.0
      %987 = vmatpush2.msra.mxu0 0.0
      %988 = vmatprep.subr.mxu0 0.0
      %989 = vmatpush2.msra.mxu0 0.0
      %990 = vmatprep.subr.mxu0 0.0
      %991 = vmatpush2.msra.mxu0 0.0
      %992 = vmatprep.subr.mxu0 0.0
      %993 = vmatpush2.msra.mxu0 0.0
      %994 = vmatprep.subr.mxu0 0.0
      %995 = vmatpush2.msra.mxu0 0.0
      %996 = vmatprep.subr.mxu0 0.0
      %997 = vmatpush2.msra.mxu0 0.0
      %998 = vmatprep.subr.mxu0 0.0
      %999 = vmatpush2.msra.mxu0 0.0
      %1000 = vmatprep.subr.mxu0 0.0
      %1001 = vmatpush2.msra.mxu0 0.0
      %1002 = vmatprep.mubr.f32.mxu0 0.0
      %1003 = vmatmul.mubr.f32.gmra.mxu0 %v930
      %v1004 = vpop.f32.mrf.mxu0
      %v1005 = vadd.f32 0.0, %v1004
      %v1006 = vpop.f32.mrf.mxu0
      %1007 = vmatprep.mubr.f32.mxu0 0.0
      %1008 = vmatmul.mubr.f32.gmra.mxu0 %v933
      %v1009 = vpop.f32.mrf.mxu0
      %v1010 = vadd.f32 0.0, %v1009
      %v1011 = vpop.f32.mrf.mxu0
      %1012 = vmatprep.mubr.f32.mxu0 0.0
      %1013 = vmatmul.mubr.f32.gmra.mxu0 %v936
      %v1014 = vpop.f32.mrf.mxu0
      %v1015 = vadd.f32 0.0, %v1014
      %v1016 = vpop.f32.mrf.mxu0
      %1017 = vdwg.mxu0
      %v1018 = vadd.f32 %v533, %v1005
      %v1019 = vadd.f32 %v538, %v1010
      %v1020 = vadd.f32 %v543, %v1015
      %1021 = vrot.lane.b32.xlu0 %v678, 112
      %v1022 = vpop.permute.xlu0 %1021
      %1023 = vrot.lane.b32.xlu0 %v683, 112
      %v1024 = vpop.permute.xlu0 %1023
      %1025 = vrot.lane.b32.xlu0 %v688, 112
      %v1026 = vpop.permute.xlu0 %1025
      %1027 = vrot.lane.b32.xlu0 %v678, 80
      %v1028 = vpop.permute.xlu0 %1027
      %1029 = vrot.lane.b32.xlu0 %v683, 80
      %v1030 = vpop.permute.xlu0 %1029
      %1031 = vrot.lane.b32.xlu0 %v688, 80
      %v1032 = vpop.permute.xlu0 %1031
      %v1033 = vsel %vm704, %v1022, 0
      %v1035 = vsel %vm704, %v1024, 0
      %v1037 = vsel %vm704, %v1026, 0
      %v1039 = vsel %vm704, %v1028, 0
      %v1041 = vsel %vm704, %v1030, 0
      %v1043 = vsel %vm704, %v1032, 0
      %1045 = vmatprep.subr.mxu0 0.0
      %1046 = vmatpush1.xpose.msra.mxu0 0.0
      %1047 = vmatprep.subr.mxu0 0.0
      %1048 = vmatpush1.xpose.msra.mxu0 0.0
      %1049 = vmatprep.subr.mxu0 0.0
      %1050 = vmatpush1.xpose.msra.mxu0 0.0
      %1051 = vmatprep.subr.mxu0 0.0
      %1052 = vmatpush1.xpose.msra.mxu0 0.0
      %1053 = vmatprep.subr.mxu0 0.0
      %1054 = vmatpush1.xpose.msra.mxu0 0.0
      %1055 = vmatprep.subr.mxu0 0.0
      %1056 = vmatpush1.xpose.msra.mxu0 0.0
      %1057 = vmatprep.subr.mxu0 0.0
      %1058 = vmatpush1.xpose.msra.mxu0 0.0
      %1059 = vmatprep.subr.mxu0 0.0
      %1060 = vmatpush1.xpose.msra.mxu0 0.0
      %1061 = vmatprep.subr.mxu0 0.0
      %1062 = vmatpush1.xpose.msra.mxu0 0.0
      %1063 = vmatprep.subr.mxu0 0.0
      %1064 = vmatpush1.xpose.msra.mxu0 0.0
      %1065 = vmatprep.subr.mxu0 0.0
      %1066 = vmatpush1.xpose.msra.mxu0 0.0
      %1067 = vmatprep.subr.mxu0 0.0
      %1068 = vmatpush1.xpose.msra.mxu0 0.0
      %1069 = vmatprep.subr.mxu0 0.0
      %1070 = vmatpush1.xpose.msra.mxu0 0.0
      %1071 = vmatprep.subr.mxu0 0.0
      %1072 = vmatpush1.xpose.msra.mxu0 %v1043
      %1073 = vmatprep.subr.mxu0 0.0
      %1074 = vmatpush1.xpose.msra.mxu0 %v1041
      %1075 = vmatprep.subr.mxu0 0.0
      %1076 = vmatpush1.xpose.msra.mxu0 %v1039
      %1077 = vmatprep.subr.mxu0 0.0
      %1078 = vmatpush2.xpose.msra.mxu0 0.0
      %1079 = vmatprep.subr.mxu0 0.0
      %1080 = vmatpush2.xpose.msra.mxu0 0.0
      %1081 = vmatprep.subr.mxu0 0.0
      %1082 = vmatpush2.xpose.msra.mxu0 0.0
      %1083 = vmatprep.subr.mxu0 0.0
      %1084 = vmatpush2.xpose.msra.mxu0 0.0
      %1085 = vmatprep.subr.mxu0 0.0
      %1086 = vmatpush2.xpose.msra.mxu0 0.0
      %1087 = vmatprep.subr.mxu0 0.0
      %1088 = vmatpush2.xpose.msra.mxu0 0.0
      %1089 = vmatprep.subr.mxu0 0.0
      %1090 = vmatpush2.xpose.msra.mxu0 0.0
      %1091 = vmatprep.subr.mxu0 0.0
      %1092 = vmatpush2.xpose.msra.mxu0 0.0
      %1093 = vmatprep.subr.mxu0 0.0
      %1094 = vmatpush2.xpose.msra.mxu0 0.0
      %1095 = vmatprep.subr.mxu0 0.0
      %1096 = vmatpush2.xpose.msra.mxu0 0.0
      %1097 = vmatprep.subr.mxu0 0.0
      %1098 = vmatpush2.xpose.msra.mxu0 0.0
      %1099 = vmatprep.subr.mxu0 0.0
      %1100 = vmatpush2.xpose.msra.mxu0 0.0
      %1101 = vmatprep.subr.mxu0 0.0
      %1102 = vmatpush2.xpose.msra.mxu0 0.0
      %1103 = vmatprep.subr.mxu0 0.0
      %1104 = vmatpush2.xpose.msra.mxu0 0.0
      %1105 = vmatprep.subr.mxu0 0.0
      %1106 = vmatpush2.xpose.msra.mxu0 0.0
      %1107 = vmatprep.subr.mxu0 0.0
      %1108 = vmatpush2.xpose.msra.mxu0 0.0
      %1109 = vmatprep.mubr.f32.mxu0 0.0
      %1110 = vmatmul.mubr.f32.gmra.mxu0 %v1033
      %v1111 = vpop.f32.mrf.mxu0
      %v1112 = vadd.f32 %v549, %v1111
      %v1113 = vpop.f32.mrf.mxu0
      %1114 = vmatprep.mubr.f32.mxu0 0.0
      %1115 = vmatmul.mubr.f32.gmra.mxu0 %v1035
      %v1116 = vpop.f32.mrf.mxu0
      %v1117 = vadd.f32 %v549, %v1116
      %v1118 = vpop.f32.mrf.mxu0
      %1119 = vmatprep.mubr.f32.mxu0 0.0
      %1120 = vmatmul.mubr.f32.gmra.mxu0 %v1037
      %v1121 = vpop.f32.mrf.mxu0
      %v1122 = vadd.f32 %v549, %v1121
      %v1123 = vpop.f32.mrf.mxu0
      %1124 = vdwg.mxu0
      %v1125 = vsel %vm797, %v1112, -inf
      %1126 = vmax.xlane.f32.xlu0 %v1125
      %v1127 = vpop.xlane.xlu0 %1126
      %v1128 = vsel %vm797, %v1117, -inf
      %1129 = vmax.xlane.f32.xlu0 %v1128
      %v1130 = vpop.xlane.xlu0 %1129
      %v1131 = vsel %vm797, %v1122, -inf
      %1132 = vmax.xlane.f32.xlu0 %v1131
      %v1133 = vpop.xlane.xlu0 %1132
      %v1134 = vsub.f32 %v1112, %v1127
      %v1135 = vsub.f32 %v1117, %v1130
      %v1136 = vsub.f32 %v1122, %v1133
      %v1137 = vmul.f32 %v1134, 1.442695
      %v1138 = vpow.pop %v1137
      %v1139 = vmul.f32 %v1135, 1.442695
      %v1140 = vpow.pop %v1139
      %v1141 = vmul.f32 %v1136, 1.442695
      %v1142 = vpow.pop %v1141
      %v1143 = vsel %vm797, %v1138, 0.0
      %1144 = vadd.xlane.f32.xlu0 %v1143
      %v1145 = vpop.xlane.xlu0 %1144
      %v1146 = vsel %vm797, %v1140, 0.0
      %1147 = vadd.xlane.f32.xlu0 %v1146
      %v1148 = vpop.xlane.xlu0 %1147
      %v1149 = vsel %vm797, %v1142, 0.0
      %1150 = vadd.xlane.f32.xlu0 %v1149
      %v1151 = vpop.xlane.xlu0 %1150
      %v1152 = vrcp.pop %v1145
      %v1153 = vrcp.pop %v1148
      %v1154 = vrcp.pop %v1151
      %v1155 = vmul.f32 %v1138, %v1152
      %v1156 = vmul.f32 %v1140, %v1153
      %v1157 = vmul.f32 %v1142, %v1154
      %1158 = vrot.lane.b32.xlu0 %v678, 48
      %v1159 = vpop.permute.xlu0 %1158
      %1160 = vrot.lane.b32.xlu0 %v683, 48
      %v1161 = vpop.permute.xlu0 %1160
      %1162 = vrot.lane.b32.xlu0 %v688, 48
      %v1163 = vpop.permute.xlu0 %1162
      %v1168 = vsel %vm797, %v1155, 0
      %v1171 = vsel %vm797, %v1156, 0
      %v1174 = vsel %vm797, %v1157, 0
      %1176 = vmatprep.subr.mxu0 0.0
      %1177 = vmatpush1.msra.mxu0 0.0
      %1178 = vmatprep.subr.mxu0 0.0
      %1179 = vmatpush1.msra.mxu0 0.0
      %1180 = vmatprep.subr.mxu0 0.0
      %1181 = vmatpush1.msra.mxu0 0.0
      %1182 = vmatprep.subr.mxu0 0.0
      %1183 = vmatpush1.msra.mxu0 0.0
      %1184 = vmatprep.subr.mxu0 0.0
      %1185 = vmatpush1.msra.mxu0 0.0
      %1186 = vmatprep.subr.mxu0 0.0
      %1187 = vmatpush1.msra.mxu0 0.0
      %1188 = vmatprep.subr.mxu0 0.0
      %1189 = vmatpush1.msra.mxu0 0.0
      %1190 = vmatprep.subr.mxu0 0.0
      %1191 = vmatpush1.msra.mxu0 0.0
      %1192 = vmatprep.subr.mxu0 0.0
      %1193 = vmatpush1.msra.mxu0 0.0
      %1194 = vmatprep.subr.mxu0 0.0
      %1195 = vmatpush1.msra.mxu0 0.0
      %1196 = vmatprep.subr.mxu0 0.0
      %1197 = vmatpush1.msra.mxu0 0.0
      %1198 = vmatprep.subr.mxu0 0.0
      %1199 = vmatpush1.msra.mxu0 0.0
      %1200 = vmatprep.subr.mxu0 0.0
      %1201 = vmatpush1.msra.mxu0 0.0
      %1202 = vmatprep.subr.mxu0 0.0
      %1203 = vmatpush1.msra.mxu0 %v1163
      %1204 = vmatprep.subr.mxu0 0.0
      %1205 = vmatpush1.msra.mxu0 %v1161
      %1206 = vmatprep.subr.mxu0 0.0
      %1207 = vmatpush1.msra.mxu0 %v1159
      %1208 = vmatprep.subr.mxu0 0.0
      %1209 = vmatpush2.msra.mxu0 0.0
      %1210 = vmatprep.subr.mxu0 0.0
      %1211 = vmatpush2.msra.mxu0 0.0
      %1212 = vmatprep.subr.mxu0 0.0
      %1213 = vmatpush2.msra.mxu0 0.0
      %1214 = vmatprep.subr.mxu0 0.0
      %1215 = vmatpush2.msra.mxu0 0.0
      %1216 = vmatprep.subr.mxu0 0.0
      %1217 = vmatpush2.msra.mxu0 0.0
      %1218 = vmatprep.subr.mxu0 0.0
      %1219 = vmatpush2.msra.mxu0 0.0
      %1220 = vmatprep.subr.mxu0 0.0
      %1221 = vmatpush2.msra.mxu0 0.0
      %1222 = vmatprep.subr.mxu0 0.0
      %1223 = vmatpush2.msra.mxu0 0.0
      %1224 = vmatprep.subr.mxu0 0.0
      %1225 = vmatpush2.msra.mxu0 0.0
      %1226 = vmatprep.subr.mxu0 0.0
      %1227 = vmatpush2.msra.mxu0 0.0
      %1228 = vmatprep.subr.mxu0 0.0
      %1229 = vmatpush2.msra.mxu0 0.0
      %1230 = vmatprep.subr.mxu0 0.0
      %1231 = vmatpush2.msra.mxu0 0.0
      %1232 = vmatprep.subr.mxu0 0.0
      %1233 = vmatpush2.msra.mxu0 0.0
      %1234 = vmatprep.subr.mxu0 0.0
      %1235 = vmatpush2.msra.mxu0 0.0
      %1236 = vmatprep.subr.mxu0 0.0
      %1237 = vmatpush2.msra.mxu0 0.0
      %1238 = vmatprep.subr.mxu0 0.0
      %1239 = vmatpush2.msra.mxu0 0.0
      %1240 = vmatprep.mubr.f32.mxu0 0.0
      %1241 = vmatmul.mubr.f32.gmra.mxu0 %v1168
      %v1242 = vpop.f32.mrf.mxu0
      %v1243 = vadd.f32 0.0, %v1242
      %v1244 = vpop.f32.mrf.mxu0
      %1245 = vmatprep.mubr.f32.mxu0 0.0
      %1246 = vmatmul.mubr.f32.gmra.mxu0 %v1171
      %v1247 = vpop.f32.mrf.mxu0
      %v1248 = vadd.f32 0.0, %v1247
      %v1249 = vpop.f32.mrf.mxu0
      %1250 = vmatprep.mubr.f32.mxu0 0.0
      %1251 = vmatmul.mubr.f32.gmra.mxu0 %v1174
      %v1252 = vpop.f32.mrf.mxu0
      %v1253 = vadd.f32 0.0, %v1252
      %v1254 = vpop.f32.mrf.mxu0
      %1255 = vdwg.mxu0
      %v1257 = vsel %vm704, %v1243, 0
      %v1260 = vsel %vm704, %v1248, 0
      %v1263 = vsel %vm704, %v1253, 0
      %1265 = vmatprep.subr.mxu0 0.0
      %1266 = vmatpush1.msra.mxu0 0.0
      %1267 = vmatprep.subr.mxu0 0.0
      %1268 = vmatpush1.msra.mxu0 0.0
      %1269 = vmatprep.subr.mxu0 0.0
      %1270 = vmatpush1.msra.mxu0 0.0
      %1271 = vmatprep.subr.mxu0 0.0
      %1272 = vmatpush1.msra.mxu0 0.0
      %1273 = vmatprep.subr.mxu0 0.0
      %1274 = vmatpush1.msra.mxu0 0.0
      %1275 = vmatprep.subr.mxu0 0.0
      %1276 = vmatpush1.msra.mxu0 0.0
      %1277 = vmatprep.subr.mxu0 0.0
      %1278 = vmatpush1.msra.mxu0 0.0
      %1279 = vmatprep.subr.mxu0 0.0
      %1280 = vmatpush1.msra.mxu0 0.0
      %1281 = vmatprep.subr.mxu0 0.0
      %1282 = vmatpush1.msra.mxu0 0.0
      %1283 = vmatprep.subr.mxu0 0.0
      %1284 = vmatpush1.msra.mxu0 0.0
      %1285 = vmatprep.subr.mxu0 0.0
      %1286 = vmatpush1.msra.mxu0 0.0
      %1287 = vmatprep.subr.mxu0 0.0
      %1288 = vmatpush1.msra.mxu0 0.0
      %1289 = vmatprep.subr.mxu0 0.0
      %1290 = vmatpush1.msra.mxu0 0.0
      %1291 = vmatprep.subr.mxu0 0.0
      %1292 = vmatpush1.msra.mxu0 0.0
      %1293 = vmatprep.subr.mxu0 0.0
      %1294 = vmatpush1.msra.mxu0 %v694
      %1295 = vmatprep.subr.mxu0 0.0
      %1296 = vmatpush1.msra.mxu0 %v693
      %1297 = vmatprep.subr.mxu0 0.0
      %1298 = vmatpush2.msra.mxu0 0.0
      %1299 = vmatprep.subr.mxu0 0.0
      %1300 = vmatpush2.msra.mxu0 0.0
      %1301 = vmatprep.subr.mxu0 0.0
      %1302 = vmatpush2.msra.mxu0 0.0
      %1303 = vmatprep.subr.mxu0 0.0
      %1304 = vmatpush2.msra.mxu0 0.0
      %1305 = vmatprep.subr.mxu0 0.0
      %1306 = vmatpush2.msra.mxu0 0.0
      %1307 = vmatprep.subr.mxu0 0.0
      %1308 = vmatpush2.msra.mxu0 0.0
      %1309 = vmatprep.subr.mxu0 0.0
      %1310 = vmatpush2.msra.mxu0 0.0
      %1311 = vmatprep.subr.mxu0 0.0
      %1312 = vmatpush2.msra.mxu0 0.0
      %1313 = vmatprep.subr.mxu0 0.0
      %1314 = vmatpush2.msra.mxu0 0.0
      %1315 = vmatprep.subr.mxu0 0.0
      %1316 = vmatpush2.msra.mxu0 0.0
      %1317 = vmatprep.subr.mxu0 0.0
      %1318 = vmatpush2.msra.mxu0 0.0
      %1319 = vmatprep.subr.mxu0 0.0
      %1320 = vmatpush2.msra.mxu0 0.0
      %1321 = vmatprep.subr.mxu0 0.0
      %1322 = vmatpush2.msra.mxu0 0.0
      %1323 = vmatprep.subr.mxu0 0.0
      %1324 = vmatpush2.msra.mxu0 0.0
      %1325 = vmatprep.subr.mxu0 0.0
      %1326 = vmatpush2.msra.mxu0 0.0
      %1327 = vmatprep.subr.mxu0 0.0
      %1328 = vmatpush2.msra.mxu0 0.0
      %1329 = vmatprep.mubr.f32.mxu0 0.0
      %1330 = vmatmul.mubr.f32.gmra.mxu0 %v1257
      %v1331 = vpop.f32.mrf.mxu0
      %v1332 = vadd.f32 0.0, %v1331
      %v1333 = vpop.f32.mrf.mxu0
      %1334 = vmatprep.mubr.f32.mxu0 0.0
      %1335 = vmatmul.mubr.f32.gmra.mxu0 %v1260
      %v1336 = vpop.f32.mrf.mxu0
      %v1337 = vadd.f32 0.0, %v1336
      %v1338 = vpop.f32.mrf.mxu0
      %1339 = vmatprep.mubr.f32.mxu0 0.0
      %1340 = vmatmul.mubr.f32.gmra.mxu0 %v1263
      %v1341 = vpop.f32.mrf.mxu0
      %v1342 = vadd.f32 0.0, %v1341
      %v1343 = vpop.f32.mrf.mxu0
      %1344 = vdwg.mxu0
      %v1345 = vadd.f32 %v1018, %v1332
      %v1346 = vadd.f32 %v1019, %v1337
      %v1347 = vadd.f32 %v1020, %v1342
      %v1348 = vld [vmem:[%s6] sm:$0x1]
      %v1350 = vlaneseq
      %v1351 = vshrl.u32 %v1350, 7
      %v1352 = vsub.s32 0, %v1351
      %v1353 = vrot.slane %v1348, %v1352
      %v1355 = vadd.f32 %v1345, %v1353
      %v1356 = vadd.f32 %v1346, %v1353
      %v1357 = vadd.f32 %v1347, %v1353
      %v1358 = vsel %vm550, %v1355, 0.0
      %1359 = vadd.xlane.f32.xlu0 %v1358
      %v1360 = vpop.xlane.xlu0 %1359
      %v1361 = vsel %vm550, %v1356, 0.0
      %1362 = vadd.xlane.f32.xlu0 %v1361
      %v1363 = vpop.xlane.xlu0 %1362
      %v1364 = vsel %vm550, %v1357, 0.0
      %1365 = vadd.xlane.f32.xlu0 %v1364
      %v1366 = vpop.xlane.xlu0 %1365
      %v1367 = vmul.f32 %v1360, %v560
      %v1368 = vmul.f32 %v1363, %v560
      %v1369 = vmul.f32 %v1366, %v560
      %v1370 = vsub.f32 %v1355, %v1367
      %v1371 = vsub.f32 %v1356, %v1368
      %v1372 = vsub.f32 %v1357, %v1369
      %v1373 = vmul.f32 %v1370, %v1370
      %v1374 = vmul.f32 %v1371, %v1371
      %v1375 = vmul.f32 %v1372, %v1372
      %v1376 = vsel %vm550, %v1373, 0.0
      %1377 = vadd.xlane.f32.xlu0 %v1376
      %v1378 = vpop.xlane.xlu0 %1377
      %v1379 = vsel %vm550, %v1374, 0.0
      %1380 = vadd.xlane.f32.xlu0 %v1379
      %v1381 = vpop.xlane.xlu0 %1380
      %v1382 = vsel %vm550, %v1375, 0.0
      %1383 = vadd.xlane.f32.xlu0 %v1382
      %v1384 = vpop.xlane.xlu0 %1383
      %v1385 = vmul.f32 %v1378, %v560
      %v1386 = vmul.f32 %v1381, %v560
      %v1387 = vmul.f32 %v1384, %v560
      %v1388 = vadd.f32 %v1385, 1e-06
      %v1389 = vadd.f32 %v1386, 1e-06
      %v1390 = vadd.f32 %v1387, 1e-06
      %v1391 = vrsqrt.pop %v1388
      %v1392 = vrsqrt.pop %v1389
      %v1393 = vrsqrt.pop %v1390
      %v1394 = vmul.f32 %v1370, %v1391
      %v1395 = vmul.f32 %v1371, %v1392
      %v1396 = vmul.f32 %v1372, %v1393
      %v1397 = vld [vmem:[%s7] sm:$0xff]
      %v1398 = vld [vmem:[%s7 + $0x8] sm:$0xff]
      %v1399 = vld [vmem:[%s7 + $0x10] sm:$0xff]
      %v1400 = vld [vmem:[%s7 + $0x18] sm:$0xff]
      %v1401 = vld [vmem:[%s8] sm:$0x1]
      %v1403 = vlaneseq
      %v1404 = vshrl.u32 %v1403, 7
      %v1405 = vsub.s32 0, %v1404
      %v1406 = vrot.slane %v1401, %v1405
      %v1409 = vsel %vm550, %v1394, 0
      %v1412 = vsel %vm550, %v1395, 0
      %v1415 = vsel %vm550, %v1396, 0
      %1417 = vmatprep.subr.mxu0 0.0
      %1418 = vmatpush1.msra.mxu0 0.0
      %1419 = vmatprep.subr.mxu0 0.0
      %1420 = vmatpush1.msra.mxu0 0.0
      %1421 = vmatprep.subr.mxu0 0.0
      %1422 = vmatpush1.msra.mxu0 0.0
      %1423 = vmatprep.subr.mxu0 0.0
      %1424 = vmatpush1.msra.mxu0 0.0
      %1425 = vmatprep.subr.mxu0 0.0
      %1426 = vmatpush1.msra.mxu0 0.0
      %1427 = vmatprep.subr.mxu0 0.0
      %1428 = vmatpush1.msra.mxu0 0.0
      %1429 = vmatprep.subr.mxu0 0.0
      %1430 = vmatpush1.msra.mxu0 0.0
      %1431 = vmatprep.subr.mxu0 0.0
      %1432 = vmatpush1.msra.mxu0 0.0
      %1433 = vmatprep.subr.mxu0 0.0
      %1434 = vmatpush1.msra.mxu0 0.0
      %1435 = vmatprep.subr.mxu0 0.0
      %1436 = vmatpush1.msra.mxu0 0.0
      %1437 = vmatprep.subr.mxu0 0.0
      %1438 = vmatpush1.msra.mxu0 0.0
      %1439 = vmatprep.subr.mxu0 0.0
      %1440 = vmatpush1.msra.mxu0 0.0
      %1441 = vmatprep.subr.mxu0 0.0
      %1442 = vmatpush1.msra.mxu0 %v1400
      %1443 = vmatprep.subr.mxu0 0.0
      %1444 = vmatpush1.msra.mxu0 %v1399
      %1445 = vmatprep.subr.mxu0 0.0
      %1446 = vmatpush1.msra.mxu0 %v1398
      %1447 = vmatprep.subr.mxu0 0.0
      %1448 = vmatpush1.msra.mxu0 %v1397
      %1449 = vmatprep.subr.mxu0 0.0
      %1450 = vmatpush2.msra.mxu0 0.0
      %1451 = vmatprep.subr.mxu0 0.0
      %1452 = vmatpush2.msra.mxu0 0.0
      %1453 = vmatprep.subr.mxu0 0.0
      %1454 = vmatpush2.msra.mxu0 0.0
      %1455 = vmatprep.subr.mxu0 0.0
      %1456 = vmatpush2.msra.mxu0 0.0
      %1457 = vmatprep.subr.mxu0 0.0
      %1458 = vmatpush2.msra.mxu0 0.0
      %1459 = vmatprep.subr.mxu0 0.0
      %1460 = vmatpush2.msra.mxu0 0.0
      %1461 = vmatprep.subr.mxu0 0.0
      %1462 = vmatpush2.msra.mxu0 0.0
      %1463 = vmatprep.subr.mxu0 0.0
      %1464 = vmatpush2.msra.mxu0 0.0
      %1465 = vmatprep.subr.mxu0 0.0
      %1466 = vmatpush2.msra.mxu0 0.0
      %1467 = vmatprep.subr.mxu0 0.0
      %1468 = vmatpush2.msra.mxu0 0.0
      %1469 = vmatprep.subr.mxu0 0.0
      %1470 = vmatpush2.msra.mxu0 0.0
      %1471 = vmatprep.subr.mxu0 0.0
      %1472 = vmatpush2.msra.mxu0 0.0
      %1473 = vmatprep.subr.mxu0 0.0
      %1474 = vmatpush2.msra.mxu0 0.0
      %1475 = vmatprep.subr.mxu0 0.0
      %1476 = vmatpush2.msra.mxu0 0.0
      %1477 = vmatprep.subr.mxu0 0.0
      %1478 = vmatpush2.msra.mxu0 0.0
      %1479 = vmatprep.subr.mxu0 0.0
      %1480 = vmatpush2.msra.mxu0 0.0
      %1481 = vmatprep.mubr.f32.mxu0 0.0
      %1482 = vmatmul.mubr.f32.gmra.mxu0 %v1409
      %v1483 = vpop.f32.mrf.mxu0
      %v1484 = vadd.f32 %v1406, %v1483
      %v1485 = vpop.f32.mrf.mxu0
      %1486 = vmatprep.mubr.f32.mxu0 0.0
      %1487 = vmatmul.mubr.f32.gmra.mxu0 %v1412
      %v1488 = vpop.f32.mrf.mxu0
      %v1489 = vadd.f32 %v1406, %v1488
      %v1490 = vpop.f32.mrf.mxu0
      %1491 = vmatprep.mubr.f32.mxu0 0.0
      %1492 = vmatmul.mubr.f32.gmra.mxu0 %v1415
      %v1493 = vpop.f32.mrf.mxu0
      %v1494 = vadd.f32 %v1406, %v1493
      %v1495 = vpop.f32.mrf.mxu0
      %1496 = vdwg.mxu0
      %v1497 = vmul.f32 %v1484, %v1484
      %v1498 = vmul.f32 %v1489, %v1489
      %v1499 = vmul.f32 %v1494, %v1494
      %v1500 = vmul.f32 %v1484, %v1497
      %v1501 = vmul.f32 %v1489, %v1498
      %v1502 = vmul.f32 %v1494, %v1499
      %v1503 = vmul.f32 %v1500, 0.044715
      %v1504 = vmul.f32 %v1501, 0.044715
      %v1505 = vmul.f32 %v1502, 0.044715
      %v1506 = vadd.f32 %v1484, %v1503
      %v1507 = vadd.f32 %v1489, %v1504
      %v1508 = vadd.f32 %v1494, %v1505
      %v1509 = vmul.f32 %v1506, 0.7978846
      %v1510 = vmul.f32 %v1507, 0.7978846
      %v1511 = vmul.f32 %v1508, 0.7978846
      %v1512 = vtanh.pop %v1509
      %v1513 = vtanh.pop %v1510
      %v1514 = vtanh.pop %v1511
      %v1515 = vadd.f32 %v1512, 1.0
      %v1516 = vadd.f32 %v1513, 1.0
      %v1517 = vadd.f32 %v1514, 1.0
      %v1518 = vmul.f32 %v1515, 0.5
      %v1519 = vmul.f32 %v1516, 0.5
      %v1520 = vmul.f32 %v1517, 0.5
      %v1521 = vmul.f32 %v1484, %v1518
      %v1522 = vmul.f32 %v1489, %v1519
      %v1523 = vmul.f32 %v1494, %v1520
      %v1524 = vld [vmem:[%s9] sm:$0xff]
      %v1525 = vld [vmem:[%s9 + $0x8] sm:$0xff]
      %v1526 = vld [vmem:[%s9 + $0x10] sm:$0xff]
      %v1527 = vld [vmem:[%s9 + $0x18] sm:$0xff]
      %v1528 = vld [vmem:[%s9 + $0x20] sm:$0xff]
      %v1529 = vld [vmem:[%s9 + $0x28] sm:$0xff]
      %v1530 = vld [vmem:[%s9 + $0x30] sm:$0xff]
      %v1531 = vld [vmem:[%s9 + $0x38] sm:$0xff]
      %v1532 = vld [vmem:[%s9 + $0x40] sm:$0xff]
      %v1533 = vld [vmem:[%s9 + $0x48] sm:$0xff]
      %v1534 = vld [vmem:[%s9 + $0x50] sm:$0xff]
      %v1535 = vld [vmem:[%s9 + $0x58] sm:$0xff]
      %v1536 = vld [vmem:[%s9 + $0x60] sm:$0xff]
      %v1537 = vld [vmem:[%s9 + $0x68] sm:$0xff]
      %v1538 = vld [vmem:[%s9 + $0x70] sm:$0xff]
      %v1539 = vld [vmem:[%s9 + $0x78] sm:$0xff]
      %v1540 = vld [vmem:[%s10] sm:$0x1]
      %v1542 = vlaneseq
      %v1543 = vshrl.u32 %v1542, 7
      %v1544 = vsub.s32 0, %v1543
      %v1545 = vrot.slane %v1540, %v1544
      %1547 = vmatprep.subr.mxu0 0.0
      %1548 = vmatpush1.msra.mxu0 %v1539
      %1549 = vmatprep.subr.mxu0 0.0
      %1550 = vmatpush1.msra.mxu0 %v1538
      %1551 = vmatprep.subr.mxu0 0.0
      %1552 = vmatpush1.msra.mxu0 %v1537
      %1553 = vmatprep.subr.mxu0 0.0
      %1554 = vmatpush1.msra.mxu0 %v1536
      %1555 = vmatprep.subr.mxu0 0.0
      %1556 = vmatpush1.msra.mxu0 %v1535
      %1557 = vmatprep.subr.mxu0 0.0
      %1558 = vmatpush1.msra.mxu0 %v1534
      %1559 = vmatprep.subr.mxu0 0.0
      %1560 = vmatpush1.msra.mxu0 %v1533
      %1561 = vmatprep.subr.mxu0 0.0
      %1562 = vmatpush1.msra.mxu0 %v1532
      %1563 = vmatprep.subr.mxu0 0.0
      %1564 = vmatpush1.msra.mxu0 %v1531
      %1565 = vmatprep.subr.mxu0 0.0
      %1566 = vmatpush1.msra.mxu0 %v1530
      %1567 = vmatprep.subr.mxu0 0.0
      %1568 = vmatpush1.msra.mxu0 %v1529
      %1569 = vmatprep.subr.mxu0 0.0
      %1570 = vmatpush1.msra.mxu0 %v1528
      %1571 = vmatprep.subr.mxu0 0.0
      %1572 = vmatpush1.msra.mxu0 %v1527
      %1573 = vmatprep.subr.mxu0 0.0
      %1574 = vmatpush1.msra.mxu0 %v1526
      %1575 = vmatprep.subr.mxu0 0.0
      %1576 = vmatpush1.msra.mxu0 %v1525
      %1577 = vmatprep.subr.mxu0 0.0
      %1578 = vmatpush1.msra.mxu0 %v1524
      %1579 = vmatprep.subr.mxu0 0.0
      %1580 = vmatpush2.msra.mxu0 0.0
      %1581 = vmatprep.subr.mxu0 0.0
      %1582 = vmatpush2.msra.mxu0 0.0
      %1583 = vmatprep.subr.mxu0 0.0
      %1584 = vmatpush2.msra.mxu0 0.0
      %1585 = vmatprep.subr.mxu0 0.0
      %1586 = vmatpush2.msra.mxu0 0.0
      %1587 = vmatprep.subr.mxu0 0.0
      %1588 = vmatpush2.msra.mxu0 0.0
      %1589 = vmatprep.subr.mxu0 0.0
      %1590 = vmatpush2.msra.mxu0 0.0
      %1591 = vmatprep.subr.mxu0 0.0
      %1592 = vmatpush2.msra.mxu0 0.0
      %1593 = vmatprep.subr.mxu0 0.0
      %1594 = vmatpush2.msra.mxu0 0.0
      %1595 = vmatprep.subr.mxu0 0.0
      %1596 = vmatpush2.msra.mxu0 0.0
      %1597 = vmatprep.subr.mxu0 0.0
      %1598 = vmatpush2.msra.mxu0 0.0
      %1599 = vmatprep.subr.mxu0 0.0
      %1600 = vmatpush2.msra.mxu0 0.0
      %1601 = vmatprep.subr.mxu0 0.0
      %1602 = vmatpush2.msra.mxu0 0.0
      %1603 = vmatprep.subr.mxu0 0.0
      %1604 = vmatpush2.msra.mxu0 0.0
      %1605 = vmatprep.subr.mxu0 0.0
      %1606 = vmatpush2.msra.mxu0 0.0
      %1607 = vmatprep.subr.mxu0 0.0
      %1608 = vmatpush2.msra.mxu0 0.0
      %1609 = vmatprep.subr.mxu0 0.0
      %1610 = vmatpush2.msra.mxu0 0.0
      %1611 = vmatprep.mubr.f32.mxu0 0.0
      %1612 = vmatmul.mubr.f32.gmra.mxu0 %v1521
      %v1613 = vpop.f32.mrf.mxu0
      %v1614 = vadd.f32 %v1545, %v1613
      %v1615 = vpop.f32.mrf.mxu0
      %1616 = vmatprep.mubr.f32.mxu0 0.0
      %1617 = vmatmul.mubr.f32.gmra.mxu0 %v1522
      %v1618 = vpop.f32.mrf.mxu0
      %v1619 = vadd.f32 %v1545, %v1618
      %v1620 = vpop.f32.mrf.mxu0
      %1621 = vmatprep.mubr.f32.mxu0 0.0
      %1622 = vmatmul.mubr.f32.gmra.mxu0 %v1523
      %v1623 = vpop.f32.mrf.mxu0
      %v1624 = vadd.f32 %v1545, %v1623
      %v1625 = vpop.f32.mrf.mxu0
      %1626 = vdwg.mxu0
      %v1627 = vadd.f32 %v1355, %v1614
      %v1628 = vadd.f32 %v1356, %v1619
      %v1629 = vadd.f32 %v1357, %v1624
      %v1630 = vsel %vm550, %v1627, 0.0
      %1631 = vadd.xlane.f32.xlu0 %v1630
      %v1632 = vpop.xlane.xlu0 %1631
      %v1633 = vsel %vm550, %v1628, 0.0
      %1634 = vadd.xlane.f32.xlu0 %v1633
      %v1635 = vpop.xlane.xlu0 %1634
      %v1636 = vsel %vm550, %v1629, 0.0
      %1637 = vadd.xlane.f32.xlu0 %v1636
      %v1638 = vpop.xlane.xlu0 %1637
      %v1639 = vmul.f32 %v1632, %v560
      %v1640 = vmul.f32 %v1635, %v560
      %v1641 = vmul.f32 %v1638, %v560
      %v1642 = vsub.f32 %v1627, %v1639
      %v1643 = vsub.f32 %v1628, %v1640
      %v1644 = vsub.f32 %v1629, %v1641
      %v1645 = vmul.f32 %v1642, %v1642
      %v1646 = vmul.f32 %v1643, %v1643
      %v1647 = vmul.f32 %v1644, %v1644
      %v1648 = vsel %vm550, %v1645, 0.0
      %1649 = vadd.xlane.f32.xlu0 %v1648
      %v1650 = vpop.xlane.xlu0 %1649
      %v1651 = vsel %vm550, %v1646, 0.0
      %1652 = vadd.xlane.f32.xlu0 %v1651
      %v1653 = vpop.xlane.xlu0 %1652
      %v1654 = vsel %vm550, %v1647, 0.0
      %1655 = vadd.xlane.f32.xlu0 %v1654
      %v1656 = vpop.xlane.xlu0 %1655
      %v1657 = vmul.f32 %v1650, %v560
      %v1658 = vmul.f32 %v1653, %v560
      %v1659 = vmul.f32 %v1656, %v560
      %v1660 = vadd.f32 %v1657, 1e-06
      %v1661 = vadd.f32 %v1658, 1e-06
      %v1662 = vadd.f32 %v1659, 1e-06
      %v1663 = vrsqrt.pop %v1660
      %v1664 = vrsqrt.pop %v1661
      %v1665 = vrsqrt.pop %v1662
      %v1666 = vmul.f32 %v1642, %v1663
      %v1667 = vmul.f32 %v1643, %v1664
      %v1668 = vmul.f32 %v1644, %v1665
      %s1669 = scalar_lea.vmem %s3, 32
      %v1670 = vld [vmem:[%s1669] sm:$0xff]
      %v1671 = vld [vmem:[%s1669 + $0x8] sm:$0xff]
      %v1672 = vld [vmem:[%s1669 + $0x10] sm:$0xff]
      %v1673 = vld [vmem:[%s1669 + $0x18] sm:$0xff]
      %s1674 = scalar_lea.vmem %s4, 1
      %v1675 = vld [vmem:[%s1674] sm:$0x1]
      %v1677 = vlaneseq
      %v1678 = vshrl.u32 %v1677, 7
      %v1679 = vsub.s32 0, %v1678
      %v1680 = vrot.slane %v1675, %v1679
      %v1683 = vsel %vm550, %v1666, 0
      %v1686 = vsel %vm550, %v1667, 0
      %v1689 = vsel %vm550, %v1668, 0
      %1691 = vmatprep.subr.mxu0 0.0
      %1692 = vmatpush1.msra.mxu0 0.0
      %1693 = vmatprep.subr.mxu0 0.0
      %1694 = vmatpush1.msra.mxu0 0.0
      %1695 = vmatprep.subr.mxu0 0.0
      %1696 = vmatpush1.msra.mxu0 0.0
      %1697 = vmatprep.subr.mxu0 0.0
      %1698 = vmatpush1.msra.mxu0 0.0
      %1699 = vmatprep.subr.mxu0 0.0
      %1700 = vmatpush1.msra.mxu0 0.0
      %1701 = vmatprep.subr.mxu0 0.0
      %1702 = vmatpush1.msra.mxu0 0.0
      %1703 = vmatprep.subr.mxu0 0.0
      %1704 = vmatpush1.msra.mxu0 0.0
      %1705 = vmatprep.subr.mxu0 0.0
      %1706 = vmatpush1.msra.mxu0 0.0
      %1707 = vmatprep.subr.mxu0 0.0
      %1708 = vmatpush1.msra.mxu0 0.0
      %1709 = vmatprep.subr.mxu0 0.0
      %1710 = vmatpush1.msra.mxu0 0.0
      %1711 = vmatprep.subr.mxu0 0.0
      %1712 = vmatpush1.msra.mxu0 0.0
      %1713 = vmatprep.subr.mxu0 0.0
      %1714 = vmatpush1.msra.mxu0 0.0
      %1715 = vmatprep.subr.mxu0 0.0
      %1716 = vmatpush1.msra.mxu0 %v1673
      %1717 = vmatprep.subr.mxu0 0.0
      %1718 = vmatpush1.msra.mxu0 %v1672
      %1719 = vmatprep.subr.mxu0 0.0
      %1720 = vmatpush1.msra.mxu0 %v1671
      %1721 = vmatprep.subr.mxu0 0.0
      %1722 = vmatpush1.msra.mxu0 %v1670
      %1723 = vmatprep.subr.mxu0 0.0
      %1724 = vmatpush2.msra.mxu0 0.0
      %1725 = vmatprep.subr.mxu0 0.0
      %1726 = vmatpush2.msra.mxu0 0.0
      %1727 = vmatprep.subr.mxu0 0.0
      %1728 = vmatpush2.msra.mxu0 0.0
      %1729 = vmatprep.subr.mxu0 0.0
      %1730 = vmatpush2.msra.mxu0 0.0
      %1731 = vmatprep.subr.mxu0 0.0
      %1732 = vmatpush2.msra.mxu0 0.0
      %1733 = vmatprep.subr.mxu0 0.0
      %1734 = vmatpush2.msra.mxu0 0.0
      %1735 = vmatprep.subr.mxu0 0.0
      %1736 = vmatpush2.msra.mxu0 0.0
      %1737 = vmatprep.subr.mxu0 0.0
      %1738 = vmatpush2.msra.mxu0 0.0
      %1739 = vmatprep.subr.mxu0 0.0
      %1740 = vmatpush2.msra.mxu0 0.0
      %1741 = vmatprep.subr.mxu0 0.0
      %1742 = vmatpush2.msra.mxu0 0.0
      %1743 = vmatprep.subr.mxu0 0.0
      %1744 = vmatpush2.msra.mxu0 0.0
      %1745 = vmatprep.subr.mxu0 0.0
      %1746 = vmatpush2.msra.mxu0 0.0
      %1747 = vmatprep.subr.mxu0 0.0
      %1748 = vmatpush2.msra.mxu0 0.0
      %1749 = vmatprep.subr.mxu0 0.0
      %1750 = vmatpush2.msra.mxu0 0.0
      %1751 = vmatprep.subr.mxu0 0.0
      %1752 = vmatpush2.msra.mxu0 0.0
      %1753 = vmatprep.subr.mxu0 0.0
      %1754 = vmatpush2.msra.mxu0 0.0
      %1755 = vmatprep.mubr.f32.mxu0 0.0
      %1756 = vmatmul.mubr.f32.gmra.mxu0 %v1683
      %v1757 = vpop.f32.mrf.mxu0
      %v1758 = vadd.f32 %v1680, %v1757
      %v1759 = vpop.f32.mrf.mxu0
      %1760 = vmatprep.mubr.f32.mxu0 0.0
      %1761 = vmatmul.mubr.f32.gmra.mxu0 %v1686
      %v1762 = vpop.f32.mrf.mxu0
      %v1763 = vadd.f32 %v1680, %v1762
      %v1764 = vpop.f32.mrf.mxu0
      %1765 = vmatprep.mubr.f32.mxu0 0.0
      %1766 = vmatmul.mubr.f32.gmra.mxu0 %v1689
      %v1767 = vpop.f32.mrf.mxu0
      %v1768 = vadd.f32 %v1680, %v1767
      %v1769 = vpop.f32.mrf.mxu0
      %1770 = vdwg.mxu0
      %s1771 = scalar_lea.vmem %s5, 32
      %v1772 = vld [vmem:[%s1771] sm:$0xff]
      %v1773 = vld [vmem:[%s1771 + $0x8] sm:$0xff]
      %v1774 = vld [vmem:[%s1771 + $0x10] sm:$0xff]
      %v1775 = vld [vmem:[%s1771 + $0x18] sm:$0xff]
      %1779 = vrot.lane.b32.xlu0 %v1758, 96
      %v1780 = vpop.permute.xlu0 %1779
      %1781 = vrot.lane.b32.xlu0 %v1763, 96
      %v1782 = vpop.permute.xlu0 %1781
      %1783 = vrot.lane.b32.xlu0 %v1768, 96
      %v1784 = vpop.permute.xlu0 %1783
      %v1785 = vsel %vm704, %v1758, 0
      %v1787 = vsel %vm704, %v1763, 0
      %v1789 = vsel %vm704, %v1768, 0
      %v1791 = vsel %vm704, %v1780, 0
      %v1793 = vsel %vm704, %v1782, 0
      %v1795 = vsel %vm704, %v1784, 0
      %1797 = vmatprep.subr.mxu0 0.0
      %1798 = vmatpush1.xpose.msra.mxu0 0.0
      %1799 = vmatprep.subr.mxu0 0.0
      %1800 = vmatpush1.xpose.msra.mxu0 0.0
      %1801 = vmatprep.subr.mxu0 0.0
      %1802 = vmatpush1.xpose.msra.mxu0 0.0
      %1803 = vmatprep.subr.mxu0 0.0
      %1804 = vmatpush1.xpose.msra.mxu0 0.0
      %1805 = vmatprep.subr.mxu0 0.0
      %1806 = vmatpush1.xpose.msra.mxu0 0.0
      %1807 = vmatprep.subr.mxu0 0.0
      %1808 = vmatpush1.xpose.msra.mxu0 0.0
      %1809 = vmatprep.subr.mxu0 0.0
      %1810 = vmatpush1.xpose.msra.mxu0 0.0
      %1811 = vmatprep.subr.mxu0 0.0
      %1812 = vmatpush1.xpose.msra.mxu0 0.0
      %1813 = vmatprep.subr.mxu0 0.0
      %1814 = vmatpush1.xpose.msra.mxu0 0.0
      %1815 = vmatprep.subr.mxu0 0.0
      %1816 = vmatpush1.xpose.msra.mxu0 0.0
      %1817 = vmatprep.subr.mxu0 0.0
      %1818 = vmatpush1.xpose.msra.mxu0 0.0
      %1819 = vmatprep.subr.mxu0 0.0
      %1820 = vmatpush1.xpose.msra.mxu0 0.0
      %1821 = vmatprep.subr.mxu0 0.0
      %1822 = vmatpush1.xpose.msra.mxu0 0.0
      %1823 = vmatprep.subr.mxu0 0.0
      %1824 = vmatpush1.xpose.msra.mxu0 %v1795
      %1825 = vmatprep.subr.mxu0 0.0
      %1826 = vmatpush1.xpose.msra.mxu0 %v1793
      %1827 = vmatprep.subr.mxu0 0.0
      %1828 = vmatpush1.xpose.msra.mxu0 %v1791
      %1829 = vmatprep.subr.mxu0 0.0
      %1830 = vmatpush2.xpose.msra.mxu0 0.0
      %1831 = vmatprep.subr.mxu0 0.0
      %1832 = vmatpush2.xpose.msra.mxu0 0.0
      %1833 = vmatprep.subr.mxu0 0.0
      %1834 = vmatpush2.xpose.msra.mxu0 0.0
      %1835 = vmatprep.subr.mxu0 0.0
      %1836 = vmatpush2.xpose.msra.mxu0 0.0
      %1837 = vmatprep.subr.mxu0 0.0
      %1838 = vmatpush2.xpose.msra.mxu0 0.0
      %1839 = vmatprep.subr.mxu0 0.0
      %1840 = vmatpush2.xpose.msra.mxu0 0.0
      %1841 = vmatprep.subr.mxu0 0.0
      %1842 = vmatpush2.xpose.msra.mxu0 0.0
      %1843 = vmatprep.subr.mxu0 0.0
      %1844 = vmatpush2.xpose.msra.mxu0 0.0
      %1845 = vmatprep.subr.mxu0 0.0
      %1846 = vmatpush2.xpose.msra.mxu0 0.0
      %1847 = vmatprep.subr.mxu0 0.0
      %1848 = vmatpush2.xpose.msra.mxu0 0.0
      %1849 = vmatprep.subr.mxu0 0.0
      %1850 = vmatpush2.xpose.msra.mxu0 0.0
      %1851 = vmatprep.subr.mxu0 0.0
      %1852 = vmatpush2.xpose.msra.mxu0 0.0
      %1853 = vmatprep.subr.mxu0 0.0
      %1854 = vmatpush2.xpose.msra.mxu0 0.0
      %1855 = vmatprep.subr.mxu0 0.0
      %1856 = vmatpush2.xpose.msra.mxu0 0.0
      %1857 = vmatprep.subr.mxu0 0.0
      %1858 = vmatpush2.xpose.msra.mxu0 0.0
      %1859 = vmatprep.subr.mxu0 0.0
      %1860 = vmatpush2.xpose.msra.mxu0 0.0
      %1861 = vmatprep.mubr.f32.mxu0 0.0
      %1862 = vmatmul.mubr.f32.gmra.mxu0 %v1785
      %v1863 = vpop.f32.mrf.mxu0
      %v1864 = vadd.f32 %v549, %v1863
      %v1865 = vpop.f32.mrf.mxu0
      %1866 = vmatprep.mubr.f32.mxu0 0.0
      %1867 = vmatmul.mubr.f32.gmra.mxu0 %v1787
      %v1868 = vpop.f32.mrf.mxu0
      %v1869 = vadd.f32 %v549, %v1868
      %v1870 = vpop.f32.mrf.mxu0
      %1871 = vmatprep.mubr.f32.mxu0 0.0
      %1872 = vmatmul.mubr.f32.gmra.mxu0 %v1789
      %v1873 = vpop.f32.mrf.mxu0
      %v1874 = vadd.f32 %v549, %v1873
      %v1875 = vpop.f32.mrf.mxu0
      %1876 = vdwg.mxu0
      %v1877 = vsel %vm797, %v1864, -inf
      %1878 = vmax.xlane.f32.xlu0 %v1877
      %v1879 = vpop.xlane.xlu0 %1878
      %v1880 = vsel %vm797, %v1869, -inf
      %1881 = vmax.xlane.f32.xlu0 %v1880
      %v1882 = vpop.xlane.xlu0 %1881
      %v1883 = vsel %vm797, %v1874, -inf
      %1884 = vmax.xlane.f32.xlu0 %v1883
      %v1885 = vpop.xlane.xlu0 %1884
      %v1886 = vsub.f32 %v1864, %v1879
      %v1887 = vsub.f32 %v1869, %v1882
      %v1888 = vsub.f32 %v1874, %v1885
      %v1889 = vmul.f32 %v1886, 1.442695
      %v1890 = vpow.pop %v1889
      %v1891 = vmul.f32 %v1887, 1.442695
      %v1892 = vpow.pop %v1891
      %v1893 = vmul.f32 %v1888, 1.442695
      %v1894 = vpow.pop %v1893
      %v1895 = vsel %vm797, %v1890, 0.0
      %1896 = vadd.xlane.f32.xlu0 %v1895
      %v1897 = vpop.xlane.xlu0 %1896
      %v1898 = vsel %vm797, %v1892, 0.0
      %1899 = vadd.xlane.f32.xlu0 %v1898
      %v1900 = vpop.xlane.xlu0 %1899
      %v1901 = vsel %vm797, %v1894, 0.0
      %1902 = vadd.xlane.f32.xlu0 %v1901
      %v1903 = vpop.xlane.xlu0 %1902
      %v1904 = vrcp.pop %v1897
      %v1905 = vrcp.pop %v1900
      %v1906 = vrcp.pop %v1903
      %v1907 = vmul.f32 %v1890, %v1904
      %v1908 = vmul.f32 %v1892, %v1905
      %v1909 = vmul.f32 %v1894, %v1906
      %1910 = vrot.lane.b32.xlu0 %v1758, 64
      %v1911 = vpop.permute.xlu0 %1910
      %1912 = vrot.lane.b32.xlu0 %v1763, 64
      %v1913 = vpop.permute.xlu0 %1912
      %1914 = vrot.lane.b32.xlu0 %v1768, 64
      %v1915 = vpop.permute.xlu0 %1914
      %v1920 = vsel %vm797, %v1907, 0
      %v1923 = vsel %vm797, %v1908, 0
      %v1926 = vsel %vm797, %v1909, 0
      %1928 = vmatprep.subr.mxu0 0.0
      %1929 = vmatpush1.msra.mxu0 0.0
      %1930 = vmatprep.subr.mxu0 0.0
      %1931 = vmatpush1.msra.mxu0 0.0
      %1932 = vmatprep.subr.mxu0 0.0
      %1933 = vmatpush1.msra.mxu0 0.0
      %1934 = vmatprep.subr.mxu0 0.0
      %1935 = vmatpush1.msra.mxu0 0.0
      %1936 = vmatprep.subr.mxu0 0.0
      %1937 = vmatpush1.msra.mxu0 0.0
      %1938 = vmatprep.subr.mxu0 0.0
      %1939 = vmatpush1.msra.mxu0 0.0
      %1940 = vmatprep.subr.mxu0 0.0
      %1941 = vmatpush1.msra.mxu0 0.0
      %1942 = vmatprep.subr.mxu0 0.0
      %1943 = vmatpush1.msra.mxu0 0.0
      %1944 = vmatprep.subr.mxu0 0.0
      %1945 = vmatpush1.msra.mxu0 0.0
      %1946 = vmatprep.subr.mxu0 0.0
      %1947 = vmatpush1.msra.mxu0 0.0
      %1948 = vmatprep.subr.mxu0 0.0
      %1949 = vmatpush1.msra.mxu0 0.0
      %1950 = vmatprep.subr.mxu0 0.0
      %1951 = vmatpush1.msra.mxu0 0.0
      %1952 = vmatprep.subr.mxu0 0.0
      %1953 = vmatpush1.msra.mxu0 0.0
      %1954 = vmatprep.subr.mxu0 0.0
      %1955 = vmatpush1.msra.mxu0 %v1915
      %1956 = vmatprep.subr.mxu0 0.0
      %1957 = vmatpush1.msra.mxu0 %v1913
      %1958 = vmatprep.subr.mxu0 0.0
      %1959 = vmatpush1.msra.mxu0 %v1911
      %1960 = vmatprep.subr.mxu0 0.0
      %1961 = vmatpush2.msra.mxu0 0.0
      %1962 = vmatprep.subr.mxu0 0.0
      %1963 = vmatpush2.msra.mxu0 0.0
      %1964 = vmatprep.subr.mxu0 0.0
      %1965 = vmatpush2.msra.mxu0 0.0
      %1966 = vmatprep.subr.mxu0 0.0
      %1967 = vmatpush2.msra.mxu0 0.0
      %1968 = vmatprep.subr.mxu0 0.0
      %1969 = vmatpush2.msra.mxu0 0.0
      %1970 = vmatprep.subr.mxu0 0.0
      %1971 = vmatpush2.msra.mxu0 0.0
      %1972 = vmatprep.subr.mxu0 0.0
      %1973 = vmatpush2.msra.mxu0 0.0
      %1974 = vmatprep.subr.mxu0 0.0
      %1975 = vmatpush2.msra.mxu0 0.0
      %1976 = vmatprep.subr.mxu0 0.0
      %1977 = vmatpush2.msra.mxu0 0.0
      %1978 = vmatprep.subr.mxu0 0.0
      %1979 = vmatpush2.msra.mxu0 0.0
      %1980 = vmatprep.subr.mxu0 0.0
      %1981 = vmatpush2.msra.mxu0 0.0
      %1982 = vmatprep.subr.mxu0 0.0
      %1983 = vmatpush2.msra.mxu0 0.0
      %1984 = vmatprep.subr.mxu0 0.0
      %1985 = vmatpush2.msra.mxu0 0.0
      %1986 = vmatprep.subr.mxu0 0.0
      %1987 = vmatpush2.msra.mxu0 0.0
      %1988 = vmatprep.subr.mxu0 0.0
      %1989 = vmatpush2.msra.mxu0 0.0
      %1990 = vmatprep.subr.mxu0 0.0
      %1991 = vmatpush2.msra.mxu0 0.0
      %1992 = vmatprep.mubr.f32.mxu0 0.0
      %1993 = vmatmul.mubr.f32.gmra.mxu0 %v1920
      %v1994 = vpop.f32.mrf.mxu0
      %v1995 = vadd.f32 0.0, %v1994
      %v1996 = vpop.f32.mrf.mxu0
      %1997 = vmatprep.mubr.f32.mxu0 0.0
      %1998 = vmatmul.mubr.f32.gmra.mxu0 %v1923
      %v1999 = vpop.f32.mrf.mxu0
      %v2000 = vadd.f32 0.0, %v1999
      %v2001 = vpop.f32.mrf.mxu0
      %2002 = vmatprep.mubr.f32.mxu0 0.0
      %2003 = vmatmul.mubr.f32.gmra.mxu0 %v1926
      %v2004 = vpop.f32.mrf.mxu0
      %v2005 = vadd.f32 0.0, %v2004
      %v2006 = vpop.f32.mrf.mxu0
      %2007 = vdwg.mxu0
      %v2009 = vsel %vm704, %v1995, 0
      %v2012 = vsel %vm704, %v2000, 0
      %v2015 = vsel %vm704, %v2005, 0
      %2017 = vmatprep.subr.mxu0 0.0
      %2018 = vmatpush1.msra.mxu0 0.0
      %2019 = vmatprep.subr.mxu0 0.0
      %2020 = vmatpush1.msra.mxu0 0.0
      %2021 = vmatprep.subr.mxu0 0.0
      %2022 = vmatpush1.msra.mxu0 0.0
      %2023 = vmatprep.subr.mxu0 0.0
      %2024 = vmatpush1.msra.mxu0 0.0
      %2025 = vmatprep.subr.mxu0 0.0
      %2026 = vmatpush1.msra.mxu0 0.0
      %2027 = vmatprep.subr.mxu0 0.0
      %2028 = vmatpush1.msra.mxu0 0.0
      %2029 = vmatprep.subr.mxu0 0.0
      %2030 = vmatpush1.msra.mxu0 0.0
      %2031 = vmatprep.subr.mxu0 0.0
      %2032 = vmatpush1.msra.mxu0 0.0
      %2033 = vmatprep.subr.mxu0 0.0
      %2034 = vmatpush1.msra.mxu0 0.0
      %2035 = vmatprep.subr.mxu0 0.0
      %2036 = vmatpush1.msra.mxu0 0.0
      %2037 = vmatprep.subr.mxu0 0.0
      %2038 = vmatpush1.msra.mxu0 0.0
      %2039 = vmatprep.subr.mxu0 0.0
      %2040 = vmatpush1.msra.mxu0 0.0
      %2041 = vmatprep.subr.mxu0 0.0
      %2042 = vmatpush1.msra.mxu0 0.0
      %2043 = vmatprep.subr.mxu0 0.0
      %2044 = vmatpush1.msra.mxu0 0.0
      %2045 = vmatprep.subr.mxu0 0.0
      %2046 = vmatpush1.msra.mxu0 %v1773
      %2047 = vmatprep.subr.mxu0 0.0
      %2048 = vmatpush1.msra.mxu0 %v1772
      %2049 = vmatprep.subr.mxu0 0.0
      %2050 = vmatpush2.msra.mxu0 0.0
      %2051 = vmatprep.subr.mxu0 0.0
      %2052 = vmatpush2.msra.mxu0 0.0
      %2053 = vmatprep.subr.mxu0 0.0
      %2054 = vmatpush2.msra.mxu0 0.0
      %2055 = vmatprep.subr.mxu0 0.0
      %2056 = vmatpush2.msra.mxu0 0.0
      %2057 = vmatprep.subr.mxu0 0.0
      %2058 = vmatpush2.msra.mxu0 0.0
      %2059 = vmatprep.subr.mxu0 0.0
      %2060 = vmatpush2.msra.mxu0 0.0
      %2061 = vmatprep.subr.mxu0 0.0
      %2062 = vmatpush2.msra.mxu0 0.0
      %2063 = vmatprep.subr.mxu0 0.0
      %2064 = vmatpush2.msra.mxu0 0.0
      %2065 = vmatprep.subr.mxu0 0.0
      %2066 = vmatpush2.msra.mxu0 0.0
      %2067 = vmatprep.subr.mxu0 0.0
      %2068 = vmatpush2.msra.mxu0 0.0
      %2069 = vmatprep.subr.mxu0 0.0
      %2070 = vmatpush2.msra.mxu0 0.0
      %2071 = vmatprep.subr.mxu0 0.0
      %2072 = vmatpush2.msra.mxu0 0.0
      %2073 = vmatprep.subr.mxu0 0.0
      %2074 = vmatpush2.msra.mxu0 0.0
      %2075 = vmatprep.subr.mxu0 0.0
      %2076 = vmatpush2.msra.mxu0 0.0
      %2077 = vmatprep.subr.mxu0 0.0
      %2078 = vmatpush2.msra.mxu0 0.0
      %2079 = vmatprep.subr.mxu0 0.0
      %2080 = vmatpush2.msra.mxu0 0.0
      %2081 = vmatprep.mubr.f32.mxu0 0.0
      %2082 = vmatmul.mubr.f32.gmra.mxu0 %v2009
      %v2083 = vpop.f32.mrf.mxu0
      %v2084 = vadd.f32 0.0, %v2083
      %v2085 = vpop.f32.mrf.mxu0
      %2086 = vmatprep.mubr.f32.mxu0 0.0
      %2087 = vmatmul.mubr.f32.gmra.mxu0 %v2012
      %v2088 = vpop.f32.mrf.mxu0
      %v2089 = vadd.f32 0.0, %v2088
      %v2090 = vpop.f32.mrf.mxu0
      %2091 = vmatprep.mubr.f32.mxu0 0.0
      %2092 = vmatmul.mubr.f32.gmra.mxu0 %v2015
      %v2093 = vpop.f32.mrf.mxu0
      %v2094 = vadd.f32 0.0, %v2093
      %v2095 = vpop.f32.mrf.mxu0
      %2096 = vdwg.mxu0
      %v2097 = vadd.f32 %v1627, %v2084
      %v2098 = vadd.f32 %v1628, %v2089
      %v2099 = vadd.f32 %v1629, %v2094
      %2100 = vrot.lane.b32.xlu0 %v1758, 112
      %v2101 = vpop.permute.xlu0 %2100
      %2102 = vrot.lane.b32.xlu0 %v1763, 112
      %v2103 = vpop.permute.xlu0 %2102
      %2104 = vrot.lane.b32.xlu0 %v1768, 112
      %v2105 = vpop.permute.xlu0 %2104
      %2106 = vrot.lane.b32.xlu0 %v1758, 80
      %v2107 = vpop.permute.xlu0 %2106
      %2108 = vrot.lane.b32.xlu0 %v1763, 80
      %v2109 = vpop.permute.xlu0 %2108
      %2110 = vrot.lane.b32.xlu0 %v1768, 80
      %v2111 = vpop.permute.xlu0 %2110
      %v2112 = vsel %vm704, %v2101, 0
      %v2114 = vsel %vm704, %v2103, 0
      %v2116 = vsel %vm704, %v2105, 0
      %v2118 = vsel %vm704, %v2107, 0
      %v2120 = vsel %vm704, %v2109, 0
      %v2122 = vsel %vm704, %v2111, 0
      %2124 = vmatprep.subr.mxu0 0.0
      %2125 = vmatpush1.xpose.msra.mxu0 0.0
      %2126 = vmatprep.subr.mxu0 0.0
      %2127 = vmatpush1.xpose.msra.mxu0 0.0
      %2128 = vmatprep.subr.mxu0 0.0
      %2129 = vmatpush1.xpose.msra.mxu0 0.0
      %2130 = vmatprep.subr.mxu0 0.0
      %2131 = vmatpush1.xpose.msra.mxu0 0.0
      %2132 = vmatprep.subr.mxu0 0.0
      %2133 = vmatpush1.xpose.msra.mxu0 0.0
      %2134 = vmatprep.subr.mxu0 0.0
      %2135 = vmatpush1.xpose.msra.mxu0 0.0
      %2136 = vmatprep.subr.mxu0 0.0
      %2137 = vmatpush1.xpose.msra.mxu0 0.0
      %2138 = vmatprep.subr.mxu0 0.0
      %2139 = vmatpush1.xpose.msra.mxu0 0.0
      %2140 = vmatprep.subr.mxu0 0.0
      %2141 = vmatpush1.xpose.msra.mxu0 0.0
      %2142 = vmatprep.subr.mxu0 0.0
      %2143 = vmatpush1.xpose.msra.mxu0 0.0
      %2144 = vmatprep.subr.mxu0 0.0
      %2145 = vmatpush1.xpose.msra.mxu0 0.0
      %2146 = vmatprep.subr.mxu0 0.0
      %2147 = vmatpush1.xpose.msra.mxu0 0.0
      %2148 = vmatprep.subr.mxu0 0.0
      %2149 = vmatpush1.xpose.msra.mxu0 0.0
      %2150 = vmatprep.subr.mxu0 0.0
      %2151 = vmatpush1.xpose.msra.mxu0 %v2122
      %2152 = vmatprep.subr.mxu0 0.0
      %2153 = vmatpush1.xpose.msra.mxu0 %v2120
      %2154 = vmatprep.subr.mxu0 0.0
      %2155 = vmatpush1.xpose.msra.mxu0 %v2118
      %2156 = vmatprep.subr.mxu0 0.0
      %2157 = vmatpush2.xpose.msra.mxu0 0.0
      %2158 = vmatprep.subr.mxu0 0.0
      %2159 = vmatpush2.xpose.msra.mxu0 0.0
      %2160 = vmatprep.subr.mxu0 0.0
      %2161 = vmatpush2.xpose.msra.mxu0 0.0
      %2162 = vmatprep.subr.mxu0 0.0
      %2163 = vmatpush2.xpose.msra.mxu0 0.0
      %2164 = vmatprep.subr.mxu0 0.0
      %2165 = vmatpush2.xpose.msra.mxu0 0.0
      %2166 = vmatprep.subr.mxu0 0.0
      %2167 = vmatpush2.xpose.msra.mxu0 0.0
      %2168 = vmatprep.subr.mxu0 0.0
      %2169 = vmatpush2.xpose.msra.mxu0 0.0
      %2170 = vmatprep.subr.mxu0 0.0
      %2171 = vmatpush2.xpose.msra.mxu0 0.0
      %2172 = vmatprep.subr.mxu0 0.0
      %2173 = vmatpush2.xpose.msra.mxu0 0.0
      %2174 = vmatprep.subr.mxu0 0.0
      %2175 = vmatpush2.xpose.msra.mxu0 0.0
      %2176 = vmatprep.subr.mxu0 0.0
      %2177 = vmatpush2.xpose.msra.mxu0 0.0
      %2178 = vmatprep.subr.mxu0 0.0
      %2179 = vmatpush2.xpose.msra.mxu0 0.0
      %2180 = vmatprep.subr.mxu0 0.0
      %2181 = vmatpush2.xpose.msra.mxu0 0.0
      %2182 = vmatprep.subr.mxu0 0.0
      %2183 = vmatpush2.xpose.msra.mxu0 0.0
      %2184 = vmatprep.subr.mxu0 0.0
      %2185 = vmatpush2.xpose.msra.mxu0 0.0
      %2186 = vmatprep.subr.mxu0 0.0
      %2187 = vmatpush2.xpose.msra.mxu0 0.0
      %2188 = vmatprep.mubr.f32.mxu0 0.0
      %2189 = vmatmul.mubr.f32.gmra.mxu0 %v2112
      %v2190 = vpop.f32.mrf.mxu0
      %v2191 = vadd.f32 %v549, %v2190
      %v2192 = vpop.f32.mrf.mxu0
      %2193 = vmatprep.mubr.f32.mxu0 0.0
      %2194 = vmatmul.mubr.f32.gmra.mxu0 %v2114
      %v2195 = vpop.f32.mrf.mxu0
      %v2196 = vadd.f32 %v549, %v2195
      %v2197 = vpop.f32.mrf.mxu0
      %2198 = vmatprep.mubr.f32.mxu0 0.0
      %2199 = vmatmul.mubr.f32.gmra.mxu0 %v2116
      %v2200 = vpop.f32.mrf.mxu0
      %v2201 = vadd.f32 %v549, %v2200
      %v2202 = vpop.f32.mrf.mxu0
      %2203 = vdwg.mxu0
      %v2204 = vsel %vm797, %v2191, -inf
      %2205 = vmax.xlane.f32.xlu0 %v2204
      %v2206 = vpop.xlane.xlu0 %2205
      %v2207 = vsel %vm797, %v2196, -inf
      %2208 = vmax.xlane.f32.xlu0 %v2207
      %v2209 = vpop.xlane.xlu0 %2208
      %v2210 = vsel %vm797, %v2201, -inf
      %2211 = vmax.xlane.f32.xlu0 %v2210
      %v2212 = vpop.xlane.xlu0 %2211
      %v2213 = vsub.f32 %v2191, %v2206
      %v2214 = vsub.f32 %v2196, %v2209
      %v2215 = vsub.f32 %v2201, %v2212
      %v2216 = vmul.f32 %v2213, 1.442695
      %v2217 = vpow.pop %v2216
      %v2218 = vmul.f32 %v2214, 1.442695
      %v2219 = vpow.pop %v2218
      %v2220 = vmul.f32 %v2215, 1.442695
      %v2221 = vpow.pop %v2220
      %v2222 = vsel %vm797, %v2217, 0.0
      %2223 = vadd.xlane.f32.xlu0 %v2222
      %v2224 = vpop.xlane.xlu0 %2223
      %v2225 = vsel %vm797, %v2219, 0.0
      %2226 = vadd.xlane.f32.xlu0 %v2225
      %v2227 = vpop.xlane.xlu0 %2226
      %v2228 = vsel %vm797, %v2221, 0.0
      %2229 = vadd.xlane.f32.xlu0 %v2228
      %v2230 = vpop.xlane.xlu0 %2229
      %v2231 = vrcp.pop %v2224
      %v2232 = vrcp.pop %v2227
      %v2233 = vrcp.pop %v2230
      %v2234 = vmul.f32 %v2217, %v2231
      %v2235 = vmul.f32 %v2219, %v2232
      %v2236 = vmul.f32 %v2221, %v2233
      %2237 = vrot.lane.b32.xlu0 %v1758, 48
      %v2238 = vpop.permute.xlu0 %2237
      %2239 = vrot.lane.b32.xlu0 %v1763, 48
      %v2240 = vpop.permute.xlu0 %2239
      %2241 = vrot.lane.b32.xlu0 %v1768, 48
      %v2242 = vpop.permute.xlu0 %2241
      %v2247 = vsel %vm797, %v2234, 0
      %v2250 = vsel %vm797, %v2235, 0
      %v2253 = vsel %vm797, %v2236, 0
      %2255 = vmatprep.subr.mxu0 0.0
      %2256 = vmatpush1.msra.mxu0 0.0
      %2257 = vmatprep.subr.mxu0 0.0
      %2258 = vmatpush1.msra.mxu0 0.0
      %2259 = vmatprep.subr.mxu0 0.0
      %2260 = vmatpush1.msra.mxu0 0.0
      %2261 = vmatprep.subr.mxu0 0.0
      %2262 = vmatpush1.msra.mxu0 0.0
      %2263 = vmatprep.subr.mxu0 0.0
      %2264 = vmatpush1.msra.mxu0 0.0
      %2265 = vmatprep.subr.mxu0 0.0
      %2266 = vmatpush1.msra.mxu0 0.0
      %2267 = vmatprep.subr.mxu0 0.0
      %2268 = vmatpush1.msra.mxu0 0.0
      %2269 = vmatprep.subr.mxu0 0.0
      %2270 = vmatpush1.msra.mxu0 0.0
      %2271 = vmatprep.subr.mxu0 0.0
      %2272 = vmatpush1.msra.mxu0 0.0
      %2273 = vmatprep.subr.mxu0 0.0
      %2274 = vmatpush1.msra.mxu0 0.0
      %2275 = vmatprep.subr.mxu0 0.0
      %2276 = vmatpush1.msra.mxu0 0.0
      %2277 = vmatprep.subr.mxu0 0.0
      %2278 = vmatpush1.msra.mxu0 0.0
      %2279 = vmatprep.subr.mxu0 0.0
      %2280 = vmatpush1.msra.mxu0 0.0
      %2281 = vmatprep.subr.mxu0 0.0
      %2282 = vmatpush1.msra.mxu0 %v2242
      %2283 = vmatprep.subr.mxu0 0.0
      %2284 = vmatpush1.msra.mxu0 %v2240
      %2285 = vmatprep.subr.mxu0 0.0
      %2286 = vmatpush1.msra.mxu0 %v2238
      %2287 = vmatprep.subr.mxu0 0.0
      %2288 = vmatpush2.msra.mxu0 0.0
      %2289 = vmatprep.subr.mxu0 0.0
      %2290 = vmatpush2.msra.mxu0 0.0
      %2291 = vmatprep.subr.mxu0 0.0
      %2292 = vmatpush2.msra.mxu0 0.0
      %2293 = vmatprep.subr.mxu0 0.0
      %2294 = vmatpush2.msra.mxu0 0.0
      %2295 = vmatprep.subr.mxu0 0.0
      %2296 = vmatpush2.msra.mxu0 0.0
      %2297 = vmatprep.subr.mxu0 0.0
      %2298 = vmatpush2.msra.mxu0 0.0
      %2299 = vmatprep.subr.mxu0 0.0
      %2300 = vmatpush2.msra.mxu0 0.0
      %2301 = vmatprep.subr.mxu0 0.0
      %2302 = vmatpush2.msra.mxu0 0.0
      %2303 = vmatprep.subr.mxu0 0.0
      %2304 = vmatpush2.msra.mxu0 0.0
      %2305 = vmatprep.subr.mxu0 0.0
      %2306 = vmatpush2.msra.mxu0 0.0
      %2307 = vmatprep.subr.mxu0 0.0
      %2308 = vmatpush2.msra.mxu0 0.0
      %2309 = vmatprep.subr.mxu0 0.0
      %2310 = vmatpush2.msra.mxu0 0.0
      %2311 = vmatprep.subr.mxu0 0.0
      %2312 = vmatpush2.msra.mxu0 0.0
      %2313 = vmatprep.subr.mxu0 0.0
      %2314 = vmatpush2.msra.mxu0 0.0
      %2315 = vmatprep.subr.mxu0 0.0
      %2316 = vmatpush2.msra.mxu0 0.0
      %2317 = vmatprep.subr.mxu0 0.0
      %2318 = vmatpush2.msra.mxu0 0.0
      %2319 = vmatprep.mubr.f32.mxu0 0.0
      %2320 = vmatmul.mubr.f32.gmra.mxu0 %v2247
      %v2321 = vpop.f32.mrf.mxu0
      %v2322 = vadd.f32 0.0, %v2321
      %v2323 = vpop.f32.mrf.mxu0
      %2324 = vmatprep.mubr.f32.mxu0 0.0
      %2325 = vmatmul.mubr.f32.gmra.mxu0 %v2250
      %v2326 = vpop.f32.mrf.mxu0
      %v2327 = vadd.f32 0.0, %v2326
      %v2328 = vpop.f32.mrf.mxu0
      %2329 = vmatprep.mubr.f32.mxu0 0.0
      %2330 = vmatmul.mubr.f32.gmra.mxu0 %v2253
      %v2331 = vpop.f32.mrf.mxu0
      %v2332 = vadd.f32 0.0, %v2331
      %v2333 = vpop.f32.mrf.mxu0
      %2334 = vdwg.mxu0
      %v2336 = vsel %vm704, %v2322, 0
      %v2339 = vsel %vm704, %v2327, 0
      %v2342 = vsel %vm704, %v2332, 0
      %2344 = vmatprep.subr.mxu0 0.0
      %2345 = vmatpush1.msra.mxu0 0.0
      %2346 = vmatprep.subr.mxu0 0.0
      %2347 = vmatpush1.msra.mxu0 0.0
      %2348 = vmatprep.subr.mxu0 0.0
      %2349 = vmatpush1.msra.mxu0 0.0
      %2350 = vmatprep.subr.mxu0 0.0
      %2351 = vmatpush1.msra.mxu0 0.0
      %2352 = vmatprep.subr.mxu0 0.0
      %2353 = vmatpush1.msra.mxu0 0.0
      %2354 = vmatprep.subr.mxu0 0.0
      %2355 = vmatpush1.msra.mxu0 0.0
      %2356 = vmatprep.subr.mxu0 0.0
      %2357 = vmatpush1.msra.mxu0 0.0
      %2358 = vmatprep.subr.mxu0 0.0
      %2359 = vmatpush1.msra.mxu0 0.0
      %2360 = vmatprep.subr.mxu0 0.0
      %2361 = vmatpush1.msra.mxu0 0.0
      %2362 = vmatprep.subr.mxu0 0.0
      %2363 = vmatpush1.msra.mxu0 0.0
      %2364 = vmatprep.subr.mxu0 0.0
      %2365 = vmatpush1.msra.mxu0 0.0
      %2366 = vmatprep.subr.mxu0 0.0
      %2367 = vmatpush1.msra.mxu0 0.0
      %2368 = vmatprep.subr.mxu0 0.0
      %2369 = vmatpush1.msra.mxu0 0.0
      %2370 = vmatprep.subr.mxu0 0.0
      %2371 = vmatpush1.msra.mxu0 0.0
      %2372 = vmatprep.subr.mxu0 0.0
      %2373 = vmatpush1.msra.mxu0 %v1775
      %2374 = vmatprep.subr.mxu0 0.0
      %2375 = vmatpush1.msra.mxu0 %v1774
      %2376 = vmatprep.subr.mxu0 0.0
      %2377 = vmatpush2.msra.mxu0 0.0
      %2378 = vmatprep.subr.mxu0 0.0
      %2379 = vmatpush2.msra.mxu0 0.0
      %2380 = vmatprep.subr.mxu0 0.0
      %2381 = vmatpush2.msra.mxu0 0.0
      %2382 = vmatprep.subr.mxu0 0.0
      %2383 = vmatpush2.msra.mxu0 0.0
      %2384 = vmatprep.subr.mxu0 0.0
      %2385 = vmatpush2.msra.mxu0 0.0
      %2386 = vmatprep.subr.mxu0 0.0
      %2387 = vmatpush2.msra.mxu0 0.0
      %2388 = vmatprep.subr.mxu0 0.0
      %2389 = vmatpush2.msra.mxu0 0.0
      %2390 = vmatprep.subr.mxu0 0.0
      %2391 = vmatpush2.msra.mxu0 0.0
      %2392 = vmatprep.subr.mxu0 0.0
      %2393 = vmatpush2.msra.mxu0 0.0
      %2394 = vmatprep.subr.mxu0 0.0
      %2395 = vmatpush2.msra.mxu0 0.0
      %2396 = vmatprep.subr.mxu0 0.0
      %2397 = vmatpush2.msra.mxu0 0.0
      %2398 = vmatprep.subr.mxu0 0.0
      %2399 = vmatpush2.msra.mxu0 0.0
      %2400 = vmatprep.subr.mxu0 0.0
      %2401 = vmatpush2.msra.mxu0 0.0
      %2402 = vmatprep.subr.mxu0 0.0
      %2403 = vmatpush2.msra.mxu0 0.0
      %2404 = vmatprep.subr.mxu0 0.0
      %2405 = vmatpush2.msra.mxu0 0.0
      %2406 = vmatprep.subr.mxu0 0.0
      %2407 = vmatpush2.msra.mxu0 0.0
      %2408 = vmatprep.mubr.f32.mxu0 0.0
      %2409 = vmatmul.mubr.f32.gmra.mxu0 %v2336
      %v2410 = vpop.f32.mrf.mxu0
      %v2411 = vadd.f32 0.0, %v2410
      %v2412 = vpop.f32.mrf.mxu0
      %2413 = vmatprep.mubr.f32.mxu0 0.0
      %2414 = vmatmul.mubr.f32.gmra.mxu0 %v2339
      %v2415 = vpop.f32.mrf.mxu0
      %v2416 = vadd.f32 0.0, %v2415
      %v2417 = vpop.f32.mrf.mxu0
      %2418 = vmatprep.mubr.f32.mxu0 0.0
      %2419 = vmatmul.mubr.f32.gmra.mxu0 %v2342
      %v2420 = vpop.f32.mrf.mxu0
      %v2421 = vadd.f32 0.0, %v2420
      %v2422 = vpop.f32.mrf.mxu0
      %2423 = vdwg.mxu0
      %v2424 = vadd.f32 %v2097, %v2411
      %v2425 = vadd.f32 %v2098, %v2416
      %v2426 = vadd.f32 %v2099, %v2421
      %s2427 = scalar_lea.vmem %s6, 1
      %v2428 = vld [vmem:[%s2427] sm:$0x1]
      %v2430 = vlaneseq
      %v2431 = vshrl.u32 %v2430, 7
      %v2432 = vsub.s32 0, %v2431
      %v2433 = vrot.slane %v2428, %v2432
      %v2435 = vadd.f32 %v2424, %v2433
      %v2436 = vadd.f32 %v2425, %v2433
      %v2437 = vadd.f32 %v2426, %v2433
      %v2438 = vsel %vm550, %v2435, 0.0
      %2439 = vadd.xlane.f32.xlu0 %v2438
      %v2440 = vpop.xlane.xlu0 %2439
      %v2441 = vsel %vm550, %v2436, 0.0
      %2442 = vadd.xlane.f32.xlu0 %v2441
      %v2443 = vpop.xlane.xlu0 %2442
      %v2444 = vsel %vm550, %v2437, 0.0
      %2445 = vadd.xlane.f32.xlu0 %v2444
      %v2446 = vpop.xlane.xlu0 %2445
      %v2447 = vmul.f32 %v2440, %v560
      %v2448 = vmul.f32 %v2443, %v560
      %v2449 = vmul.f32 %v2446, %v560
      %v2450 = vsub.f32 %v2435, %v2447
      %v2451 = vsub.f32 %v2436, %v2448
      %v2452 = vsub.f32 %v2437, %v2449
      %v2453 = vmul.f32 %v2450, %v2450
      %v2454 = vmul.f32 %v2451, %v2451
      %v2455 = vmul.f32 %v2452, %v2452
      %v2456 = vsel %vm550, %v2453, 0.0
      %2457 = vadd.xlane.f32.xlu0 %v2456
      %v2458 = vpop.xlane.xlu0 %2457
      %v2459 = vsel %vm550, %v2454, 0.0
      %2460 = vadd.xlane.f32.xlu0 %v2459
      %v2461 = vpop.xlane.xlu0 %2460
      %v2462 = vsel %vm550, %v2455, 0.0
      %2463 = vadd.xlane.f32.xlu0 %v2462
      %v2464 = vpop.xlane.xlu0 %2463
      %v2465 = vmul.f32 %v2458, %v560
      %v2466 = vmul.f32 %v2461, %v560
      %v2467 = vmul.f32 %v2464, %v560
      %v2468 = vadd.f32 %v2465, 1e-06
      %v2469 = vadd.f32 %v2466, 1e-06
      %v2470 = vadd.f32 %v2467, 1e-06
      %v2471 = vrsqrt.pop %v2468
      %v2472 = vrsqrt.pop %v2469
      %v2473 = vrsqrt.pop %v2470
      %v2474 = vmul.f32 %v2450, %v2471
      %v2475 = vmul.f32 %v2451, %v2472
      %v2476 = vmul.f32 %v2452, %v2473
      %s2477 = scalar_lea.vmem %s7, 32
      %v2478 = vld [vmem:[%s2477] sm:$0xff]
      %v2479 = vld [vmem:[%s2477 + $0x8] sm:$0xff]
      %v2480 = vld [vmem:[%s2477 + $0x10] sm:$0xff]
      %v2481 = vld [vmem:[%s2477 + $0x18] sm:$0xff]
      %s2482 = scalar_lea.vmem %s8, 1
      %v2483 = vld [vmem:[%s2482] sm:$0x1]
      %v2485 = vlaneseq
      %v2486 = vshrl.u32 %v2485, 7
      %v2487 = vsub.s32 0, %v2486
      %v2488 = vrot.slane %v2483, %v2487
      %v2491 = vsel %vm550, %v2474, 0
      %v2494 = vsel %vm550, %v2475, 0
      %v2497 = vsel %vm550, %v2476, 0
      %2499 = vmatprep.subr.mxu0 0.0
      %2500 = vmatpush1.msra.mxu0 0.0
      %2501 = vmatprep.subr.mxu0 0.0
      %2502 = vmatpush1.msra.mxu0 0.0
      %2503 = vmatprep.subr.mxu0 0.0
      %2504 = vmatpush1.msra.mxu0 0.0
      %2505 = vmatprep.subr.mxu0 0.0
      %2506 = vmatpush1.msra.mxu0 0.0
      %2507 = vmatprep.subr.mxu0 0.0
      %2508 = vmatpush1.msra.mxu0 0.0
      %2509 = vmatprep.subr.mxu0 0.0
      %2510 = vmatpush1.msra.mxu0 0.0
      %2511 = vmatprep.subr.mxu0 0.0
      %2512 = vmatpush1.msra.mxu0 0.0
      %2513 = vmatprep.subr.mxu0 0.0
      %2514 = vmatpush1.msra.mxu0 0.0
      %2515 = vmatprep.subr.mxu0 0.0
      %2516 = vmatpush1.msra.mxu0 0.0
      %2517 = vmatprep.subr.mxu0 0.0
      %2518 = vmatpush1.msra.mxu0 0.0
      %2519 = vmatprep.subr.mxu0 0.0
      %2520 = vmatpush1.msra.mxu0 0.0
      %2521 = vmatprep.subr.mxu0 0.0
      %2522 = vmatpush1.msra.mxu0 0.0
      %2523 = vmatprep.subr.mxu0 0.0
      %2524 = vmatpush1.msra.mxu0 %v2481
      %2525 = vmatprep.subr.mxu0 0.0
      %2526 = vmatpush1.msra.mxu0 %v2480
      %2527 = vmatprep.subr.mxu0 0.0
      %2528 = vmatpush1.msra.mxu0 %v2479
      %2529 = vmatprep.subr.mxu0 0.0
      %2530 = vmatpush1.msra.mxu0 %v2478
      %2531 = vmatprep.subr.mxu0 0.0
      %2532 = vmatpush2.msra.mxu0 0.0
      %2533 = vmatprep.subr.mxu0 0.0
      %2534 = vmatpush2.msra.mxu0 0.0
      %2535 = vmatprep.subr.mxu0 0.0
      %2536 = vmatpush2.msra.mxu0 0.0
      %2537 = vmatprep.subr.mxu0 0.0
      %2538 = vmatpush2.msra.mxu0 0.0
      %2539 = vmatprep.subr.mxu0 0.0
      %2540 = vmatpush2.msra.mxu0 0.0
      %2541 = vmatprep.subr.mxu0 0.0
      %2542 = vmatpush2.msra.mxu0 0.0
      %2543 = vmatprep.subr.mxu0 0.0
      %2544 = vmatpush2.msra.mxu0 0.0
      %2545 = vmatprep.subr.mxu0 0.0
      %2546 = vmatpush2.msra.mxu0 0.0
      %2547 = vmatprep.subr.mxu0 0.0
      %2548 = vmatpush2.msra.mxu0 0.0
      %2549 = vmatprep.subr.mxu0 0.0
      %2550 = vmatpush2.msra.mxu0 0.0
      %2551 = vmatprep.subr.mxu0 0.0
      %2552 = vmatpush2.msra.mxu0 0.0
      %2553 = vmatprep.subr.mxu0 0.0
      %2554 = vmatpush2.msra.mxu0 0.0
      %2555 = vmatprep.subr.mxu0 0.0
      %2556 = vmatpush2.msra.mxu0 0.0
      %2557 = vmatprep.subr.mxu0 0.0
      %2558 = vmatpush2.msra.mxu0 0.0
      %2559 = vmatprep.subr.mxu0 0.0
      %2560 = vmatpush2.msra.mxu0 0.0
      %2561 = vmatprep.subr.mxu0 0.0
      %2562 = vmatpush2.msra.mxu0 0.0
      %2563 = vmatprep.mubr.f32.mxu0 0.0
      %2564 = vmatmul.mubr.f32.gmra.mxu0 %v2491
      %v2565 = vpop.f32.mrf.mxu0
      %v2566 = vadd.f32 %v2488, %v2565
      %v2567 = vpop.f32.mrf.mxu0
      %2568 = vmatprep.mubr.f32.mxu0 0.0
      %2569 = vmatmul.mubr.f32.gmra.mxu0 %v2494
      %v2570 = vpop.f32.mrf.mxu0
      %v2571 = vadd.f32 %v2488, %v2570
      %v2572 = vpop.f32.mrf.mxu0
      %2573 = vmatprep.mubr.f32.mxu0 0.0
      %2574 = vmatmul.mubr.f32.gmra.mxu0 %v2497
      %v2575 = vpop.f32.mrf.mxu0
      %v2576 = vadd.f32 %v2488, %v2575
      %v2577 = vpop.f32.mrf.mxu0
      %2578 = vdwg.mxu0
      %v2579 = vmul.f32 %v2566, %v2566
      %v2580 = vmul.f32 %v2571, %v2571
      %v2581 = vmul.f32 %v2576, %v2576
      %v2582 = vmul.f32 %v2566, %v2579
      %v2583 = vmul.f32 %v2571, %v2580
      %v2584 = vmul.f32 %v2576, %v2581
      %v2585 = vmul.f32 %v2582, 0.044715
      %v2586 = vmul.f32 %v2583, 0.044715
      %v2587 = vmul.f32 %v2584, 0.044715
      %v2588 = vadd.f32 %v2566, %v2585
      %v2589 = vadd.f32 %v2571, %v2586
      %v2590 = vadd.f32 %v2576, %v2587
      %v2591 = vmul.f32 %v2588, 0.7978846
      %v2592 = vmul.f32 %v2589, 0.7978846
      %v2593 = vmul.f32 %v2590, 0.7978846
      %v2594 = vtanh.pop %v2591
      %v2595 = vtanh.pop %v2592
      %v2596 = vtanh.pop %v2593
      %v2597 = vadd.f32 %v2594, 1.0
      %v2598 = vadd.f32 %v2595, 1.0
      %v2599 = vadd.f32 %v2596, 1.0
      %v2600 = vmul.f32 %v2597, 0.5
      %v2601 = vmul.f32 %v2598, 0.5
      %v2602 = vmul.f32 %v2599, 0.5
      %v2603 = vmul.f32 %v2566, %v2600
      %v2604 = vmul.f32 %v2571, %v2601
      %v2605 = vmul.f32 %v2576, %v2602
      %s2606 = scalar_lea.vmem %s9, 128
      %v2607 = vld [vmem:[%s2606] sm:$0xff]
      %v2608 = vld [vmem:[%s2606 + $0x8] sm:$0xff]
      %v2609 = vld [vmem:[%s2606 + $0x10] sm:$0xff]
      %v2610 = vld [vmem:[%s2606 + $0x18] sm:$0xff]
      %v2611 = vld [vmem:[%s2606 + $0x20] sm:$0xff]
      %v2612 = vld [vmem:[%s2606 + $0x28] sm:$0xff]
      %v2613 = vld [vmem:[%s2606 + $0x30] sm:$0xff]
      %v2614 = vld [vmem:[%s2606 + $0x38] sm:$0xff]
      %v2615 = vld [vmem:[%s2606 + $0x40] sm:$0xff]
      %v2616 = vld [vmem:[%s2606 + $0x48] sm:$0xff]
      %v2617 = vld [vmem:[%s2606 + $0x50] sm:$0xff]
      %v2618 = vld [vmem:[%s2606 + $0x58] sm:$0xff]
      %v2619 = vld [vmem:[%s2606 + $0x60] sm:$0xff]
      %v2620 = vld [vmem:[%s2606 + $0x68] sm:$0xff]
      %v2621 = vld [vmem:[%s2606 + $0x70] sm:$0xff]
      %v2622 = vld [vmem:[%s2606 + $0x78] sm:$0xff]
      %s2623 = scalar_lea.vmem %s10, 1
      %v2624 = vld [vmem:[%s2623] sm:$0x1]
      %v2626 = vlaneseq
      %v2627 = vshrl.u32 %v2626, 7
      %v2628 = vsub.s32 0, %v2627
      %v2629 = vrot.slane %v2624, %v2628
      %2631 = vmatprep.subr.mxu0 0.0
      %2632 = vmatpush1.msra.mxu0 %v2622
      %2633 = vmatprep.subr.mxu0 0.0
      %2634 = vmatpush1.msra.mxu0 %v2621
      %2635 = vmatprep.subr.mxu0 0.0
      %2636 = vmatpush1.msra.mxu0 %v2620
      %2637 = vmatprep.subr.mxu0 0.0
      %2638 = vmatpush1.msra.mxu0 %v2619
      %2639 = vmatprep.subr.mxu0 0.0
      %2640 = vmatpush1.msra.mxu0 %v2618
      %2641 = vmatprep.subr.mxu0 0.0
      %2642 = vmatpush1.msra.mxu0 %v2617
      %2643 = vmatprep.subr.mxu0 0.0
      %2644 = vmatpush1.msra.mxu0 %v2616
      %2645 = vmatprep.subr.mxu0 0.0
      %2646 = vmatpush1.msra.mxu0 %v2615
      %2647 = vmatprep.subr.mxu0 0.0
      %2648 = vmatpush1.msra.mxu0 %v2614
      %2649 = vmatprep.subr.mxu0 0.0
      %2650 = vmatpush1.msra.mxu0 %v2613
      %2651 = vmatprep.subr.mxu0 0.0
      %2652 = vmatpush1.msra.mxu0 %v2612
      %2653 = vmatprep.subr.mxu0 0.0
      %2654 = vmatpush1.msra.mxu0 %v2611
      %2655 = vmatprep.subr.mxu0 0.0
      %2656 = vmatpush1.msra.mxu0 %v2610
      %2657 = vmatprep.subr.mxu0 0.0
      %2658 = vmatpush1.msra.mxu0 %v2609
      %2659 = vmatprep.subr.mxu0 0.0
      %2660 = vmatpush1.msra.mxu0 %v2608
      %2661 = vmatprep.subr.mxu0 0.0
      %2662 = vmatpush1.msra.mxu0 %v2607
      %2663 = vmatprep.subr.mxu0 0.0
      %2664 = vmatpush2.msra.mxu0 0.0
      %2665 = vmatprep.subr.mxu0 0.0
      %2666 = vmatpush2.msra.mxu0 0.0
      %2667 = vmatprep.subr.mxu0 0.0
      %2668 = vmatpush2.msra.mxu0 0.0
      %2669 = vmatprep.subr.mxu0 0.0
      %2670 = vmatpush2.msra.mxu0 0.0
      %2671 = vmatprep.subr.mxu0 0.0
      %2672 = vmatpush2.msra.mxu0 0.0
      %2673 = vmatprep.subr.mxu0 0.0
      %2674 = vmatpush2.msra.mxu0 0.0
      %2675 = vmatprep.subr.mxu0 0.0
      %2676 = vmatpush2.msra.mxu0 0.0
      %2677 = vmatprep.subr.mxu0 0.0
      %2678 = vmatpush2.msra.mxu0 0.0
      %2679 = vmatprep.subr.mxu0 0.0
      %2680 = vmatpush2.msra.mxu0 0.0
      %2681 = vmatprep.subr.mxu0 0.0
      %2682 = vmatpush2.msra.mxu0 0.0
      %2683 = vmatprep.subr.mxu0 0.0
      %2684 = vmatpush2.msra.mxu0 0.0
      %2685 = vmatprep.subr.mxu0 0.0
      %2686 = vmatpush2.msra.mxu0 0.0
      %2687 = vmatprep.subr.mxu0 0.0
      %2688 = vmatpush2.msra.mxu0 0.0
      %2689 = vmatprep.subr.mxu0 0.0
      %2690 = vmatpush2.msra.mxu0 0.0
      %2691 = vmatprep.subr.mxu0 0.0
      %2692 = vmatpush2.msra.mxu0 0.0
      %2693 = vmatprep.subr.mxu0 0.0
      %2694 = vmatpush2.msra.mxu0 0.0
      %2695 = vmatprep.mubr.f32.mxu0 0.0
      %2696 = vmatmul.mubr.f32.gmra.mxu0 %v2603
      %v2697 = vpop.f32.mrf.mxu0
      %v2698 = vadd.f32 %v2629, %v2697
      %v2699 = vpop.f32.mrf.mxu0
      %2700 = vmatprep.mubr.f32.mxu0 0.0
      %2701 = vmatmul.mubr.f32.gmra.mxu0 %v2604
      %v2702 = vpop.f32.mrf.mxu0
      %v2703 = vadd.f32 %v2629, %v2702
      %v2704 = vpop.f32.mrf.mxu0
      %2705 = vmatprep.mubr.f32.mxu0 0.0
      %2706 = vmatmul.mubr.f32.gmra.mxu0 %v2605
      %v2707 = vpop.f32.mrf.mxu0
      %v2708 = vadd.f32 %v2629, %v2707
      %v2709 = vpop.f32.mrf.mxu0
      %2710 = vdwg.mxu0
      %v2711 = vadd.f32 %v2435, %v2698
      %v2712 = vadd.f32 %v2436, %v2703
      %v2713 = vadd.f32 %v2437, %v2708
      %v2714 = vsel %vm550, %v2711, 0.0
      %2715 = vadd.xlane.f32.xlu0 %v2714
      %v2716 = vpop.xlane.xlu0 %2715
      %v2717 = vsel %vm550, %v2712, 0.0
      %2718 = vadd.xlane.f32.xlu0 %v2717
      %v2719 = vpop.xlane.xlu0 %2718
      %v2720 = vsel %vm550, %v2713, 0.0
      %2721 = vadd.xlane.f32.xlu0 %v2720
      %v2722 = vpop.xlane.xlu0 %2721
      %v2723 = vmul.f32 %v2716, %v560
      %v2724 = vmul.f32 %v2719, %v560
      %v2725 = vmul.f32 %v2722, %v560
      %v2726 = vsub.f32 %v2711, %v2723
      %v2727 = vsub.f32 %v2712, %v2724
      %v2728 = vsub.f32 %v2713, %v2725
      %v2729 = vmul.f32 %v2726, %v2726
      %v2730 = vmul.f32 %v2727, %v2727
      %v2731 = vmul.f32 %v2728, %v2728
      %v2732 = vsel %vm550, %v2729, 0.0
      %2733 = vadd.xlane.f32.xlu0 %v2732
      %v2734 = vpop.xlane.xlu0 %2733
      %v2735 = vsel %vm550, %v2730, 0.0
      %2736 = vadd.xlane.f32.xlu0 %v2735
      %v2737 = vpop.xlane.xlu0 %2736
      %v2738 = vsel %vm550, %v2731, 0.0
      %2739 = vadd.xlane.f32.xlu0 %v2738
      %v2740 = vpop.xlane.xlu0 %2739
      %v2741 = vmul.f32 %v2734, %v560
      %v2742 = vmul.f32 %v2737, %v560
      %v2743 = vmul.f32 %v2740, %v560
      %v2744 = vadd.f32 %v2741, 1e-06
      %v2745 = vadd.f32 %v2742, 1e-06
      %v2746 = vadd.f32 %v2743, 1e-06
      %v2747 = vrsqrt.pop %v2744
      %v2748 = vrsqrt.pop %v2745
      %v2749 = vrsqrt.pop %v2746
      %v2750 = vmul.f32 %v2726, %v2747
      %v2751 = vmul.f32 %v2727, %v2748
      %v2752 = vmul.f32 %v2728, %v2749
      %v2753 = vld [vmem:[%s11] sm:$0x1]
      %v2755 = vlaneseq
      %v2756 = vshrl.u32 %v2755, 7
      %v2757 = vsub.s32 0, %v2756
      %v2758 = vrot.slane %v2753, %v2757
      %v2760 = vmul.f32 %v2750, %v2758
      %v2761 = vmul.f32 %v2751, %v2758
      %v2762 = vmul.f32 %v2752, %v2758
      %v2763 = vld [vmem:[%s12] sm:$0x1]
      %v2765 = vlaneseq
      %v2766 = vshrl.u32 %v2765, 7
      %v2767 = vsub.s32 0, %v2766
      %v2768 = vrot.slane %v2763, %v2767
      %v2770 = vadd.f32 %v2760, %v2768
      %v2771 = vadd.f32 %v2761, %v2768
      %v2772 = vadd.f32 %v2762, %v2768
      %2773 = vst.msk [vmem:[%s442] sm:$0xff] %vm550, %v2770
      %2774 = vst.msk [vmem:[%s442 + $0x8] sm:$0xff] %vm550, %v2771
      %2775 = vst.msk [vmem:[%s442 + $0x10] sm:$0xff] %vm550, %v2772
      %s2776 = smul.u32 3, %s24
      %p2777 = scmp.lt.s32.totalorder %s2776, 5
      %s2778 = scalar_select %p2777, %s2776, 5
      %s2779 = smul.addr %s2778, 8
      %s2780 = scalar_lea.vmem %s13, %s2779
      // Predicated region
      $region73: #{dinov2_forward.1} parent=71 // pred_check
        %p2781 = pneg %p320
      $region74: #{dinov2_forward.1} parent=71 // pred_check_branch
        %2783 = sbr.rel (%p2781) target = $region76
      $region75: #{dinov2_forward.1} parent=71 // pred_region
        %s2784 = smul.u32 3, %s24
      $region76: #{dinov2_forward.1} parent=71 // pred_fallthru
        _
    $region72: #{dinov2_forward.1} parent=5 // pred_fallthru
      _
    %p2785 = scmp.le.s32.totalorder 2, %s19
    // Predicated region
    $region77: #{dinov2_forward.1} parent=5 // pred_check
      %p2786 = pneg %p2785
    $region78: #{dinov2_forward.1} parent=5 // pred_check_branch
      %2788 = sbr.rel (%p2786) target = $region80
    $region79: #{dinov2_forward.1} parent=5 // pred_region
      %s2789 = ssub.s32 %s19, 2
      // Predicated region
      $region81: #{dinov2_forward.1} parent=79 // pred_check
        %p2790 = pneg %p326
      $region82: #{dinov2_forward.1} parent=79 // pred_check_branch
        %2792 = sbr.rel (%p2790) target = $region84
      $region83: #{dinov2_forward.1} parent=79 // pred_region
        %s2793 = smul.u32 3, %s25
        %p2794 = scmp.lt.s32.totalorder %s2793, 5
        %s2795 = scalar_select %p2794, %s2793, 5
        %s2796 = smul.addr %s2795, 8
        %s2797 = scalar_lea.vmem %s13, %s2796
      $region84: #{dinov2_forward.1} parent=79 // pred_fallthru
        _
    $region80: #{dinov2_forward.1} parent=5 // pred_fallthru
      _
  $region6: #{dinov2_forward.1} parent=0 // loop_footer
    %s23 = sadd.s32 1, %s19
  $region7: #{dinov2_forward.1} parent=0 // loop_footer_branch
    %18 = sbr.rel target = $region3
  $region8: #{dinov2_forward.1} parent=0 // loop_exit
    _

</llo_original>
